<compile_context>
chip_gen: v7x
topology: tpu7x:2x2x1
jax: 0.10.0
libtpu: 0.0.40
codegen_flags: <defaults>
</compile_context>

<pallas_src>
import math
import functools

import jax
import jax.numpy as jnp
from jax.experimental import pallas as pl
from jax.experimental.pallas import tpu as pltpu


# --------------------------------------------------------------------------
# Chip-aware sizing helpers
# --------------------------------------------------------------------------
def _vmem_limit_bytes():
    """Scoped-VMEM limit to request, derived from physical VMEM when known."""
    total = 128 << 20
    try:
        info_fn = getattr(pltpu, "get_tpu_info", None)
        if info_fn is not None:
            total = int(info_fn().vmem_capacity_bytes)
    except Exception:
        total = 64 << 20          # conservative (v7x physical)
    return max(32 << 20, min(int(total * 0.8), 100 << 20))


def _pick_kvb(nKV, rep, D, H, vmem_limit):
    """KV heads per attention grid step: widen q/o matmuls to >=256 columns
    while keeping the double-buffered per-step weight tiles inside VMEM."""
    kvb = 1
    while (nKV % (kvb * 2) == 0) and (kvb * rep * D < 256):
        kvb *= 2

    def step_weight_bytes(b):
        # wq (H, b*rep*D) + wk,wv (H, b*D) + wo (b*rep*D, H), bf16, double-buffered
        return 4 * H * b * D * (2 * rep + 2)

    while kvb > 1 and step_weight_bytes(kvb) > vmem_limit // 2:
        kvb //= 2
    return kvb


def _pick_mlp_tile(H, I, vmem_limit):
    budget = max(vmem_limit // 2, 4 << 20)
    for cand in (2048, 1024, 512, 256, 128):
        if I % cand == 0 and 12 * H * cand <= budget:   # gate+up+down, bf16, x2 buf
            return cand
    return I


def _pick_fc_tile(H, vmem_limit):
    budget = max(vmem_limit // 2, 4 << 20)
    for cand in (2048, 1024, 512, 256, 128):
        if H % cand == 0 and 8 * H * cand <= budget:    # fc_a+fc_b, bf16, x2 buf
            return cand
    return H


# --------------------------------------------------------------------------
# Kernel 1: fused front end, column-tiled ("parallel" grid axis)
#   out[:, tile] = rmsnorm(embed*scale_emb) @ fc_a[:, tile]
#                + rmsnorm(hidden)          @ fc_b[:, tile]
# --------------------------------------------------------------------------
def _fc_fuse_kernel(emb_ref, hs_ref, n1_ref, n2_ref, fca_ref, fcb_ref, o_ref,
                    *, eps, scale_emb):
    def rms(x, w):
        var = jnp.mean(x * x, axis=-1, keepdims=True)
        return x * jax.lax.rsqrt(var + eps) * w

    e = rms(emb_ref[...].astype(jnp.float32) * scale_emb,
            n1_ref[...].astype(jnp.float32))
    h = rms(hs_ref[...].astype(jnp.float32), n2_ref[...].astype(jnp.float32))
    acc = jnp.dot(e.astype(fca_ref.dtype), fca_ref[...],
                  preferred_element_type=jnp.float32)
    acc += jnp.dot(h.astype(fcb_ref.dtype), fcb_ref[...],
                   preferred_element_type=jnp.float32)
    o_ref[...] = acc.astype(o_ref.dtype)


def fc_fuse(emb, hs, n1, n2, fc_a, fc_b, eps, scale_emb, vmem_limit):
    T, H = hs.shape
    tile_n = _pick_fc_tile(H, vmem_limit)
    grid_n = H // tile_n
    return pl.pallas_call(
        functools.partial(_fc_fuse_kernel, eps=eps, scale_emb=scale_emb),
        out_shape=jax.ShapeDtypeStruct((T, H), jnp.float32),
        grid=(grid_n,),
        in_specs=[pl.BlockSpec((T, H), lambda c: (0, 0)),
                  pl.BlockSpec((T, H), lambda c: (0, 0)),
                  pl.BlockSpec((1, H), lambda c: (0, 0)),
                  pl.BlockSpec((1, H), lambda c: (0, 0)),
                  pl.BlockSpec((H, tile_n), lambda c: (0, c)),
                  pl.BlockSpec((H, tile_n), lambda c: (0, c))],
        out_specs=pl.BlockSpec((T, tile_n), lambda c: (0, c)),
        compiler_params=pltpu.CompilerParams(
            dimension_semantics=("parallel",), vmem_limit_bytes=vmem_limit),
    )(emb, hs, n1.reshape(1, H), n2.reshape(1, H), fc_a, fc_b)


# --------------------------------------------------------------------------
# Kernel 2: fused attention block (per layer), KV-group-major grid.
#   step g: rmsnorm (once) -> wide Q/K/V dots -> RoPE (K once per KV head) ->
#           per-head causal softmax attention -> wide o_proj accumulation ->
#           residual + res_scale epilogue.
# --------------------------------------------------------------------------
def _attn_block_kernel(hs_ref, nw_ref, wq_ref, wk_ref, wv_ref, wo_ref,
                       cos_ref, sin_ref, o_ref, xn_ref, acc_ref,
                       *, eps, scale, res_scale, D, half, kvb, rep):
    g = pl.program_id(0)
    last = pl.num_programs(0) - 1

    @pl.when(g == 0)
    def _():
        x = hs_ref[...].astype(jnp.float32)
        var = jnp.mean(x * x, axis=-1, keepdims=True)
        xn_ref[...] = x * jax.lax.rsqrt(var + eps) * nw_ref[...].astype(jnp.float32)
        acc_ref[...] = jnp.zeros_like(acc_ref)

    xn = xn_ref[...].astype(jnp.bfloat16)               # (T, H)
    cos2 = cos_ref[...]                                 # (T, D) [cos, cos]
    sinm = sin_ref[...]                                 # (T, D) [-sin, sin]

    # Wide projections: q over all kvb*rep heads of the group, k/v over kvb heads.
    q_g = jnp.dot(xn, wq_ref[0], preferred_element_type=jnp.float32) * scale
    k_g = jnp.dot(xn, wk_ref[0], preferred_element_type=jnp.float32)
    v_g = jnp.dot(xn, wv_ref[0], preferred_element_type=jnp.float32)

    def rope(x):                                        # NeoX rotate-half
        if D % 128 == 0:
            xr = pltpu.roll(x, half, axis=1)            # XLU lane rotate
        else:
            xr = jnp.concatenate([x[:, half:], x[:, :half]], axis=-1)
        return x * cos2 + xr * sinm

    T = xn.shape[0]
    row = jax.lax.broadcasted_iota(jnp.int32, (T, T), 0)
    col = jax.lax.broadcasted_iota(jnp.int32, (T, T), 1)
    causal = col <= row

    ctx_parts = []
    for j in range(kvb):                                # static unroll
        k = rope(k_g[:, j * D:(j + 1) * D]).astype(jnp.bfloat16)
        v = v_g[:, j * D:(j + 1) * D].astype(jnp.bfloat16)
        for r in range(rep):
            qi = j * rep + r
            q = rope(q_g[:, qi * D:(qi + 1) * D]).astype(jnp.bfloat16)
            s = jax.lax.dot_general(q, k, (((1,), (1,)), ((), ())),
                                    preferred_element_type=jnp.float32)
            s = jnp.where(causal, s, -1e30)             # finite mask (no NaNs)
            m = jnp.max(s, axis=-1, keepdims=True)
            p = jnp.exp(s - m)
            p = p * pl.reciprocal(jnp.sum(p, axis=-1, keepdims=True), approx=True)
            ctx_parts.append(jnp.dot(p.astype(jnp.bfloat16), v,
                                     preferred_element_type=jnp.float32))

    ctx = jnp.concatenate(ctx_parts, axis=-1).astype(jnp.bfloat16)   # (T, kvb*rep*D)
    acc_ref[...] += jnp.dot(ctx, wo_ref[0], preferred_element_type=jnp.float32)

    @pl.when(g == last)
    def _():
        o_ref[...] = (hs_ref[...].astype(jnp.float32)
                      + acc_ref[...] * res_scale).astype(o_ref.dtype)


def attn_block(hs, norm_w, wq_p, wk_p, wv_p, wo_p, cos2, sinm,
               eps, scale, res_scale, D, vmem_limit):
    T, H = hs.shape
    nG, _, GD = wq_p.shape
    KD = wk_p.shape[2]
    kvb = KD // D
    rep = (GD // D) // kvb
    half = D // 2
    return pl.pallas_call(
        functools.partial(_attn_block_kernel, eps=eps, scale=scale,
                          res_scale=res_scale, D=D, half=half, kvb=kvb, rep=rep),
        out_shape=jax.ShapeDtypeStruct((T, H), jnp.float32),
        grid=(nG,),
        in_specs=[
            pl.BlockSpec((T, H), lambda g: (0, 0)),           # hidden / residual
            pl.BlockSpec((1, H), lambda g: (0, 0)),           # input_layernorm w
            pl.BlockSpec((1, H, GD), lambda g: (g, 0, 0)),    # q weights (group)
            pl.BlockSpec((1, H, KD), lambda g: (g, 0, 0)),    # k weights (group)
            pl.BlockSpec((1, H, KD), lambda g: (g, 0, 0)),    # v weights (group)
            pl.BlockSpec((1, GD, H), lambda g: (g, 0, 0)),    # o weights (group)
            pl.BlockSpec((T, D), lambda g: (0, 0)),           # rope [cos,cos]
            pl.BlockSpec((T, D), lambda g: (0, 0)),           # rope [-sin,sin]
        ],
        out_specs=pl.BlockSpec((T, H), lambda g: (0, 0)),
        scratch_shapes=[pltpu.VMEM((T, H), jnp.float32),      # normalized x
                        pltpu.VMEM((T, H), jnp.float32)],     # o_proj accumulator
        compiler_params=pltpu.CompilerParams(
            dimension_semantics=("arbitrary",), vmem_limit_bytes=vmem_limit),
    )(hs, norm_w.reshape(1, H), wq_p, wk_p, wv_p, wo_p, cos2, sinm)


# --------------------------------------------------------------------------
# Kernel 3: fused MLP block (per layer), intermediate-tiled grid.
# --------------------------------------------------------------------------
def _mlp_block_kernel(hs_ref, nw_ref, wg_ref, wu_ref, wd_ref, o_ref,
                      xn_ref, acc_ref, *, eps, res_scale):
    i = pl.program_id(0)
    last = pl.num_programs(0) - 1

    @pl.when(i == 0)
    def _():
        x = hs_ref[...].astype(jnp.float32)
        var = jnp.mean(x * x, axis=-1, keepdims=True)
        xn_ref[...] = x * jax.lax.rsqrt(var + eps) * nw_ref[...].astype(jnp.float32)
        acc_ref[...] = jnp.zeros_like(acc_ref)

    xn = xn_ref[...].astype(jnp.bfloat16)
    g = jnp.dot(xn, wg_ref[...], preferred_element_type=jnp.float32)
    u = jnp.dot(xn, wu_ref[...], preferred_element_type=jnp.float32)
    act = (g * jax.nn.sigmoid(g)) * u                     # SiLU(gate) * up, f32
    acc_ref[...] += jnp.dot(act.astype(jnp.bfloat16), wd_ref[...],
                            preferred_element_type=jnp.float32)

    @pl.when(i == last)
    def _():
        o_ref[...] = (hs_ref[...].astype(jnp.float32)
                      + acc_ref[...] * res_scale).astype(o_ref.dtype)


def mlp_block(hs, norm_w, wg, wu, wd, eps, res_scale, vmem_limit):
    T, H = hs.shape
    I = wg.shape[1]
    tile_i = _pick_mlp_tile(H, I, vmem_limit)
    grid_i = I // tile_i
    return pl.pallas_call(
        functools.partial(_mlp_block_kernel, eps=eps, res_scale=res_scale),
        out_shape=jax.ShapeDtypeStruct((T, H), jnp.float32),
        grid=(grid_i,),
        in_specs=[
            pl.BlockSpec((T, H), lambda i: (0, 0)),            # hidden / residual
            pl.BlockSpec((1, H), lambda i: (0, 0)),            # post_attn layernorm
            pl.BlockSpec((H, tile_i), lambda i: (0, i)),       # gate weight tile
            pl.BlockSpec((H, tile_i), lambda i: (0, i)),       # up weight tile
            pl.BlockSpec((tile_i, H), lambda i: (i, 0)),       # down weight tile
        ],
        out_specs=pl.BlockSpec((T, H), lambda i: (0, 0)),
        scratch_shapes=[pltpu.VMEM((T, H), jnp.float32),
                        pltpu.VMEM((T, H), jnp.float32)],
        compiler_params=pltpu.CompilerParams(
            dimension_semantics=("arbitrary",), vmem_limit_bytes=vmem_limit),
    )(hs, norm_w.reshape(1, H), wg, wu, wd)


# ----------------------------- JAX glue -----------------------------------

def rope_tables(positions, D, theta):
    half = D // 2
    inv_freq = 1.0 / (theta ** (jnp.arange(0, half, dtype=jnp.float32) * 2.0 / D))
    freqs = positions.astype(jnp.float32)[:, None] * inv_freq[None, :]   # (T, D/2)
    cos = jnp.cos(freqs)
    sin = jnp.sin(freqs)
    cos2 = jnp.concatenate([cos, cos], axis=-1)      # (T, D)
    sinm = jnp.concatenate([-sin, sin], axis=-1)     # (T, D), sign baked in
    return cos2, sinm


def eagle_minicpm_forward(packed, cfg, input_ids, positions, hidden_states):
    H = cfg["hidden_size"]
    nH = cfg["num_attention_heads"]
    D = H // nH
    eps = cfg["rms_norm_eps"]
    res_scale = cfg["scale_depth"] / math.sqrt(cfg["mup_denominator"])
    attn_scale = D ** -0.5
    vmem_limit = _vmem_limit_bytes()

    input_embeds = jnp.take(packed["embed"], input_ids, axis=0)
    hs = fc_fuse(input_embeds, hidden_states,
                 packed["input_norm1"], packed["input_norm2"],
                 packed["fc_a"], packed["fc_b"], eps, cfg["scale_emb"], vmem_limit)

    cos2, sinm = rope_tables(positions, D, cfg["rope_theta"])

    for layer in packed["layers"]:
        hs = attn_block(hs, layer["input_layernorm"],
                        layer["wq_p"], layer["wk_p"], layer["wv_p"], layer["wo_p"],
                        cos2, sinm, eps, attn_scale, res_scale, D, vmem_limit)
        hs = mlp_block(hs, layer["post_attention_layernorm"],
                       layer["w_gate"], layer["w_up"], layer["w_down"],
                       eps, res_scale, vmem_limit)

    # EagleMiniCPMModel.forward returns hidden_states without the final norm.
    return hs


# --------------------------- parameter init / packing ----------------------

def init_params(key, cfg):
    H = cfg["hidden_size"]
    I = cfg["intermediate_size"]
    nH = cfg["num_attention_heads"]
    nKV = cfg["num_key_value_heads"]
    D = H // nH
    V = cfg["vocab_size"]
    L = cfg["num_hidden_layers"]
    wdt = jnp.bfloat16     # weights stream in bf16; norms stay f32

    def norm_w(k, n):
        return 1.0 + 0.01 * jax.random.normal(k, (n,), jnp.float32)

    def lin(k, shape):
        return (0.05 * jax.random.normal(k, shape, jnp.float32)).astype(wdt)

    per_layer = 9
    keys = jax.random.split(key, 5 + per_layer * L)
    params = {
        "embed": lin(keys[0], (V, H)),
        "input_norm1": norm_w(keys[1], H),
        "input_norm2": norm_w(keys[2], H),
        "fc_a": lin(keys[3], (H, H)),   # fc rows multiplying input_embeds
        "fc_b": lin(keys[4], (H, H)),   # fc rows multiplying hidden_states
        "layers": [],
    }
    for l in range(L):
        kk = keys[5 + per_layer * l: 5 + per_layer * (l + 1)]
        params["layers"].append({
            "input_layernorm": norm_w(kk[0], H),
            "wq": lin(kk[1], (nH, H, D)),     # head-major q projection
            "wk": lin(kk[2], (nKV, H, D)),
            "wv": lin(kk[3], (nKV, H, D)),
            "wo": lin(kk[4], (nH, D, H)),     # head-major o projection
            "post_attention_layernorm": norm_w(kk[5], H),
            "w_gate": lin(kk[6], (H, I)),
            "w_up": lin(kk[7], (H, I)),
            "w_down": lin(kk[8], (I, H)),
        })
    return params


def pack_params(params, cfg, vmem_limit):
    """One-time (eager) repack of attention weights into KV-group-major tiles."""
    H = cfg["hidden_size"]
    nH = cfg["num_attention_heads"]
    nKV = cfg["num_key_value_heads"]
    D = H // nH
    assert nH % nKV == 0
    rep = nH // nKV
    kvb = _pick_kvb(nKV, rep, D, H, vmem_limit)
    nG = nKV // kvb
    G = kvb * rep

    packed = {k: v for k, v in params.items() if k != "layers"}
    packed["layers"] = []
    for layer in params["layers"]:
        wq, wk, wv, wo = layer["wq"], layer["wk"], layer["wv"], layer["wo"]
        wq_p = wq.transpose(1, 0, 2).reshape(H, nG, G * D).transpose(1, 0, 2)
        wk_p = wk.transpose(1, 0, 2).reshape(H, nG, kvb * D).transpose(1, 0, 2)
        wv_p = wv.transpose(1, 0, 2).reshape(H, nG, kvb * D).transpose(1, 0, 2)
        wo_p = wo.reshape(nG, G * D, H)
        packed["layers"].append({
            "input_layernorm": layer["input_layernorm"],
            "post_attention_layernorm": layer["post_attention_layernorm"],
            "wq_p": wq_p, "wk_p": wk_p, "wv_p": wv_p, "wo_p": wo_p,
            "w_gate": layer["w_gate"], "w_up": layer["w_up"],
            "w_down": layer["w_down"],
        })
    return packed


# ------------------------------- main ---------------------------------------

if __name__ == "__main__":
    cfg = dict(
        vocab_size=128,
        hidden_size=128,
        intermediate_size=384,
        num_attention_heads=4,
        num_key_value_heads=2,      # exercises GQA + kv-group packing
        num_hidden_layers=2,
        rms_norm_eps=1e-6,
        rope_theta=10000.0,
        scale_emb=12.0,
        scale_depth=1.4,
        mup_denominator=4.0,
    )
    T = 8

    key = jax.random.PRNGKey(0)
    k_param, k_ids, k_hs = jax.random.split(key, 3)
    params = init_params(k_param, cfg)
    packed = pack_params(params, cfg, _vmem_limit_bytes())   # eager, one-time

    input_ids = jax.random.randint(k_ids, (T,), 0, cfg["vocab_size"], dtype=jnp.int32)
    positions = jnp.arange(T, dtype=jnp.int32)
    hidden_states = jax.random.normal(k_hs, (T, cfg["hidden_size"]), jnp.float32)

    fwd = jax.jit(lambda p, ids, pos, hs: eagle_minicpm_forward(p, cfg, ids, pos, hs))
    out = fwd(packed, input_ids, positions, hidden_states)
    jax.block_until_ready(out)
    assert out.shape == (T, cfg["hidden_size"])
    assert bool(jnp.all(jnp.isfinite(out)))
    print("KERNEL_OK")
</pallas_src>

<mosaic_0001>
module attributes {stable_mosaic.version = 11 : i64} {
  func.func @_fc_fuse_kernel(%arg0: i32, %arg1: memref<8x128xbf16, #tpu.memory_space<vmem>>, %arg2: memref<8x128xf32, #tpu.memory_space<vmem>>, %arg3: memref<1x128xf32, #tpu.memory_space<vmem>>, %arg4: memref<1x128xf32, #tpu.memory_space<vmem>>, %arg5: memref<128x128xbf16, #tpu.memory_space<vmem>>, %arg6: memref<128x128xbf16, #tpu.memory_space<vmem>>, %arg7: memref<8x128xf32, #tpu.memory_space<vmem>>) attributes {dimension_semantics = [#tpu.dimension_semantics<parallel>], iteration_bounds = array<i64: 1>, scalar_prefetch = 0 : i64, scratch_operands = 0 : i64, tpu.core_type = #tpu.core_type<tc>, window_params = [{pipeline_mode = #tpu.pipeline_mode<synchronous>, transform_indices = @transform_0, window_bounds = array<i64: 8, 128>}, {pipeline_mode = #tpu.pipeline_mode<synchronous>, transform_indices = @transform_1, window_bounds = array<i64: 8, 128>}, {pipeline_mode = #tpu.pipeline_mode<synchronous>, transform_indices = @transform_2, window_bounds = array<i64: 1, 128>}, {pipeline_mode = #tpu.pipeline_mode<synchronous>, transform_indices = @transform_3, window_bounds = array<i64: 1, 128>}, {transform_indices = @transform_4, window_bounds = array<i64: 128, 128>}, {transform_indices = @transform_5, window_bounds = array<i64: 128, 128>}, {transform_indices = @transform_6, window_bounds = array<i64: 8, 128>}]} {
    %c0 = arith.constant 0 : index
    %c0_0 = arith.constant 0 : index
    %0 = vector.load %arg1[%c0, %c0_0] : memref<8x128xbf16, #tpu.memory_space<vmem>>, vector<8x128xbf16>
    %1 = arith.extf %0 : vector<8x128xbf16> to vector<8x128xf32>
    %cst = arith.constant 1.200000e+01 : f32
    %2 = vector.broadcast %cst : f32 to vector<8x128xf32>
    %3 = arith.mulf %1, %2 : vector<8x128xf32>
    %c0_1 = arith.constant 0 : index
    %c0_2 = arith.constant 0 : index
    %4 = vector.load %arg3[%c0_1, %c0_2] : memref<1x128xf32, #tpu.memory_space<vmem>>, vector<1x128xf32>
    %5 = arith.mulf %3, %3 : vector<8x128xf32>
    %cst_3 = arith.constant dense<0.000000e+00> : vector<8xf32>
    %6 = vector.multi_reduction <add>, %5, %cst_3 [1] : vector<8x128xf32> to vector<8xf32>
    %7 = vector.shape_cast %6 : vector<8xf32> to vector<8x1xf32>
    %cst_4 = arith.constant 1.280000e+02 : f32
    %8 = vector.broadcast %cst_4 : f32 to vector<8x1xf32>
    %9 = arith.divf %7, %8 : vector<8x1xf32>
    %cst_5 = arith.constant 9.99999997E-7 : f32
    %10 = vector.broadcast %cst_5 : f32 to vector<8x1xf32>
    %11 = arith.addf %9, %10 : vector<8x1xf32>
    %12 = math.rsqrt %11 : vector<8x1xf32>
    %13 = vector.broadcast %12 : vector<8x1xf32> to vector<8x128xf32>
    %14 = arith.mulf %3, %13 : vector<8x128xf32>
    %15 = vector.broadcast %4 : vector<1x128xf32> to vector<8x128xf32>
    %16 = arith.mulf %14, %15 : vector<8x128xf32>
    %c0_6 = arith.constant 0 : index
    %c0_7 = arith.constant 0 : index
    %17 = vector.load %arg2[%c0_6, %c0_7] : memref<8x128xf32, #tpu.memory_space<vmem>>, vector<8x128xf32>
    %c0_8 = arith.constant 0 : index
    %c0_9 = arith.constant 0 : index
    %18 = vector.load %arg4[%c0_8, %c0_9] : memref<1x128xf32, #tpu.memory_space<vmem>>, vector<1x128xf32>
    %19 = arith.mulf %17, %17 : vector<8x128xf32>
    %cst_10 = arith.constant dense<0.000000e+00> : vector<8xf32>
    %20 = vector.multi_reduction <add>, %19, %cst_10 [1] : vector<8x128xf32> to vector<8xf32>
    %21 = vector.shape_cast %20 : vector<8xf32> to vector<8x1xf32>
    %cst_11 = arith.constant 1.280000e+02 : f32
    %22 = vector.broadcast %cst_11 : f32 to vector<8x1xf32>
    %23 = arith.divf %21, %22 : vector<8x1xf32>
    %cst_12 = arith.constant 9.99999997E-7 : f32
    %24 = vector.broadcast %cst_12 : f32 to vector<8x1xf32>
    %25 = arith.addf %23, %24 : vector<8x1xf32>
    %26 = math.rsqrt %25 : vector<8x1xf32>
    %27 = vector.broadcast %26 : vector<8x1xf32> to vector<8x128xf32>
    %28 = arith.mulf %17, %27 : vector<8x128xf32>
    %29 = vector.broadcast %18 : vector<1x128xf32> to vector<8x128xf32>
    %30 = arith.mulf %28, %29 : vector<8x128xf32>
    %31 = arith.truncf %16 : vector<8x128xf32> to vector<8x128xbf16>
    %c0_13 = arith.constant 0 : index
    %c0_14 = arith.constant 0 : index
    %32 = vector.load %arg5[%c0_13, %c0_14] : memref<128x128xbf16, #tpu.memory_space<vmem>>, vector<128x128xbf16>
    %cst_15 = arith.constant dense<0.000000e+00> : vector<8x128xf32>
    %33 = tpu.matmul %31, %32, %cst_15 {dimension_numbers = #tpu.dot_dimension_numbers<[1], [0], [0], [1], [0, 0, 1, 1], [], []>} : vector<8x128xbf16>, vector<128x128xbf16>, vector<8x128xf32> -> vector<8x128xf32>
    %34 = arith.truncf %30 : vector<8x128xf32> to vector<8x128xbf16>
    %c0_16 = arith.constant 0 : index
    %c0_17 = arith.constant 0 : index
    %35 = vector.load %arg6[%c0_16, %c0_17] : memref<128x128xbf16, #tpu.memory_space<vmem>>, vector<128x128xbf16>
    %cst_18 = arith.constant dense<0.000000e+00> : vector<8x128xf32>
    %36 = tpu.matmul %34, %35, %cst_18 {dimension_numbers = #tpu.dot_dimension_numbers<[1], [0], [0], [1], [0, 0, 1, 1], [], []>} : vector<8x128xbf16>, vector<128x128xbf16>, vector<8x128xf32> -> vector<8x128xf32>
    %37 = arith.addf %33, %36 : vector<8x128xf32>
    %c0_19 = arith.constant 0 : index
    %c0_20 = arith.constant 0 : index
    %38 = vector.load %arg7[%c0_19, %c0_20] : memref<8x128xf32, #tpu.memory_space<vmem>>, vector<8x128xf32>
    tpu.vector_store %arg7[%c0_19, %c0_20], %37 {strides = array<i32>} : memref<8x128xf32, #tpu.memory_space<vmem>>, vector<8x128xf32>,
    return
  }
  func.func @transform_0(%arg0: i32) -> (i32, i32) {
    %c0_i32 = arith.constant 0 : i32
    %c0_i32_0 = arith.constant 0 : i32
    %c0_i32_1 = arith.constant 0 : i32
    return %c0_i32, %c0_i32_0 : i32, i32
  }
  func.func @transform_1(%arg0: i32) -> (i32, i32) {
    %c0_i32 = arith.constant 0 : i32
    %c0_i32_0 = arith.constant 0 : i32
    %c0_i32_1 = arith.constant 0 : i32
    return %c0_i32, %c0_i32_0 : i32, i32
  }
  func.func @transform_2(%arg0: i32) -> (i32, i32) {
    %c0_i32 = arith.constant 0 : i32
    %c0_i32_0 = arith.constant 0 : i32
    %c0_i32_1 = arith.constant 0 : i32
    return %c0_i32, %c0_i32_0 : i32, i32
  }
  func.func @transform_3(%arg0: i32) -> (i32, i32) {
    %c0_i32 = arith.constant 0 : i32
    %c0_i32_0 = arith.constant 0 : i32
    %c0_i32_1 = arith.constant 0 : i32
    return %c0_i32, %c0_i32_0 : i32, i32
  }
  func.func @transform_4(%arg0: i32) -> (i32, i32) {
    %c0_i32 = arith.constant 0 : i32
    %c0_i32_0 = arith.constant 0 : i32
    return %c0_i32, %arg0 : i32, i32
  }
  func.func @transform_5(%arg0: i32) -> (i32, i32) {
    %c0_i32 = arith.constant 0 : i32
    %c0_i32_0 = arith.constant 0 : i32
    return %c0_i32, %arg0 : i32, i32
  }
  func.func @transform_6(%arg0: i32) -> (i32, i32) {
    %c0_i32 = arith.constant 0 : i32
    %c0_i32_0 = arith.constant 0 : i32
    return %c0_i32, %arg0 : i32, i32
  }
}

module attributes {stable_mosaic.version = 11 : i64} {
  func.func @_mlp_block_kernel(%arg0: i32, %arg1: memref<8x128xf32, #tpu.memory_space<vmem>>, %arg2: memref<1x128xf32, #tpu.memory_space<vmem>>, %arg3: memref<128x128xbf16, #tpu.memory_space<vmem>>, %arg4: memref<128x128xbf16, #tpu.memory_space<vmem>>, %arg5: memref<128x128xbf16, #tpu.memory_space<vmem>>, %arg6: memref<8x128xf32, #tpu.memory_space<vmem>>, %arg7: memref<8x128xf32, #tpu.memory_space<vmem>>, %arg8: memref<8x128xf32, #tpu.memory_space<vmem>>) attributes {dimension_semantics = [#tpu.dimension_semantics<arbitrary>], iteration_bounds = array<i64: 3>, scalar_prefetch = 0 : i64, scratch_operands = 2 : i64, tpu.core_type = #tpu.core_type<tc>, window_params = [{pipeline_mode = #tpu.pipeline_mode<synchronous>, transform_indices = @transform_0, window_bounds = array<i64: 8, 128>}, {pipeline_mode = #tpu.pipeline_mode<synchronous>, transform_indices = @transform_1, window_bounds = array<i64: 1, 128>}, {transform_indices = @transform_2, window_bounds = array<i64: 128, 128>}, {transform_indices = @transform_3, window_bounds = array<i64: 128, 128>}, {transform_indices = @transform_4, window_bounds = array<i64: 128, 128>}, {pipeline_mode = #tpu.pipeline_mode<synchronous>, transform_indices = @transform_5, window_bounds = array<i64: 8, 128>}]} {
    %c0_i32 = arith.constant 0 : i32
    %0 = arith.cmpi eq, %arg0, %c0_i32 : i32
    %1 = arith.extui %0 : i1 to i32
    %c0_i32_0 = arith.constant 0 : i32
    %2 = arith.cmpi ne, %1, %c0_i32_0 : i32
    scf.if %2 {
      %c0_16 = arith.constant 0 : index
      %c0_17 = arith.constant 0 : index
      %25 = vector.load %arg1[%c0_16, %c0_17] : memref<8x128xf32, #tpu.memory_space<vmem>>, vector<8x128xf32>
      %26 = arith.mulf %25, %25 : vector<8x128xf32>
      %cst_18 = arith.constant dense<0.000000e+00> : vector<8xf32>
      %27 = vector.multi_reduction <add>, %26, %cst_18 [1] : vector<8x128xf32> to vector<8xf32>
      %28 = vector.shape_cast %27 : vector<8xf32> to vector<8x1xf32>
      %cst_19 = arith.constant 1.280000e+02 : f32
      %29 = vector.broadcast %cst_19 : f32 to vector<8x1xf32>
      %30 = arith.divf %28, %29 : vector<8x1xf32>
      %cst_20 = arith.constant 9.99999997E-7 : f32
      %31 = vector.broadcast %cst_20 : f32 to vector<8x1xf32>
      %32 = arith.addf %30, %31 : vector<8x1xf32>
      %33 = math.rsqrt %32 : vector<8x1xf32>
      %34 = vector.broadcast %33 : vector<8x1xf32> to vector<8x128xf32>
      %35 = arith.mulf %25, %34 : vector<8x128xf32>
      %c0_21 = arith.constant 0 : index
      %c0_22 = arith.constant 0 : index
      %36 = vector.load %arg2[%c0_21, %c0_22] : memref<1x128xf32, #tpu.memory_space<vmem>>, vector<1x128xf32>
      %37 = vector.broadcast %36 : vector<1x128xf32> to vector<8x128xf32>
      %38 = arith.mulf %35, %37 : vector<8x128xf32>
      %c0_23 = arith.constant 0 : index
      %c0_24 = arith.constant 0 : index
      %39 = vector.load %arg7[%c0_23, %c0_24] : memref<8x128xf32, #tpu.memory_space<vmem>>, vector<8x128xf32>
      tpu.vector_store %arg7[%c0_23, %c0_24], %38 {strides = array<i32>} : memref<8x128xf32, #tpu.memory_space<vmem>>, vector<8x128xf32>,
      %cst_25 = arith.constant 0.000000e+00 : f32
      %40 = vector.broadcast %cst_25 : f32 to vector<8x128xf32>
      %c0_26 = arith.constant 0 : index
      %c0_27 = arith.constant 0 : index
      %41 = vector.load %arg8[%c0_26, %c0_27] : memref<8x128xf32, #tpu.memory_space<vmem>>, vector<8x128xf32>
      tpu.vector_store %arg8[%c0_26, %c0_27], %40 {strides = array<i32>} : memref<8x128xf32, #tpu.memory_space<vmem>>, vector<8x128xf32>,
    } else {
    }
    %c0 = arith.constant 0 : index
    %c0_1 = arith.constant 0 : index
    %3 = vector.load %arg7[%c0, %c0_1] : memref<8x128xf32, #tpu.memory_space<vmem>>, vector<8x128xf32>
    %4 = arith.truncf %3 : vector<8x128xf32> to vector<8x128xbf16>
    %c0_2 = arith.constant 0 : index
    %c0_3 = arith.constant 0 : index
    %5 = vector.load %arg3[%c0_2, %c0_3] : memref<128x128xbf16, #tpu.memory_space<vmem>>, vector<128x128xbf16>
    %cst = arith.constant dense<0.000000e+00> : vector<8x128xf32>
    %6 = tpu.matmul %4, %5, %cst {dimension_numbers = #tpu.dot_dimension_numbers<[1], [0], [0], [1], [0, 0, 1, 1], [], []>} : vector<8x128xbf16>, vector<128x128xbf16>, vector<8x128xf32> -> vector<8x128xf32>
    %c0_4 = arith.constant 0 : index
    %c0_5 = arith.constant 0 : index
    %7 = vector.load %arg4[%c0_4, %c0_5] : memref<128x128xbf16, #tpu.memory_space<vmem>>, vector<128x128xbf16>
    %cst_6 = arith.constant dense<0.000000e+00> : vector<8x128xf32>
    %8 = tpu.matmul %4, %7, %cst_6 {dimension_numbers = #tpu.dot_dimension_numbers<[1], [0], [0], [1], [0, 0, 1, 1], [], []>} : vector<8x128xbf16>, vector<128x128xbf16>, vector<8x128xf32> -> vector<8x128xf32>
    %9 = arith.negf %6 : vector<8x128xf32>
    %10 = math.exp %9 : vector<8x128xf32>
    %cst_7 = arith.constant 1.000000e+00 : f32
    %11 = vector.broadcast %cst_7 : f32 to vector<8x128xf32>
    %12 = arith.addf %11, %10 : vector<8x128xf32>
    %13 = arith.divf %11, %12 : vector<8x128xf32>
    %14 = arith.mulf %6, %13 : vector<8x128xf32>
    %15 = arith.mulf %14, %8 : vector<8x128xf32>
    %c0_8 = arith.constant 0 : index
    %c0_9 = arith.constant 0 : index
    %16 = vector.load %arg8[%c0_8, %c0_9] : memref<8x128xf32, #tpu.memory_space<vmem>>, vector<8x128xf32>
    %17 = arith.truncf %15 : vector<8x128xf32> to vector<8x128xbf16>
    %c0_10 = arith.constant 0 : index
    %c0_11 = arith.constant 0 : index
    %18 = vector.load %arg5[%c0_10, %c0_11] : memref<128x128xbf16, #tpu.memory_space<vmem>>, vector<128x128xbf16>
    %cst_12 = arith.constant dense<0.000000e+00> : vector<8x128xf32>
    %19 = tpu.matmul %17, %18, %cst_12 {dimension_numbers = #tpu.dot_dimension_numbers<[1], [0], [0], [1], [0, 0, 1, 1], [], []>} : vector<8x128xbf16>, vector<128x128xbf16>, vector<8x128xf32> -> vector<8x128xf32>
    %20 = arith.addf %16, %19 : vector<8x128xf32>
    %c0_13 = arith.constant 0 : index
    %c0_14 = arith.constant 0 : index
    %21 = vector.load %arg8[%c0_13, %c0_14] : memref<8x128xf32, #tpu.memory_space<vmem>>, vector<8x128xf32>
    tpu.vector_store %arg8[%c0_13, %c0_14], %20 {strides = array<i32>} : memref<8x128xf32, #tpu.memory_space<vmem>>, vector<8x128xf32>,
    %c2_i32 = arith.constant 2 : i32
    %22 = arith.cmpi eq, %arg0, %c2_i32 : i32
    %23 = arith.extui %22 : i1 to i32
    %c0_i32_15 = arith.constant 0 : i32
    %24 = arith.cmpi ne, %23, %c0_i32_15 : i32
    scf.if %24 {
      %c0_16 = arith.constant 0 : index
      %c0_17 = arith.constant 0 : index
      %25 = vector.load %arg1[%c0_16, %c0_17] : memref<8x128xf32, #tpu.memory_space<vmem>>, vector<8x128xf32>
      %c0_18 = arith.constant 0 : index
      %c0_19 = arith.constant 0 : index
      %26 = vector.load %arg8[%c0_18, %c0_19] : memref<8x128xf32, #tpu.memory_space<vmem>>, vector<8x128xf32>
      %cst_20 = arith.constant 0.699999988 : f32
      %27 = vector.broadcast %cst_20 : f32 to vector<8x128xf32>
      %28 = arith.mulf %26, %27 : vector<8x128xf32>
      %29 = arith.addf %25, %28 : vector<8x128xf32>
      %c0_21 = arith.constant 0 : index
      %c0_22 = arith.constant 0 : index
      %30 = vector.load %arg6[%c0_21, %c0_22] : memref<8x128xf32, #tpu.memory_space<vmem>>, vector<8x128xf32>
      tpu.vector_store %arg6[%c0_21, %c0_22], %29 {strides = array<i32>} : memref<8x128xf32, #tpu.memory_space<vmem>>, vector<8x128xf32>,
    } else {
    }
    return
  }
  func.func @transform_0(%arg0: i32) -> (i32, i32) {
    %c0_i32 = arith.constant 0 : i32
    %c0_i32_0 = arith.constant 0 : i32
    %c0_i32_1 = arith.constant 0 : i32
    return %c0_i32, %c0_i32_0 : i32, i32
  }
  func.func @transform_1(%arg0: i32) -> (i32, i32) {
    %c0_i32 = arith.constant 0 : i32
    %c0_i32_0 = arith.constant 0 : i32
    %c0_i32_1 = arith.constant 0 : i32
    return %c0_i32, %c0_i32_0 : i32, i32
  }
  func.func @transform_2(%arg0: i32) -> (i32, i32) {
    %c0_i32 = arith.constant 0 : i32
    %c0_i32_0 = arith.constant 0 : i32
    return %c0_i32, %arg0 : i32, i32
  }
  func.func @transform_3(%arg0: i32) -> (i32, i32) {
    %c0_i32 = arith.constant 0 : i32
    %c0_i32_0 = arith.constant 0 : i32
    return %c0_i32, %arg0 : i32, i32
  }
  func.func @transform_4(%arg0: i32) -> (i32, i32) {
    %c0_i32 = arith.constant 0 : i32
    %c0_i32_0 = arith.constant 0 : i32
    return %arg0, %c0_i32 : i32, i32
  }
  func.func @transform_5(%arg0: i32) -> (i32, i32) {
    %c0_i32 = arith.constant 0 : i32
    %c0_i32_0 = arith.constant 0 : i32
    %c0_i32_1 = arith.constant 0 : i32
    return %c0_i32, %c0_i32_0 : i32, i32
  }
}

module attributes {stable_mosaic.version = 11 : i64} {
  func.func @_attn_block_kernel(%arg0: i32, %arg1: memref<8x128xf32, #tpu.memory_space<vmem>>, %arg2: memref<1x128xf32, #tpu.memory_space<vmem>>, %arg3: memref<1x128x128xbf16, #tpu.memory_space<vmem>>, %arg4: memref<1x128x64xbf16, #tpu.memory_space<vmem>>, %arg5: memref<1x128x64xbf16, #tpu.memory_space<vmem>>, %arg6: memref<1x128x128xbf16, #tpu.memory_space<vmem>>, %arg7: memref<8x32xf32, #tpu.memory_space<vmem>>, %arg8: memref<8x32xf32, #tpu.memory_space<vmem>>, %arg9: memref<8x128xf32, #tpu.memory_space<vmem>>, %arg10: memref<8x128xf32, #tpu.memory_space<vmem>>, %arg11: memref<8x128xf32, #tpu.memory_space<vmem>>) attributes {dimension_semantics = [#tpu.dimension_semantics<arbitrary>], iteration_bounds = array<i64: 1>, scalar_prefetch = 0 : i64, scratch_operands = 2 : i64, tpu.core_type = #tpu.core_type<tc>, window_params = [{pipeline_mode = #tpu.pipeline_mode<synchronous>, transform_indices = @transform_0, window_bounds = array<i64: 8, 128>}, {pipeline_mode = #tpu.pipeline_mode<synchronous>, transform_indices = @transform_1, window_bounds = array<i64: 1, 128>}, {transform_indices = @transform_2, window_bounds = array<i64: 1, 128, 128>}, {transform_indices = @transform_3, window_bounds = array<i64: 1, 128, 64>}, {transform_indices = @transform_4, window_bounds = array<i64: 1, 128, 64>}, {transform_indices = @transform_5, window_bounds = array<i64: 1, 128, 128>}, {pipeline_mode = #tpu.pipeline_mode<synchronous>, transform_indices = @transform_6, window_bounds = array<i64: 8, 32>}, {pipeline_mode = #tpu.pipeline_mode<synchronous>, transform_indices = @transform_7, window_bounds = array<i64: 8, 32>}, {pipeline_mode = #tpu.pipeline_mode<synchronous>, transform_indices = @transform_8, window_bounds = array<i64: 8, 128>}]} {
    %c0_i32 = arith.constant 0 : i32
    %0 = arith.cmpi eq, %arg0, %c0_i32 : i32
    %1 = arith.extui %0 : i1 to i32
    %c0_i32_0 = arith.constant 0 : i32
    %2 = arith.cmpi ne, %1, %c0_i32_0 : i32
    scf.if %2 {
      %c0_48 = arith.constant 0 : index
      %c0_49 = arith.constant 0 : index
      %144 = vector.load %arg1[%c0_48, %c0_49] : memref<8x128xf32, #tpu.memory_space<vmem>>, vector<8x128xf32>
      %145 = arith.mulf %144, %144 : vector<8x128xf32>
      %cst_50 = arith.constant dense<0.000000e+00> : vector<8xf32>
      %146 = vector.multi_reduction <add>, %145, %cst_50 [1] : vector<8x128xf32> to vector<8xf32>
      %147 = vector.shape_cast %146 : vector<8xf32> to vector<8x1xf32>
      %cst_51 = arith.constant 1.280000e+02 : f32
      %148 = vector.broadcast %cst_51 : f32 to vector<8x1xf32>
      %149 = arith.divf %147, %148 : vector<8x1xf32>
      %cst_52 = arith.constant 9.99999997E-7 : f32
      %150 = vector.broadcast %cst_52 : f32 to vector<8x1xf32>
      %151 = arith.addf %149, %150 : vector<8x1xf32>
      %152 = math.rsqrt %151 : vector<8x1xf32>
      %153 = vector.broadcast %152 : vector<8x1xf32> to vector<8x128xf32>
      %154 = arith.mulf %144, %153 : vector<8x128xf32>
      %c0_53 = arith.constant 0 : index
      %c0_54 = arith.constant 0 : index
      %155 = vector.load %arg2[%c0_53, %c0_54] : memref<1x128xf32, #tpu.memory_space<vmem>>, vector<1x128xf32>
      %156 = vector.broadcast %155 : vector<1x128xf32> to vector<8x128xf32>
      %157 = arith.mulf %154, %156 : vector<8x128xf32>
      %c0_55 = arith.constant 0 : index
      %c0_56 = arith.constant 0 : index
      %158 = vector.load %arg10[%c0_55, %c0_56] : memref<8x128xf32, #tpu.memory_space<vmem>>, vector<8x128xf32>
      tpu.vector_store %arg10[%c0_55, %c0_56], %157 {strides = array<i32>} : memref<8x128xf32, #tpu.memory_space<vmem>>, vector<8x128xf32>,
      %cst_57 = arith.constant 0.000000e+00 : f32
      %159 = vector.broadcast %cst_57 : f32 to vector<8x128xf32>
      %c0_58 = arith.constant 0 : index
      %c0_59 = arith.constant 0 : index
      %160 = vector.load %arg11[%c0_58, %c0_59] : memref<8x128xf32, #tpu.memory_space<vmem>>, vector<8x128xf32>
      tpu.vector_store %arg11[%c0_58, %c0_59], %159 {strides = array<i32>} : memref<8x128xf32, #tpu.memory_space<vmem>>, vector<8x128xf32>,
    } else {
    }
    %c0 = arith.constant 0 : index
    %c0_1 = arith.constant 0 : index
    %3 = vector.load %arg10[%c0, %c0_1] : memref<8x128xf32, #tpu.memory_space<vmem>>, vector<8x128xf32>
    %4 = arith.truncf %3 : vector<8x128xf32> to vector<8x128xbf16>
    %c0_2 = arith.constant 0 : index
    %c0_3 = arith.constant 0 : index
    %5 = vector.load %arg7[%c0_2, %c0_3] : memref<8x32xf32, #tpu.memory_space<vmem>>, vector<8x32xf32>
    %c0_4 = arith.constant 0 : index
    %c0_5 = arith.constant 0 : index
    %6 = vector.load %arg8[%c0_4, %c0_5] : memref<8x32xf32, #tpu.memory_space<vmem>>, vector<8x32xf32>
    %c0_6 = arith.constant 0 : index
    %c0_7 = arith.constant 0 : index
    %c0_8 = arith.constant 0 : index
    %7 = vector.load %arg3[%c0_6, %c0_7, %c0_8] : memref<1x128x128xbf16, #tpu.memory_space<vmem>>, vector<1x128x128xbf16>
    %8 = vector.shape_cast %7 : vector<1x128x128xbf16> to vector<128x128xbf16>
    %cst = arith.constant dense<0.000000e+00> : vector<8x128xf32>
    %9 = tpu.matmul %4, %8, %cst {dimension_numbers = #tpu.dot_dimension_numbers<[1], [0], [0], [1], [0, 0, 1, 1], [], []>} : vector<8x128xbf16>, vector<128x128xbf16>, vector<8x128xf32> -> vector<8x128xf32>
    %cst_9 = arith.constant 0.176776692 : f32
    %10 = vector.broadcast %cst_9 : f32 to vector<8x128xf32>
    %11 = arith.mulf %9, %10 : vector<8x128xf32>
    %c0_10 = arith.constant 0 : index
    %c0_11 = arith.constant 0 : index
    %c0_12 = arith.constant 0 : index
    %12 = vector.load %arg4[%c0_10, %c0_11, %c0_12] : memref<1x128x64xbf16, #tpu.memory_space<vmem>>, vector<1x128x64xbf16>
    %13 = vector.shape_cast %12 : vector<1x128x64xbf16> to vector<128x64xbf16>
    %cst_13 = arith.constant dense<0.000000e+00> : vector<8x64xf32>
    %14 = tpu.matmul %4, %13, %cst_13 {dimension_numbers = #tpu.dot_dimension_numbers<[1], [0], [0], [1], [0, 0, 1, 1], [], []>} : vector<8x128xbf16>, vector<128x64xbf16>, vector<8x64xf32> -> vector<8x64xf32>
    %c0_14 = arith.constant 0 : index
    %c0_15 = arith.constant 0 : index
    %c0_16 = arith.constant 0 : index
    %15 = vector.load %arg5[%c0_14, %c0_15, %c0_16] : memref<1x128x64xbf16, #tpu.memory_space<vmem>>, vector<1x128x64xbf16>
    %16 = vector.shape_cast %15 : vector<1x128x64xbf16> to vector<128x64xbf16>
    %cst_17 = arith.constant dense<0.000000e+00> : vector<8x64xf32>
    %17 = tpu.matmul %4, %16, %cst_17 {dimension_numbers = #tpu.dot_dimension_numbers<[1], [0], [0], [1], [0, 0, 1, 1], [], []>} : vector<8x128xbf16>, vector<128x64xbf16>, vector<8x64xf32> -> vector<8x64xf32>
    %18 = tpu.iota {dimensions = array<i32: 0>} : vector<8x8xi32>
    %19 = tpu.iota {dimensions = array<i32: 1>} : vector<8x8xi32>
    %20 = arith.cmpi sle, %19, %18 : vector<8x8xi32>
    %21 = vector.extract_strided_slice %14 {offsets = [0, 0], sizes = [8, 32], strides = [1, 1]} : vector<8x64xf32> to vector<8x32xf32>
    %22 = vector.extract_strided_slice %21 {offsets = [0, 16], sizes = [8, 16], strides = [1, 1]} : vector<8x32xf32> to vector<8x16xf32>
    %23 = vector.extract_strided_slice %21 {offsets = [0, 0], sizes = [8, 16], strides = [1, 1]} : vector<8x32xf32> to vector<8x16xf32>
    %24 = tpu.concatenate %22, %23 in 1 : vector<8x16xf32>, vector<8x16xf32> -> vector<8x32xf32>
    %25 = arith.mulf %21, %5 : vector<8x32xf32>
    %26 = arith.mulf %24, %6 : vector<8x32xf32>
    %27 = arith.addf %25, %26 : vector<8x32xf32>
    %28 = arith.truncf %27 : vector<8x32xf32> to vector<8x32xbf16>
    %29 = vector.extract_strided_slice %17 {offsets = [0, 0], sizes = [8, 32], strides = [1, 1]} : vector<8x64xf32> to vector<8x32xf32>
    %30 = arith.truncf %29 : vector<8x32xf32> to vector<8x32xbf16>
    %31 = vector.extract_strided_slice %11 {offsets = [0, 0], sizes = [8, 32], strides = [1, 1]} : vector<8x128xf32> to vector<8x32xf32>
    %32 = vector.extract_strided_slice %31 {offsets = [0, 16], sizes = [8, 16], strides = [1, 1]} : vector<8x32xf32> to vector<8x16xf32>
    %33 = vector.extract_strided_slice %31 {offsets = [0, 0], sizes = [8, 16], strides = [1, 1]} : vector<8x32xf32> to vector<8x16xf32>
    %34 = tpu.concatenate %32, %33 in 1 : vector<8x16xf32>, vector<8x16xf32> -> vector<8x32xf32>
    %35 = arith.mulf %31, %5 : vector<8x32xf32>
    %36 = arith.mulf %34, %6 : vector<8x32xf32>
    %37 = arith.addf %35, %36 : vector<8x32xf32>
    %38 = arith.truncf %37 : vector<8x32xf32> to vector<8x32xbf16>
    %cst_18 = arith.constant dense<0.000000e+00> : vector<8x8xf32>
    %39 = tpu.matmul %38, %28, %cst_18 {dimension_numbers = #tpu.dot_dimension_numbers<[1], [1], [0], [0], [0, 0, 1, 0], [], []>} : vector<8x32xbf16>, vector<8x32xbf16>, vector<8x8xf32> -> vector<8x8xf32>
    %cst_19 = arith.constant -1.000000e+30 : f32
    %40 = vector.broadcast %cst_19 : f32 to vector<8x8xf32>
    %41 = arith.select %20, %39, %40 : vector<8x8xi1>, vector<8x8xf32>
    %cst_20 = arith.constant dense<0xFF800000> : vector<8xf32>
    %42 = vector.multi_reduction <maximumf>, %41, %cst_20 [1] : vector<8x8xf32> to vector<8xf32>
    %43 = vector.shape_cast %42 : vector<8xf32> to vector<8x1xf32>
    %44 = vector.broadcast %43 : vector<8x1xf32> to vector<8x8xf32>
    %45 = arith.subf %41, %44 : vector<8x8xf32>
    %46 = math.exp %45 : vector<8x8xf32>
    %cst_21 = arith.constant dense<0.000000e+00> : vector<8xf32>
    %47 = vector.multi_reduction <add>, %46, %cst_21 [1] : vector<8x8xf32> to vector<8xf32>
    %48 = vector.shape_cast %47 : vector<8xf32> to vector<8x1xf32>
    %49 = tpu.reciprocal %48 {approx = true} : vector<8x1xf32> -> vector<8x1xf32>
    %50 = vector.broadcast %49 : vector<8x1xf32> to vector<8x8xf32>
    %51 = arith.mulf %46, %50 : vector<8x8xf32>
    %52 = arith.truncf %51 : vector<8x8xf32> to vector<8x8xbf16>
    %cst_22 = arith.constant dense<0.000000e+00> : vector<8x32xf32>
    %53 = tpu.matmul %52, %30, %cst_22 {dimension_numbers = #tpu.dot_dimension_numbers<[1], [0], [0], [1], [0, 0, 1, 1], [], []>} : vector<8x8xbf16>, vector<8x32xbf16>, vector<8x32xf32> -> vector<8x32xf32>
    %54 = vector.extract_strided_slice %11 {offsets = [0, 32], sizes = [8, 32], strides = [1, 1]} : vector<8x128xf32> to vector<8x32xf32>
    %55 = vector.extract_strided_slice %54 {offsets = [0, 16], sizes = [8, 16], strides = [1, 1]} : vector<8x32xf32> to vector<8x16xf32>
    %56 = vector.extract_strided_slice %54 {offsets = [0, 0], sizes = [8, 16], strides = [1, 1]} : vector<8x32xf32> to vector<8x16xf32>
    %57 = tpu.concatenate %55, %56 in 1 : vector<8x16xf32>, vector<8x16xf32> -> vector<8x32xf32>
    %58 = arith.mulf %54, %5 : vector<8x32xf32>
    %59 = arith.mulf %57, %6 : vector<8x32xf32>
    %60 = arith.addf %58, %59 : vector<8x32xf32>
    %61 = arith.truncf %60 : vector<8x32xf32> to vector<8x32xbf16>
    %cst_23 = arith.constant dense<0.000000e+00> : vector<8x8xf32>
    %62 = tpu.matmul %61, %28, %cst_23 {dimension_numbers = #tpu.dot_dimension_numbers<[1], [1], [0], [0], [0, 0, 1, 0], [], []>} : vector<8x32xbf16>, vector<8x32xbf16>, vector<8x8xf32> -> vector<8x8xf32>
    %cst_24 = arith.constant -1.000000e+30 : f32
    %63 = vector.broadcast %cst_24 : f32 to vector<8x8xf32>
    %64 = arith.select %20, %62, %63 : vector<8x8xi1>, vector<8x8xf32>
    %cst_25 = arith.constant dense<0xFF800000> : vector<8xf32>
    %65 = vector.multi_reduction <maximumf>, %64, %cst_25 [1] : vector<8x8xf32> to vector<8xf32>
    %66 = vector.shape_cast %65 : vector<8xf32> to vector<8x1xf32>
    %67 = vector.broadcast %66 : vector<8x1xf32> to vector<8x8xf32>
    %68 = arith.subf %64, %67 : vector<8x8xf32>
    %69 = math.exp %68 : vector<8x8xf32>
    %cst_26 = arith.constant dense<0.000000e+00> : vector<8xf32>
    %70 = vector.multi_reduction <add>, %69, %cst_26 [1] : vector<8x8xf32> to vector<8xf32>
    %71 = vector.shape_cast %70 : vector<8xf32> to vector<8x1xf32>
    %72 = tpu.reciprocal %71 {approx = true} : vector<8x1xf32> -> vector<8x1xf32>
    %73 = vector.broadcast %72 : vector<8x1xf32> to vector<8x8xf32>
    %74 = arith.mulf %69, %73 : vector<8x8xf32>
    %75 = arith.truncf %74 : vector<8x8xf32> to vector<8x8xbf16>
    %cst_27 = arith.constant dense<0.000000e+00> : vector<8x32xf32>
    %76 = tpu.matmul %75, %30, %cst_27 {dimension_numbers = #tpu.dot_dimension_numbers<[1], [0], [0], [1], [0, 0, 1, 1], [], []>} : vector<8x8xbf16>, vector<8x32xbf16>, vector<8x32xf32> -> vector<8x32xf32>
    %77 = vector.extract_strided_slice %14 {offsets = [0, 32], sizes = [8, 32], strides = [1, 1]} : vector<8x64xf32> to vector<8x32xf32>
    %78 = vector.extract_strided_slice %77 {offsets = [0, 16], sizes = [8, 16], strides = [1, 1]} : vector<8x32xf32> to vector<8x16xf32>
    %79 = vector.extract_strided_slice %77 {offsets = [0, 0], sizes = [8, 16], strides = [1, 1]} : vector<8x32xf32> to vector<8x16xf32>
    %80 = tpu.concatenate %78, %79 in 1 : vector<8x16xf32>, vector<8x16xf32> -> vector<8x32xf32>
    %81 = arith.mulf %77, %5 : vector<8x32xf32>
    %82 = arith.mulf %80, %6 : vector<8x32xf32>
    %83 = arith.addf %81, %82 : vector<8x32xf32>
    %84 = arith.truncf %83 : vector<8x32xf32> to vector<8x32xbf16>
    %85 = vector.extract_strided_slice %17 {offsets = [0, 32], sizes = [8, 32], strides = [1, 1]} : vector<8x64xf32> to vector<8x32xf32>
    %86 = arith.truncf %85 : vector<8x32xf32> to vector<8x32xbf16>
    %87 = vector.extract_strided_slice %11 {offsets = [0, 64], sizes = [8, 32], strides = [1, 1]} : vector<8x128xf32> to vector<8x32xf32>
    %88 = vector.extract_strided_slice %87 {offsets = [0, 16], sizes = [8, 16], strides = [1, 1]} : vector<8x32xf32> to vector<8x16xf32>
    %89 = vector.extract_strided_slice %87 {offsets = [0, 0], sizes = [8, 16], strides = [1, 1]} : vector<8x32xf32> to vector<8x16xf32>
    %90 = tpu.concatenate %88, %89 in 1 : vector<8x16xf32>, vector<8x16xf32> -> vector<8x32xf32>
    %91 = arith.mulf %87, %5 : vector<8x32xf32>
    %92 = arith.mulf %90, %6 : vector<8x32xf32>
    %93 = arith.addf %91, %92 : vector<8x32xf32>
    %94 = arith.truncf %93 : vector<8x32xf32> to vector<8x32xbf16>
    %cst_28 = arith.constant dense<0.000000e+00> : vector<8x8xf32>
    %95 = tpu.matmul %94, %84, %cst_28 {dimension_numbers = #tpu.dot_dimension_numbers<[1], [1], [0], [0], [0, 0, 1, 0], [], []>} : vector<8x32xbf16>, vector<8x32xbf16>, vector<8x8xf32> -> vector<8x8xf32>
    %cst_29 = arith.constant -1.000000e+30 : f32
    %96 = vector.broadcast %cst_29 : f32 to vector<8x8xf32>
    %97 = arith.select %20, %95, %96 : vector<8x8xi1>, vector<8x8xf32>
    %cst_30 = arith.constant dense<0xFF800000> : vector<8xf32>
    %98 = vector.multi_reduction <maximumf>, %97, %cst_30 [1] : vector<8x8xf32> to vector<8xf32>
    %99 = vector.shape_cast %98 : vector<8xf32> to vector<8x1xf32>
    %100 = vector.broadcast %99 : vector<8x1xf32> to vector<8x8xf32>
    %101 = arith.subf %97, %100 : vector<8x8xf32>
    %102 = math.exp %101 : vector<8x8xf32>
    %cst_31 = arith.constant dense<0.000000e+00> : vector<8xf32>
    %103 = vector.multi_reduction <add>, %102, %cst_31 [1] : vector<8x8xf32> to vector<8xf32>
    %104 = vector.shape_cast %103 : vector<8xf32> to vector<8x1xf32>
    %105 = tpu.reciprocal %104 {approx = true} : vector<8x1xf32> -> vector<8x1xf32>
    %106 = vector.broadcast %105 : vector<8x1xf32> to vector<8x8xf32>
    %107 = arith.mulf %102, %106 : vector<8x8xf32>
    %108 = arith.truncf %107 : vector<8x8xf32> to vector<8x8xbf16>
    %cst_32 = arith.constant dense<0.000000e+00> : vector<8x32xf32>
    %109 = tpu.matmul %108, %86, %cst_32 {dimension_numbers = #tpu.dot_dimension_numbers<[1], [0], [0], [1], [0, 0, 1, 1], [], []>} : vector<8x8xbf16>, vector<8x32xbf16>, vector<8x32xf32> -> vector<8x32xf32>
    %110 = vector.extract_strided_slice %11 {offsets = [0, 96], sizes = [8, 32], strides = [1, 1]} : vector<8x128xf32> to vector<8x32xf32>
    %111 = vector.extract_strided_slice %110 {offsets = [0, 16], sizes = [8, 16], strides = [1, 1]} : vector<8x32xf32> to vector<8x16xf32>
    %112 = vector.extract_strided_slice %110 {offsets = [0, 0], sizes = [8, 16], strides = [1, 1]} : vector<8x32xf32> to vector<8x16xf32>
    %113 = tpu.concatenate %111, %112 in 1 : vector<8x16xf32>, vector<8x16xf32> -> vector<8x32xf32>
    %114 = arith.mulf %110, %5 : vector<8x32xf32>
    %115 = arith.mulf %113, %6 : vector<8x32xf32>
    %116 = arith.addf %114, %115 : vector<8x32xf32>
    %117 = arith.truncf %116 : vector<8x32xf32> to vector<8x32xbf16>
    %cst_33 = arith.constant dense<0.000000e+00> : vector<8x8xf32>
    %118 = tpu.matmul %117, %84, %cst_33 {dimension_numbers = #tpu.dot_dimension_numbers<[1], [1], [0], [0], [0, 0, 1, 0], [], []>} : vector<8x32xbf16>, vector<8x32xbf16>, vector<8x8xf32> -> vector<8x8xf32>
    %cst_34 = arith.constant -1.000000e+30 : f32
    %119 = vector.broadcast %cst_34 : f32 to vector<8x8xf32>
    %120 = arith.select %20, %118, %119 : vector<8x8xi1>, vector<8x8xf32>
    %cst_35 = arith.constant dense<0xFF800000> : vector<8xf32>
    %121 = vector.multi_reduction <maximumf>, %120, %cst_35 [1] : vector<8x8xf32> to vector<8xf32>
    %122 = vector.shape_cast %121 : vector<8xf32> to vector<8x1xf32>
    %123 = vector.broadcast %122 : vector<8x1xf32> to vector<8x8xf32>
    %124 = arith.subf %120, %123 : vector<8x8xf32>
    %125 = math.exp %124 : vector<8x8xf32>
    %cst_36 = arith.constant dense<0.000000e+00> : vector<8xf32>
    %126 = vector.multi_reduction <add>, %125, %cst_36 [1] : vector<8x8xf32> to vector<8xf32>
    %127 = vector.shape_cast %126 : vector<8xf32> to vector<8x1xf32>
    %128 = tpu.reciprocal %127 {approx = true} : vector<8x1xf32> -> vector<8x1xf32>
    %129 = vector.broadcast %128 : vector<8x1xf32> to vector<8x8xf32>
    %130 = arith.mulf %125, %129 : vector<8x8xf32>
    %131 = arith.truncf %130 : vector<8x8xf32> to vector<8x8xbf16>
    %cst_37 = arith.constant dense<0.000000e+00> : vector<8x32xf32>
    %132 = tpu.matmul %131, %86, %cst_37 {dimension_numbers = #tpu.dot_dimension_numbers<[1], [0], [0], [1], [0, 0, 1, 1], [], []>} : vector<8x8xbf16>, vector<8x32xbf16>, vector<8x32xf32> -> vector<8x32xf32>
    %133 = tpu.concatenate %53, %76, %109, %132 in 1 : vector<8x32xf32>, vector<8x32xf32>, vector<8x32xf32>, vector<8x32xf32> -> vector<8x128xf32>
    %134 = arith.truncf %133 : vector<8x128xf32> to vector<8x128xbf16>
    %c0_38 = arith.constant 0 : index
    %c0_39 = arith.constant 0 : index
    %135 = vector.load %arg11[%c0_38, %c0_39] : memref<8x128xf32, #tpu.memory_space<vmem>>, vector<8x128xf32>
    %c0_40 = arith.constant 0 : index
    %c0_41 = arith.constant 0 : index
    %c0_42 = arith.constant 0 : index
    %136 = vector.load %arg6[%c0_40, %c0_41, %c0_42] : memref<1x128x128xbf16, #tpu.memory_space<vmem>>, vector<1x128x128xbf16>
    %137 = vector.shape_cast %136 : vector<1x128x128xbf16> to vector<128x128xbf16>
    %cst_43 = arith.constant dense<0.000000e+00> : vector<8x128xf32>
    %138 = tpu.matmul %134, %137, %cst_43 {dimension_numbers = #tpu.dot_dimension_numbers<[1], [0], [0], [1], [0, 0, 1, 1], [], []>} : vector<8x128xbf16>, vector<128x128xbf16>, vector<8x128xf32> -> vector<8x128xf32>
    %139 = arith.addf %135, %138 : vector<8x128xf32>
    %c0_44 = arith.constant 0 : index
    %c0_45 = arith.constant 0 : index
    %140 = vector.load %arg11[%c0_44, %c0_45] : memref<8x128xf32, #tpu.memory_space<vmem>>, vector<8x128xf32>
    tpu.vector_store %arg11[%c0_44, %c0_45], %139 {strides = array<i32>} : memref<8x128xf32, #tpu.memory_space<vmem>>, vector<8x128xf32>,
    %c0_i32_46 = arith.constant 0 : i32
    %141 = arith.cmpi eq, %arg0, %c0_i32_46 : i32
    %142 = arith.extui %141 : i1 to i32
    %c0_i32_47 = arith.constant 0 : i32
    %143 = arith.cmpi ne, %142, %c0_i32_47 : i32
    scf.if %143 {
      %c0_48 = arith.constant 0 : index
      %c0_49 = arith.constant 0 : index
      %144 = vector.load %arg1[%c0_48, %c0_49] : memref<8x128xf32, #tpu.memory_space<vmem>>, vector<8x128xf32>
      %c0_50 = arith.constant 0 : index
      %c0_51 = arith.constant 0 : index
      %145 = vector.load %arg11[%c0_50, %c0_51] : memref<8x128xf32, #tpu.memory_space<vmem>>, vector<8x128xf32>
      %cst_52 = arith.constant 0.699999988 : f32
      %146 = vector.broadcast %cst_52 : f32 to vector<8x128xf32>
      %147 = arith.mulf %145, %146 : vector<8x128xf32>
      %148 = arith.addf %144, %147 : vector<8x128xf32>
      %c0_53 = arith.constant 0 : index
      %c0_54 = arith.constant 0 : index
      %149 = vector.load %arg9[%c0_53, %c0_54] : memref<8x128xf32, #tpu.memory_space<vmem>>, vector<8x128xf32>
      tpu.vector_store %arg9[%c0_53, %c0_54], %148 {strides = array<i32>} : memref<8x128xf32, #tpu.memory_space<vmem>>, vector<8x128xf32>,
    } else {
    }
    return
  }
  func.func @transform_0(%arg0: i32) -> (i32, i32) {
    %c0_i32 = arith.constant 0 : i32
    %c0_i32_0 = arith.constant 0 : i32
    %c0_i32_1 = arith.constant 0 : i32
    return %c0_i32, %c0_i32_0 : i32, i32
  }
  func.func @transform_1(%arg0: i32) -> (i32, i32) {
    %c0_i32 = arith.constant 0 : i32
    %c0_i32_0 = arith.constant 0 : i32
    %c0_i32_1 = arith.constant 0 : i32
    return %c0_i32, %c0_i32_0 : i32, i32
  }
  func.func @transform_2(%arg0: i32) -> (i32, i32, i32) {
    %c0_i32 = arith.constant 0 : i32
    %c0_i32_0 = arith.constant 0 : i32
    %c0_i32_1 = arith.constant 0 : i32
    return %arg0, %c0_i32, %c0_i32_0 : i32, i32, i32
  }
  func.func @transform_3(%arg0: i32) -> (i32, i32, i32) {
    %c0_i32 = arith.constant 0 : i32
    %c0_i32_0 = arith.constant 0 : i32
    %c0_i32_1 = arith.constant 0 : i32
    return %arg0, %c0_i32, %c0_i32_0 : i32, i32, i32
  }
  func.func @transform_4(%arg0: i32) -> (i32, i32, i32) {
    %c0_i32 = arith.constant 0 : i32
    %c0_i32_0 = arith.constant 0 : i32
    %c0_i32_1 = arith.constant 0 : i32
    return %arg0, %c0_i32, %c0_i32_0 : i32, i32, i32
  }
  func.func @transform_5(%arg0: i32) -> (i32, i32, i32) {
    %c0_i32 = arith.constant 0 : i32
    %c0_i32_0 = arith.constant 0 : i32
    %c0_i32_1 = arith.constant 0 : i32
    return %arg0, %c0_i32, %c0_i32_0 : i32, i32, i32
  }
  func.func @transform_6(%arg0: i32) -> (i32, i32) {
    %c0_i32 = arith.constant 0 : i32
    %c0_i32_0 = arith.constant 0 : i32
    %c0_i32_1 = arith.constant 0 : i32
    return %c0_i32, %c0_i32_0 : i32, i32
  }
  func.func @transform_7(%arg0: i32) -> (i32, i32) {
    %c0_i32 = arith.constant 0 : i32
    %c0_i32_0 = arith.constant 0 : i32
    %c0_i32_1 = arith.constant 0 : i32
    return %c0_i32, %c0_i32_0 : i32, i32
  }
  func.func @transform_8(%arg0: i32) -> (i32, i32) {
    %c0_i32 = arith.constant 0 : i32
    %c0_i32_0 = arith.constant 0 : i32
    %c0_i32_1 = arith.constant 0 : i32
    return %c0_i32, %c0_i32_0 : i32, i32
  }
}

module attributes {stable_mosaic.version = 11 : i64} {
  func.func @_attn_block_kernel(%arg0: i32, %arg1: memref<8x128xf32, #tpu.memory_space<vmem>>, %arg2: memref<1x128xf32, #tpu.memory_space<vmem>>, %arg3: memref<1x128x128xbf16, #tpu.memory_space<vmem>>, %arg4: memref<1x128x64xbf16, #tpu.memory_space<vmem>>, %arg5: memref<1x128x64xbf16, #tpu.memory_space<vmem>>, %arg6: memref<1x128x128xbf16, #tpu.memory_space<vmem>>, %arg7: memref<8x32xf32, #tpu.memory_space<vmem>>, %arg8: memref<8x32xf32, #tpu.memory_space<vmem>>, %arg9: memref<8x128xf32, #tpu.memory_space<vmem>>, %arg10: memref<8x128xf32, #tpu.memory_space<vmem>>, %arg11: memref<8x128xf32, #tpu.memory_space<vmem>>) attributes {dimension_semantics = [#tpu.dimension_semantics<arbitrary>], iteration_bounds = array<i64: 1>, scalar_prefetch = 0 : i64, scratch_operands = 2 : i64, tpu.core_type = #tpu.core_type<tc>, window_params = [{pipeline_mode = #tpu.pipeline_mode<synchronous>, transform_indices = @transform_0, window_bounds = array<i64: 8, 128>}, {pipeline_mode = #tpu.pipeline_mode<synchronous>, transform_indices = @transform_1, window_bounds = array<i64: 1, 128>}, {transform_indices = @transform_2, window_bounds = array<i64: 1, 128, 128>}, {transform_indices = @transform_3, window_bounds = array<i64: 1, 128, 64>}, {transform_indices = @transform_4, window_bounds = array<i64: 1, 128, 64>}, {transform_indices = @transform_5, window_bounds = array<i64: 1, 128, 128>}, {pipeline_mode = #tpu.pipeline_mode<synchronous>, transform_indices = @transform_6, window_bounds = array<i64: 8, 32>}, {pipeline_mode = #tpu.pipeline_mode<synchronous>, transform_indices = @transform_7, window_bounds = array<i64: 8, 32>}, {pipeline_mode = #tpu.pipeline_mode<synchronous>, transform_indices = @transform_8, window_bounds = array<i64: 8, 128>}]} {
    %c0_i32 = arith.constant 0 : i32
    %0 = arith.cmpi eq, %arg0, %c0_i32 : i32
    %1 = arith.extui %0 : i1 to i32
    %c0_i32_0 = arith.constant 0 : i32
    %2 = arith.cmpi ne, %1, %c0_i32_0 : i32
    scf.if %2 {
      %c0_48 = arith.constant 0 : index
      %c0_49 = arith.constant 0 : index
      %144 = vector.load %arg1[%c0_48, %c0_49] : memref<8x128xf32, #tpu.memory_space<vmem>>, vector<8x128xf32>
      %145 = arith.mulf %144, %144 : vector<8x128xf32>
      %cst_50 = arith.constant dense<0.000000e+00> : vector<8xf32>
      %146 = vector.multi_reduction <add>, %145, %cst_50 [1] : vector<8x128xf32> to vector<8xf32>
      %147 = vector.shape_cast %146 : vector<8xf32> to vector<8x1xf32>
      %cst_51 = arith.constant 1.280000e+02 : f32
      %148 = vector.broadcast %cst_51 : f32 to vector<8x1xf32>
      %149 = arith.divf %147, %148 : vector<8x1xf32>
      %cst_52 = arith.constant 9.99999997E-7 : f32
      %150 = vector.broadcast %cst_52 : f32 to vector<8x1xf32>
      %151 = arith.addf %149, %150 : vector<8x1xf32>
      %152 = math.rsqrt %151 : vector<8x1xf32>
      %153 = vector.broadcast %152 : vector<8x1xf32> to vector<8x128xf32>
      %154 = arith.mulf %144, %153 : vector<8x128xf32>
      %c0_53 = arith.constant 0 : index
      %c0_54 = arith.constant 0 : index
      %155 = vector.load %arg2[%c0_53, %c0_54] : memref<1x128xf32, #tpu.memory_space<vmem>>, vector<1x128xf32>
      %156 = vector.broadcast %155 : vector<1x128xf32> to vector<8x128xf32>
      %157 = arith.mulf %154, %156 : vector<8x128xf32>
      %c0_55 = arith.constant 0 : index
      %c0_56 = arith.constant 0 : index
      %158 = vector.load %arg10[%c0_55, %c0_56] : memref<8x128xf32, #tpu.memory_space<vmem>>, vector<8x128xf32>
      tpu.vector_store %arg10[%c0_55, %c0_56], %157 {strides = array<i32>} : memref<8x128xf32, #tpu.memory_space<vmem>>, vector<8x128xf32>,
      %cst_57 = arith.constant 0.000000e+00 : f32
      %159 = vector.broadcast %cst_57 : f32 to vector<8x128xf32>
      %c0_58 = arith.constant 0 : index
      %c0_59 = arith.constant 0 : index
      %160 = vector.load %arg11[%c0_58, %c0_59] : memref<8x128xf32, #tpu.memory_space<vmem>>, vector<8x128xf32>
      tpu.vector_store %arg11[%c0_58, %c0_59], %159 {strides = array<i32>} : memref<8x128xf32, #tpu.memory_space<vmem>>, vector<8x128xf32>,
    } else {
    }
    %c0 = arith.constant 0 : index
    %c0_1 = arith.constant 0 : index
    %3 = vector.load %arg10[%c0, %c0_1] : memref<8x128xf32, #tpu.memory_space<vmem>>, vector<8x128xf32>
    %4 = arith.truncf %3 : vector<8x128xf32> to vector<8x128xbf16>
    %c0_2 = arith.constant 0 : index
    %c0_3 = arith.constant 0 : index
    %5 = vector.load %arg7[%c0_2, %c0_3] : memref<8x32xf32, #tpu.memory_space<vmem>>, vector<8x32xf32>
    %c0_4 = arith.constant 0 : index
    %c0_5 = arith.constant 0 : index
    %6 = vector.load %arg8[%c0_4, %c0_5] : memref<8x32xf32, #tpu.memory_space<vmem>>, vector<8x32xf32>
    %c0_6 = arith.constant 0 : index
    %c0_7 = arith.constant 0 : index
    %c0_8 = arith.constant 0 : index
    %7 = vector.load %arg3[%c0_6, %c0_7, %c0_8] : memref<1x128x128xbf16, #tpu.memory_space<vmem>>, vector<1x128x128xbf16>
    %8 = vector.shape_cast %7 : vector<1x128x128xbf16> to vector<128x128xbf16>
    %cst = arith.constant dense<0.000000e+00> : vector<8x128xf32>
    %9 = tpu.matmul %4, %8, %cst {dimension_numbers = #tpu.dot_dimension_numbers<[1], [0], [0], [1], [0, 0, 1, 1], [], []>} : vector<8x128xbf16>, vector<128x128xbf16>, vector<8x128xf32> -> vector<8x128xf32>
    %cst_9 = arith.constant 0.176776692 : f32
    %10 = vector.broadcast %cst_9 : f32 to vector<8x128xf32>
    %11 = arith.mulf %9, %10 : vector<8x128xf32>
    %c0_10 = arith.constant 0 : index
    %c0_11 = arith.constant 0 : index
    %c0_12 = arith.constant 0 : index
    %12 = vector.load %arg4[%c0_10, %c0_11, %c0_12] : memref<1x128x64xbf16, #tpu.memory_space<vmem>>, vector<1x128x64xbf16>
    %13 = vector.shape_cast %12 : vector<1x128x64xbf16> to vector<128x64xbf16>
    %cst_13 = arith.constant dense<0.000000e+00> : vector<8x64xf32>
    %14 = tpu.matmul %4, %13, %cst_13 {dimension_numbers = #tpu.dot_dimension_numbers<[1], [0], [0], [1], [0, 0, 1, 1], [], []>} : vector<8x128xbf16>, vector<128x64xbf16>, vector<8x64xf32> -> vector<8x64xf32>
    %c0_14 = arith.constant 0 : index
    %c0_15 = arith.constant 0 : index
    %c0_16 = arith.constant 0 : index
    %15 = vector.load %arg5[%c0_14, %c0_15, %c0_16] : memref<1x128x64xbf16, #tpu.memory_space<vmem>>, vector<1x128x64xbf16>
    %16 = vector.shape_cast %15 : vector<1x128x64xbf16> to vector<128x64xbf16>
    %cst_17 = arith.constant dense<0.000000e+00> : vector<8x64xf32>
    %17 = tpu.matmul %4, %16, %cst_17 {dimension_numbers = #tpu.dot_dimension_numbers<[1], [0], [0], [1], [0, 0, 1, 1], [], []>} : vector<8x128xbf16>, vector<128x64xbf16>, vector<8x64xf32> -> vector<8x64xf32>
    %18 = tpu.iota {dimensions = array<i32: 0>} : vector<8x8xi32>
    %19 = tpu.iota {dimensions = array<i32: 1>} : vector<8x8xi32>
    %20 = arith.cmpi sle, %19, %18 : vector<8x8xi32>
    %21 = vector.extract_strided_slice %14 {offsets = [0, 0], sizes = [8, 32], strides = [1, 1]} : vector<8x64xf32> to vector<8x32xf32>
    %22 = vector.extract_strided_slice %21 {offsets = [0, 16], sizes = [8, 16], strides = [1, 1]} : vector<8x32xf32> to vector<8x16xf32>
    %23 = vector.extract_strided_slice %21 {offsets = [0, 0], sizes = [8, 16], strides = [1, 1]} : vector<8x32xf32> to vector<8x16xf32>
    %24 = tpu.concatenate %22, %23 in 1 : vector<8x16xf32>, vector<8x16xf32> -> vector<8x32xf32>
    %25 = arith.mulf %21, %5 : vector<8x32xf32>
    %26 = arith.mulf %24, %6 : vector<8x32xf32>
    %27 = arith.addf %25, %26 : vector<8x32xf32>
    %28 = arith.truncf %27 : vector<8x32xf32> to vector<8x32xbf16>
    %29 = vector.extract_strided_slice %17 {offsets = [0, 0], sizes = [8, 32], strides = [1, 1]} : vector<8x64xf32> to vector<8x32xf32>
    %30 = arith.truncf %29 : vector<8x32xf32> to vector<8x32xbf16>
    %31 = vector.extract_strided_slice %11 {offsets = [0, 0], sizes = [8, 32], strides = [1, 1]} : vector<8x128xf32> to vector<8x32xf32>
    %32 = vector.extract_strided_slice %31 {offsets = [0, 16], sizes = [8, 16], strides = [1, 1]} : vector<8x32xf32> to vector<8x16xf32>
    %33 = vector.extract_strided_slice %31 {offsets = [0, 0], sizes = [8, 16], strides = [1, 1]} : vector<8x32xf32> to vector<8x16xf32>
    %34 = tpu.concatenate %32, %33 in 1 : vector<8x16xf32>, vector<8x16xf32> -> vector<8x32xf32>
    %35 = arith.mulf %31, %5 : vector<8x32xf32>
    %36 = arith.mulf %34, %6 : vector<8x32xf32>
    %37 = arith.addf %35, %36 : vector<8x32xf32>
    %38 = arith.truncf %37 : vector<8x32xf32> to vector<8x32xbf16>
    %cst_18 = arith.constant dense<0.000000e+00> : vector<8x8xf32>
    %39 = tpu.matmul %38, %28, %cst_18 {dimension_numbers = #tpu.dot_dimension_numbers<[1], [1], [0], [0], [0, 0, 1, 0], [], []>} : vector<8x32xbf16>, vector<8x32xbf16>, vector<8x8xf32> -> vector<8x8xf32>
    %cst_19 = arith.constant -1.000000e+30 : f32
    %40 = vector.broadcast %cst_19 : f32 to vector<8x8xf32>
    %41 = arith.select %20, %39, %40 : vector<8x8xi1>, vector<8x8xf32>
    %cst_20 = arith.constant dense<0xFF800000> : vector<8xf32>
    %42 = vector.multi_reduction <maximumf>, %41, %cst_20 [1] : vector<8x8xf32> to vector<8xf32>
    %43 = vector.shape_cast %42 : vector<8xf32> to vector<8x1xf32>
    %44 = vector.broadcast %43 : vector<8x1xf32> to vector<8x8xf32>
    %45 = arith.subf %41, %44 : vector<8x8xf32>
    %46 = math.exp %45 : vector<8x8xf32>
    %cst_21 = arith.constant dense<0.000000e+00> : vector<8xf32>
    %47 = vector.multi_reduction <add>, %46, %cst_21 [1] : vector<8x8xf32> to vector<8xf32>
    %48 = vector.shape_cast %47 : vector<8xf32> to vector<8x1xf32>
    %49 = tpu.reciprocal %48 {approx = true} : vector<8x1xf32> -> vector<8x1xf32>
    %50 = vector.broadcast %49 : vector<8x1xf32> to vector<8x8xf32>
    %51 = arith.mulf %46, %50 : vector<8x8xf32>
    %52 = arith.truncf %51 : vector<8x8xf32> to vector<8x8xbf16>
    %cst_22 = arith.constant dense<0.000000e+00> : vector<8x32xf32>
    %53 = tpu.matmul %52, %30, %cst_22 {dimension_numbers = #tpu.dot_dimension_numbers<[1], [0], [0], [1], [0, 0, 1, 1], [], []>} : vector<8x8xbf16>, vector<8x32xbf16>, vector<8x32xf32> -> vector<8x32xf32>
    %54 = vector.extract_strided_slice %11 {offsets = [0, 32], sizes = [8, 32], strides = [1, 1]} : vector<8x128xf32> to vector<8x32xf32>
    %55 = vector.extract_strided_slice %54 {offsets = [0, 16], sizes = [8, 16], strides = [1, 1]} : vector<8x32xf32> to vector<8x16xf32>
    %56 = vector.extract_strided_slice %54 {offsets = [0, 0], sizes = [8, 16], strides = [1, 1]} : vector<8x32xf32> to vector<8x16xf32>
    %57 = tpu.concatenate %55, %56 in 1 : vector<8x16xf32>, vector<8x16xf32> -> vector<8x32xf32>
    %58 = arith.mulf %54, %5 : vector<8x32xf32>
    %59 = arith.mulf %57, %6 : vector<8x32xf32>
    %60 = arith.addf %58, %59 : vector<8x32xf32>
    %61 = arith.truncf %60 : vector<8x32xf32> to vector<8x32xbf16>
    %cst_23 = arith.constant dense<0.000000e+00> : vector<8x8xf32>
    %62 = tpu.matmul %61, %28, %cst_23 {dimension_numbers = #tpu.dot_dimension_numbers<[1], [1], [0], [0], [0, 0, 1, 0], [], []>} : vector<8x32xbf16>, vector<8x32xbf16>, vector<8x8xf32> -> vector<8x8xf32>
    %cst_24 = arith.constant -1.000000e+30 : f32
    %63 = vector.broadcast %cst_24 : f32 to vector<8x8xf32>
    %64 = arith.select %20, %62, %63 : vector<8x8xi1>, vector<8x8xf32>
    %cst_25 = arith.constant dense<0xFF800000> : vector<8xf32>
    %65 = vector.multi_reduction <maximumf>, %64, %cst_25 [1] : vector<8x8xf32> to vector<8xf32>
    %66 = vector.shape_cast %65 : vector<8xf32> to vector<8x1xf32>
    %67 = vector.broadcast %66 : vector<8x1xf32> to vector<8x8xf32>
    %68 = arith.subf %64, %67 : vector<8x8xf32>
    %69 = math.exp %68 : vector<8x8xf32>
    %cst_26 = arith.constant dense<0.000000e+00> : vector<8xf32>
    %70 = vector.multi_reduction <add>, %69, %cst_26 [1] : vector<8x8xf32> to vector<8xf32>
    %71 = vector.shape_cast %70 : vector<8xf32> to vector<8x1xf32>
    %72 = tpu.reciprocal %71 {approx = true} : vector<8x1xf32> -> vector<8x1xf32>
    %73 = vector.broadcast %72 : vector<8x1xf32> to vector<8x8xf32>
    %74 = arith.mulf %69, %73 : vector<8x8xf32>
    %75 = arith.truncf %74 : vector<8x8xf32> to vector<8x8xbf16>
    %cst_27 = arith.constant dense<0.000000e+00> : vector<8x32xf32>
    %76 = tpu.matmul %75, %30, %cst_27 {dimension_numbers = #tpu.dot_dimension_numbers<[1], [0], [0], [1], [0, 0, 1, 1], [], []>} : vector<8x8xbf16>, vector<8x32xbf16>, vector<8x32xf32> -> vector<8x32xf32>
    %77 = vector.extract_strided_slice %14 {offsets = [0, 32], sizes = [8, 32], strides = [1, 1]} : vector<8x64xf32> to vector<8x32xf32>
    %78 = vector.extract_strided_slice %77 {offsets = [0, 16], sizes = [8, 16], strides = [1, 1]} : vector<8x32xf32> to vector<8x16xf32>
    %79 = vector.extract_strided_slice %77 {offsets = [0, 0], sizes = [8, 16], strides = [1, 1]} : vector<8x32xf32> to vector<8x16xf32>
    %80 = tpu.concatenate %78, %79 in 1 : vector<8x16xf32>, vector<8x16xf32> -> vector<8x32xf32>
    %81 = arith.mulf %77, %5 : vector<8x32xf32>
    %82 = arith.mulf %80, %6 : vector<8x32xf32>
    %83 = arith.addf %81, %82 : vector<8x32xf32>
    %84 = arith.truncf %83 : vector<8x32xf32> to vector<8x32xbf16>
    %85 = vector.extract_strided_slice %17 {offsets = [0, 32], sizes = [8, 32], strides = [1, 1]} : vector<8x64xf32> to vector<8x32xf32>
    %86 = arith.truncf %85 : vector<8x32xf32> to vector<8x32xbf16>
    %87 = vector.extract_strided_slice %11 {offsets = [0, 64], sizes = [8, 32], strides = [1, 1]} : vector<8x128xf32> to vector<8x32xf32>
    %88 = vector.extract_strided_slice %87 {offsets = [0, 16], sizes = [8, 16], strides = [1, 1]} : vector<8x32xf32> to vector<8x16xf32>
    %89 = vector.extract_strided_slice %87 {offsets = [0, 0], sizes = [8, 16], strides = [1, 1]} : vector<8x32xf32> to vector<8x16xf32>
    %90 = tpu.concatenate %88, %89 in 1 : vector<8x16xf32>, vector<8x16xf32> -> vector<8x32xf32>
    %91 = arith.mulf %87, %5 : vector<8x32xf32>
    %92 = arith.mulf %90, %6 : vector<8x32xf32>
    %93 = arith.addf %91, %92 : vector<8x32xf32>
    %94 = arith.truncf %93 : vector<8x32xf32> to vector<8x32xbf16>
    %cst_28 = arith.constant dense<0.000000e+00> : vector<8x8xf32>
    %95 = tpu.matmul %94, %84, %cst_28 {dimension_numbers = #tpu.dot_dimension_numbers<[1], [1], [0], [0], [0, 0, 1, 0], [], []>} : vector<8x32xbf16>, vector<8x32xbf16>, vector<8x8xf32> -> vector<8x8xf32>
    %cst_29 = arith.constant -1.000000e+30 : f32
    %96 = vector.broadcast %cst_29 : f32 to vector<8x8xf32>
    %97 = arith.select %20, %95, %96 : vector<8x8xi1>, vector<8x8xf32>
    %cst_30 = arith.constant dense<0xFF800000> : vector<8xf32>
    %98 = vector.multi_reduction <maximumf>, %97, %cst_30 [1] : vector<8x8xf32> to vector<8xf32>
    %99 = vector.shape_cast %98 : vector<8xf32> to vector<8x1xf32>
    %100 = vector.broadcast %99 : vector<8x1xf32> to vector<8x8xf32>
    %101 = arith.subf %97, %100 : vector<8x8xf32>
    %102 = math.exp %101 : vector<8x8xf32>
    %cst_31 = arith.constant dense<0.000000e+00> : vector<8xf32>
    %103 = vector.multi_reduction <add>, %102, %cst_31 [1] : vector<8x8xf32> to vector<8xf32>
    %104 = vector.shape_cast %103 : vector<8xf32> to vector<8x1xf32>
    %105 = tpu.reciprocal %104 {approx = true} : vector<8x1xf32> -> vector<8x1xf32>
    %106 = vector.broadcast %105 : vector<8x1xf32> to vector<8x8xf32>
    %107 = arith.mulf %102, %106 : vector<8x8xf32>
    %108 = arith.truncf %107 : vector<8x8xf32> to vector<8x8xbf16>
    %cst_32 = arith.constant dense<0.000000e+00> : vector<8x32xf32>
    %109 = tpu.matmul %108, %86, %cst_32 {dimension_numbers = #tpu.dot_dimension_numbers<[1], [0], [0], [1], [0, 0, 1, 1], [], []>} : vector<8x8xbf16>, vector<8x32xbf16>, vector<8x32xf32> -> vector<8x32xf32>
    %110 = vector.extract_strided_slice %11 {offsets = [0, 96], sizes = [8, 32], strides = [1, 1]} : vector<8x128xf32> to vector<8x32xf32>
    %111 = vector.extract_strided_slice %110 {offsets = [0, 16], sizes = [8, 16], strides = [1, 1]} : vector<8x32xf32> to vector<8x16xf32>
    %112 = vector.extract_strided_slice %110 {offsets = [0, 0], sizes = [8, 16], strides = [1, 1]} : vector<8x32xf32> to vector<8x16xf32>
    %113 = tpu.concatenate %111, %112 in 1 : vector<8x16xf32>, vector<8x16xf32> -> vector<8x32xf32>
    %114 = arith.mulf %110, %5 : vector<8x32xf32>
    %115 = arith.mulf %113, %6 : vector<8x32xf32>
    %116 = arith.addf %114, %115 : vector<8x32xf32>
    %117 = arith.truncf %116 : vector<8x32xf32> to vector<8x32xbf16>
    %cst_33 = arith.constant dense<0.000000e+00> : vector<8x8xf32>
    %118 = tpu.matmul %117, %84, %cst_33 {dimension_numbers = #tpu.dot_dimension_numbers<[1], [1], [0], [0], [0, 0, 1, 0], [], []>} : vector<8x32xbf16>, vector<8x32xbf16>, vector<8x8xf32> -> vector<8x8xf32>
    %cst_34 = arith.constant -1.000000e+30 : f32
    %119 = vector.broadcast %cst_34 : f32 to vector<8x8xf32>
    %120 = arith.select %20, %118, %119 : vector<8x8xi1>, vector<8x8xf32>
    %cst_35 = arith.constant dense<0xFF800000> : vector<8xf32>
    %121 = vector.multi_reduction <maximumf>, %120, %cst_35 [1] : vector<8x8xf32> to vector<8xf32>
    %122 = vector.shape_cast %121 : vector<8xf32> to vector<8x1xf32>
    %123 = vector.broadcast %122 : vector<8x1xf32> to vector<8x8xf32>
    %124 = arith.subf %120, %123 : vector<8x8xf32>
    %125 = math.exp %124 : vector<8x8xf32>
    %cst_36 = arith.constant dense<0.000000e+00> : vector<8xf32>
    %126 = vector.multi_reduction <add>, %125, %cst_36 [1] : vector<8x8xf32> to vector<8xf32>
    %127 = vector.shape_cast %126 : vector<8xf32> to vector<8x1xf32>
    %128 = tpu.reciprocal %127 {approx = true} : vector<8x1xf32> -> vector<8x1xf32>
    %129 = vector.broadcast %128 : vector<8x1xf32> to vector<8x8xf32>
    %130 = arith.mulf %125, %129 : vector<8x8xf32>
    %131 = arith.truncf %130 : vector<8x8xf32> to vector<8x8xbf16>
    %cst_37 = arith.constant dense<0.000000e+00> : vector<8x32xf32>
    %132 = tpu.matmul %131, %86, %cst_37 {dimension_numbers = #tpu.dot_dimension_numbers<[1], [0], [0], [1], [0, 0, 1, 1], [], []>} : vector<8x8xbf16>, vector<8x32xbf16>, vector<8x32xf32> -> vector<8x32xf32>
    %133 = tpu.concatenate %53, %76, %109, %132 in 1 : vector<8x32xf32>, vector<8x32xf32>, vector<8x32xf32>, vector<8x32xf32> -> vector<8x128xf32>
    %134 = arith.truncf %133 : vector<8x128xf32> to vector<8x128xbf16>
    %c0_38 = arith.constant 0 : index
    %c0_39 = arith.constant 0 : index
    %135 = vector.load %arg11[%c0_38, %c0_39] : memref<8x128xf32, #tpu.memory_space<vmem>>, vector<8x128xf32>
    %c0_40 = arith.constant 0 : index
    %c0_41 = arith.constant 0 : index
    %c0_42 = arith.constant 0 : index
    %136 = vector.load %arg6[%c0_40, %c0_41, %c0_42] : memref<1x128x128xbf16, #tpu.memory_space<vmem>>, vector<1x128x128xbf16>
    %137 = vector.shape_cast %136 : vector<1x128x128xbf16> to vector<128x128xbf16>
    %cst_43 = arith.constant dense<0.000000e+00> : vector<8x128xf32>
    %138 = tpu.matmul %134, %137, %cst_43 {dimension_numbers = #tpu.dot_dimension_numbers<[1], [0], [0], [1], [0, 0, 1, 1], [], []>} : vector<8x128xbf16>, vector<128x128xbf16>, vector<8x128xf32> -> vector<8x128xf32>
    %139 = arith.addf %135, %138 : vector<8x128xf32>
    %c0_44 = arith.constant 0 : index
    %c0_45 = arith.constant 0 : index
    %140 = vector.load %arg11[%c0_44, %c0_45] : memref<8x128xf32, #tpu.memory_space<vmem>>, vector<8x128xf32>
    tpu.vector_store %arg11[%c0_44, %c0_45], %139 {strides = array<i32>} : memref<8x128xf32, #tpu.memory_space<vmem>>, vector<8x128xf32>,
    %c0_i32_46 = arith.constant 0 : i32
    %141 = arith.cmpi eq, %arg0, %c0_i32_46 : i32
    %142 = arith.extui %141 : i1 to i32
    %c0_i32_47 = arith.constant 0 : i32
    %143 = arith.cmpi ne, %142, %c0_i32_47 : i32
    scf.if %143 {
      %c0_48 = arith.constant 0 : index
      %c0_49 = arith.constant 0 : index
      %144 = vector.load %arg1[%c0_48, %c0_49] : memref<8x128xf32, #tpu.memory_space<vmem>>, vector<8x128xf32>
      %c0_50 = arith.constant 0 : index
      %c0_51 = arith.constant 0 : index
      %145 = vector.load %arg11[%c0_50, %c0_51] : memref<8x128xf32, #tpu.memory_space<vmem>>, vector<8x128xf32>
      %cst_52 = arith.constant 0.699999988 : f32
      %146 = vector.broadcast %cst_52 : f32 to vector<8x128xf32>
      %147 = arith.mulf %145, %146 : vector<8x128xf32>
      %148 = arith.addf %144, %147 : vector<8x128xf32>
      %c0_53 = arith.constant 0 : index
      %c0_54 = arith.constant 0 : index
      %149 = vector.load %arg9[%c0_53, %c0_54] : memref<8x128xf32, #tpu.memory_space<vmem>>, vector<8x128xf32>
      tpu.vector_store %arg9[%c0_53, %c0_54], %148 {strides = array<i32>} : memref<8x128xf32, #tpu.memory_space<vmem>>, vector<8x128xf32>,
    } else {
    }
    return
  }
  func.func @transform_0(%arg0: i32) -> (i32, i32) {
    %c0_i32 = arith.constant 0 : i32
    %c0_i32_0 = arith.constant 0 : i32
    %c0_i32_1 = arith.constant 0 : i32
    return %c0_i32, %c0_i32_0 : i32, i32
  }
  func.func @transform_1(%arg0: i32) -> (i32, i32) {
    %c0_i32 = arith.constant 0 : i32
    %c0_i32_0 = arith.constant 0 : i32
    %c0_i32_1 = arith.constant 0 : i32
    return %c0_i32, %c0_i32_0 : i32, i32
  }
  func.func @transform_2(%arg0: i32) -> (i32, i32, i32) {
    %c0_i32 = arith.constant 0 : i32
    %c0_i32_0 = arith.constant 0 : i32
    %c0_i32_1 = arith.constant 0 : i32
    return %arg0, %c0_i32, %c0_i32_0 : i32, i32, i32
  }
  func.func @transform_3(%arg0: i32) -> (i32, i32, i32) {
    %c0_i32 = arith.constant 0 : i32
    %c0_i32_0 = arith.constant 0 : i32
    %c0_i32_1 = arith.constant 0 : i32
    return %arg0, %c0_i32, %c0_i32_0 : i32, i32, i32
  }
  func.func @transform_4(%arg0: i32) -> (i32, i32, i32) {
    %c0_i32 = arith.constant 0 : i32
    %c0_i32_0 = arith.constant 0 : i32
    %c0_i32_1 = arith.constant 0 : i32
    return %arg0, %c0_i32, %c0_i32_0 : i32, i32, i32
  }
  func.func @transform_5(%arg0: i32) -> (i32, i32, i32) {
    %c0_i32 = arith.constant 0 : i32
    %c0_i32_0 = arith.constant 0 : i32
    %c0_i32_1 = arith.constant 0 : i32
    return %arg0, %c0_i32, %c0_i32_0 : i32, i32, i32
  }
  func.func @transform_6(%arg0: i32) -> (i32, i32) {
    %c0_i32 = arith.constant 0 : i32
    %c0_i32_0 = arith.constant 0 : i32
    %c0_i32_1 = arith.constant 0 : i32
    return %c0_i32, %c0_i32_0 : i32, i32
  }
  func.func @transform_7(%arg0: i32) -> (i32, i32) {
    %c0_i32 = arith.constant 0 : i32
    %c0_i32_0 = arith.constant 0 : i32
    %c0_i32_1 = arith.constant 0 : i32
    return %c0_i32, %c0_i32_0 : i32, i32
  }
  func.func @transform_8(%arg0: i32) -> (i32, i32) {
    %c0_i32 = arith.constant 0 : i32
    %c0_i32_0 = arith.constant 0 : i32
    %c0_i32_1 = arith.constant 0 : i32
    return %c0_i32, %c0_i32_0 : i32, i32
  }
}

module attributes {stable_mosaic.version = 11 : i64} {
  func.func @_mlp_block_kernel(%arg0: i32, %arg1: memref<8x128xf32, #tpu.memory_space<vmem>>, %arg2: memref<1x128xf32, #tpu.memory_space<vmem>>, %arg3: memref<128x128xbf16, #tpu.memory_space<vmem>>, %arg4: memref<128x128xbf16, #tpu.memory_space<vmem>>, %arg5: memref<128x128xbf16, #tpu.memory_space<vmem>>, %arg6: memref<8x128xf32, #tpu.memory_space<vmem>>, %arg7: memref<8x128xf32, #tpu.memory_space<vmem>>, %arg8: memref<8x128xf32, #tpu.memory_space<vmem>>) attributes {dimension_semantics = [#tpu.dimension_semantics<arbitrary>], iteration_bounds = array<i64: 3>, scalar_prefetch = 0 : i64, scratch_operands = 2 : i64, tpu.core_type = #tpu.core_type<tc>, window_params = [{pipeline_mode = #tpu.pipeline_mode<synchronous>, transform_indices = @transform_0, window_bounds = array<i64: 8, 128>}, {pipeline_mode = #tpu.pipeline_mode<synchronous>, transform_indices = @transform_1, window_bounds = array<i64: 1, 128>}, {transform_indices = @transform_2, window_bounds = array<i64: 128, 128>}, {transform_indices = @transform_3, window_bounds = array<i64: 128, 128>}, {transform_indices = @transform_4, window_bounds = array<i64: 128, 128>}, {pipeline_mode = #tpu.pipeline_mode<synchronous>, transform_indices = @transform_5, window_bounds = array<i64: 8, 128>}]} {
    %c0_i32 = arith.constant 0 : i32
    %0 = arith.cmpi eq, %arg0, %c0_i32 : i32
    %1 = arith.extui %0 : i1 to i32
    %c0_i32_0 = arith.constant 0 : i32
    %2 = arith.cmpi ne, %1, %c0_i32_0 : i32
    scf.if %2 {
      %c0_16 = arith.constant 0 : index
      %c0_17 = arith.constant 0 : index
      %25 = vector.load %arg1[%c0_16, %c0_17] : memref<8x128xf32, #tpu.memory_space<vmem>>, vector<8x128xf32>
      %26 = arith.mulf %25, %25 : vector<8x128xf32>
      %cst_18 = arith.constant dense<0.000000e+00> : vector<8xf32>
      %27 = vector.multi_reduction <add>, %26, %cst_18 [1] : vector<8x128xf32> to vector<8xf32>
      %28 = vector.shape_cast %27 : vector<8xf32> to vector<8x1xf32>
      %cst_19 = arith.constant 1.280000e+02 : f32
      %29 = vector.broadcast %cst_19 : f32 to vector<8x1xf32>
      %30 = arith.divf %28, %29 : vector<8x1xf32>
      %cst_20 = arith.constant 9.99999997E-7 : f32
      %31 = vector.broadcast %cst_20 : f32 to vector<8x1xf32>
      %32 = arith.addf %30, %31 : vector<8x1xf32>
      %33 = math.rsqrt %32 : vector<8x1xf32>
      %34 = vector.broadcast %33 : vector<8x1xf32> to vector<8x128xf32>
      %35 = arith.mulf %25, %34 : vector<8x128xf32>
      %c0_21 = arith.constant 0 : index
      %c0_22 = arith.constant 0 : index
      %36 = vector.load %arg2[%c0_21, %c0_22] : memref<1x128xf32, #tpu.memory_space<vmem>>, vector<1x128xf32>
      %37 = vector.broadcast %36 : vector<1x128xf32> to vector<8x128xf32>
      %38 = arith.mulf %35, %37 : vector<8x128xf32>
      %c0_23 = arith.constant 0 : index
      %c0_24 = arith.constant 0 : index
      %39 = vector.load %arg7[%c0_23, %c0_24] : memref<8x128xf32, #tpu.memory_space<vmem>>, vector<8x128xf32>
      tpu.vector_store %arg7[%c0_23, %c0_24], %38 {strides = array<i32>} : memref<8x128xf32, #tpu.memory_space<vmem>>, vector<8x128xf32>,
      %cst_25 = arith.constant 0.000000e+00 : f32
      %40 = vector.broadcast %cst_25 : f32 to vector<8x128xf32>
      %c0_26 = arith.constant 0 : index
      %c0_27 = arith.constant 0 : index
      %41 = vector.load %arg8[%c0_26, %c0_27] : memref<8x128xf32, #tpu.memory_space<vmem>>, vector<8x128xf32>
      tpu.vector_store %arg8[%c0_26, %c0_27], %40 {strides = array<i32>} : memref<8x128xf32, #tpu.memory_space<vmem>>, vector<8x128xf32>,
    } else {
    }
    %c0 = arith.constant 0 : index
    %c0_1 = arith.constant 0 : index
    %3 = vector.load %arg7[%c0, %c0_1] : memref<8x128xf32, #tpu.memory_space<vmem>>, vector<8x128xf32>
    %4 = arith.truncf %3 : vector<8x128xf32> to vector<8x128xbf16>
    %c0_2 = arith.constant 0 : index
    %c0_3 = arith.constant 0 : index
    %5 = vector.load %arg3[%c0_2, %c0_3] : memref<128x128xbf16, #tpu.memory_space<vmem>>, vector<128x128xbf16>
    %cst = arith.constant dense<0.000000e+00> : vector<8x128xf32>
    %6 = tpu.matmul %4, %5, %cst {dimension_numbers = #tpu.dot_dimension_numbers<[1], [0], [0], [1], [0, 0, 1, 1], [], []>} : vector<8x128xbf16>, vector<128x128xbf16>, vector<8x128xf32> -> vector<8x128xf32>
    %c0_4 = arith.constant 0 : index
    %c0_5 = arith.constant 0 : index
    %7 = vector.load %arg4[%c0_4, %c0_5] : memref<128x128xbf16, #tpu.memory_space<vmem>>, vector<128x128xbf16>
    %cst_6 = arith.constant dense<0.000000e+00> : vector<8x128xf32>
    %8 = tpu.matmul %4, %7, %cst_6 {dimension_numbers = #tpu.dot_dimension_numbers<[1], [0], [0], [1], [0, 0, 1, 1], [], []>} : vector<8x128xbf16>, vector<128x128xbf16>, vector<8x128xf32> -> vector<8x128xf32>
    %9 = arith.negf %6 : vector<8x128xf32>
    %10 = math.exp %9 : vector<8x128xf32>
    %cst_7 = arith.constant 1.000000e+00 : f32
    %11 = vector.broadcast %cst_7 : f32 to vector<8x128xf32>
    %12 = arith.addf %11, %10 : vector<8x128xf32>
    %13 = arith.divf %11, %12 : vector<8x128xf32>
    %14 = arith.mulf %6, %13 : vector<8x128xf32>
    %15 = arith.mulf %14, %8 : vector<8x128xf32>
    %c0_8 = arith.constant 0 : index
    %c0_9 = arith.constant 0 : index
    %16 = vector.load %arg8[%c0_8, %c0_9] : memref<8x128xf32, #tpu.memory_space<vmem>>, vector<8x128xf32>
    %17 = arith.truncf %15 : vector<8x128xf32> to vector<8x128xbf16>
    %c0_10 = arith.constant 0 : index
    %c0_11 = arith.constant 0 : index
    %18 = vector.load %arg5[%c0_10, %c0_11] : memref<128x128xbf16, #tpu.memory_space<vmem>>, vector<128x128xbf16>
    %cst_12 = arith.constant dense<0.000000e+00> : vector<8x128xf32>
    %19 = tpu.matmul %17, %18, %cst_12 {dimension_numbers = #tpu.dot_dimension_numbers<[1], [0], [0], [1], [0, 0, 1, 1], [], []>} : vector<8x128xbf16>, vector<128x128xbf16>, vector<8x128xf32> -> vector<8x128xf32>
    %20 = arith.addf %16, %19 : vector<8x128xf32>
    %c0_13 = arith.constant 0 : index
    %c0_14 = arith.constant 0 : index
    %21 = vector.load %arg8[%c0_13, %c0_14] : memref<8x128xf32, #tpu.memory_space<vmem>>, vector<8x128xf32>
    tpu.vector_store %arg8[%c0_13, %c0_14], %20 {strides = array<i32>} : memref<8x128xf32, #tpu.memory_space<vmem>>, vector<8x128xf32>,
    %c2_i32 = arith.constant 2 : i32
    %22 = arith.cmpi eq, %arg0, %c2_i32 : i32
    %23 = arith.extui %22 : i1 to i32
    %c0_i32_15 = arith.constant 0 : i32
    %24 = arith.cmpi ne, %23, %c0_i32_15 : i32
    scf.if %24 {
      %c0_16 = arith.constant 0 : index
      %c0_17 = arith.constant 0 : index
      %25 = vector.load %arg1[%c0_16, %c0_17] : memref<8x128xf32, #tpu.memory_space<vmem>>, vector<8x128xf32>
      %c0_18 = arith.constant 0 : index
      %c0_19 = arith.constant 0 : index
      %26 = vector.load %arg8[%c0_18, %c0_19] : memref<8x128xf32, #tpu.memory_space<vmem>>, vector<8x128xf32>
      %cst_20 = arith.constant 0.699999988 : f32
      %27 = vector.broadcast %cst_20 : f32 to vector<8x128xf32>
      %28 = arith.mulf %26, %27 : vector<8x128xf32>
      %29 = arith.addf %25, %28 : vector<8x128xf32>
      %c0_21 = arith.constant 0 : index
      %c0_22 = arith.constant 0 : index
      %30 = vector.load %arg6[%c0_21, %c0_22] : memref<8x128xf32, #tpu.memory_space<vmem>>, vector<8x128xf32>
      tpu.vector_store %arg6[%c0_21, %c0_22], %29 {strides = array<i32>} : memref<8x128xf32, #tpu.memory_space<vmem>>, vector<8x128xf32>,
    } else {
    }
    return
  }
  func.func @transform_0(%arg0: i32) -> (i32, i32) {
    %c0_i32 = arith.constant 0 : i32
    %c0_i32_0 = arith.constant 0 : i32
    %c0_i32_1 = arith.constant 0 : i32
    return %c0_i32, %c0_i32_0 : i32, i32
  }
  func.func @transform_1(%arg0: i32) -> (i32, i32) {
    %c0_i32 = arith.constant 0 : i32
    %c0_i32_0 = arith.constant 0 : i32
    %c0_i32_1 = arith.constant 0 : i32
    return %c0_i32, %c0_i32_0 : i32, i32
  }
  func.func @transform_2(%arg0: i32) -> (i32, i32) {
    %c0_i32 = arith.constant 0 : i32
    %c0_i32_0 = arith.constant 0 : i32
    return %c0_i32, %arg0 : i32, i32
  }
  func.func @transform_3(%arg0: i32) -> (i32, i32) {
    %c0_i32 = arith.constant 0 : i32
    %c0_i32_0 = arith.constant 0 : i32
    return %c0_i32, %arg0 : i32, i32
  }
  func.func @transform_4(%arg0: i32) -> (i32, i32) {
    %c0_i32 = arith.constant 0 : i32
    %c0_i32_0 = arith.constant 0 : i32
    return %arg0, %c0_i32 : i32, i32
  }
  func.func @transform_5(%arg0: i32) -> (i32, i32) {
    %c0_i32 = arith.constant 0 : i32
    %c0_i32_0 = arith.constant 0 : i32
    %c0_i32_1 = arith.constant 0 : i32
    return %c0_i32, %c0_i32_0 : i32, i32
  }
}

</mosaic_0001>

<llo_original>
// kernel: _lambda_.5
$region0: #{_lambda_.5}
  #allocation0 [shape = 'u32[]', space=smem, size = 0x4, offset = 0x4, fixed_abs, tag = 'smem constant byte address 0x4 - core index']
  #allocation1 [shape = 'u32[144,128]{1,0:T(1,128)}', space=vmem, size = 0x12000, scoped, tag = 'internal scratch']
  %s0 = inlined_call_operand.vmem [shape: bf16[8,128], index: 0, kind: input, shape index: {}]
  %s1 = inlined_call_operand.vmem [shape: f32[8,128], index: 1, kind: input, shape index: {}]
  %s2 = inlined_call_operand.vmem [shape: f32[1,128], index: 2, kind: input, shape index: {}]
  %s3 = inlined_call_operand.vmem [shape: f32[1,128], index: 3, kind: input, shape index: {}]
  %s4 = inlined_call_operand.vmem [shape: bf16[128,128], index: 4, kind: input, shape index: {}]
  %s5 = inlined_call_operand.hbm [shape: bf16[128,128], index: 5, kind: input, shape index: {}]
  %s6 = inlined_call_operand.vmem [shape: f32[8,128], index: 6, kind: output, shape index: {}]
  %s7 = sld [smem:[#allocation0]]
  $region38: #{_lambda_.5} parent=0
    _
  %s9 = ssub.s32 1, %s7
  %s10 = scalar_select 0, %s9, %s7
  $region1: #{_lambda_.5} parent=0
    #allocation2 [shape = 'u8[32768]{0}', space=vmem, size = 0x8000, scoped, tag = 'input window, operand 5, single buffered']
    #allocation3 [shape = 's32[1]{0}', space=sflag, size = 0x4, scoped, tag = 'scoped memory for _lambda_.5']
    %11 = vsyncpa [#allocation3], 0
    // Predicated region
    $region2: #{_lambda_.5} parent=1 // pred_check
      _
    $region3: #{_lambda_.5} parent=1 // pred_check_branch
      %13 = sbr.rel (0) target = $region5
    $region4: #{_lambda_.5} parent=1 // pred_region
      _
    $region5: #{_lambda_.5} parent=1 // pred_fallthru
      _
    // Predicated region
    $region6: #{_lambda_.5} parent=1 // pred_check
      _
    $region7: #{_lambda_.5} parent=1 // pred_check_branch
      %15 = sbr.rel (0) target = $region9
    $region8: #{_lambda_.5} parent=1 // pred_region
      _
    $region9: #{_lambda_.5} parent=1 // pred_fallthru
      _
    // Predicated region
    $region10: #{_lambda_.5} parent=1 // pred_check
      _
    $region11: #{_lambda_.5} parent=1 // pred_check_branch
      %17 = sbr.rel (0) target = $region13
    $region12: #{_lambda_.5} parent=1 // pred_region
      _
    $region13: #{_lambda_.5} parent=1 // pred_fallthru
      _
    // Predicated region
    $region14: #{_lambda_.5} parent=1 // pred_check
      _
    $region15: #{_lambda_.5} parent=1 // pred_check_branch
      %19 = sbr.rel (0) target = $region17
    $region16: #{_lambda_.5} parent=1 // pred_region
      _
    $region17: #{_lambda_.5} parent=1 // pred_fallthru
      _
    // Predicated region
    $region18: #{_lambda_.5} parent=1 // pred_check
      _
    $region19: #{_lambda_.5} parent=1 // pred_check_branch
      %21 = sbr.rel (0) target = $region21
    $region20: #{_lambda_.5} parent=1 // pred_region
      _
    $region21: #{_lambda_.5} parent=1 // pred_fallthru
      _
    // Predicated region
    $region22: #{_lambda_.5} parent=1 // pred_check
      _
    $region23: #{_lambda_.5} parent=1 // pred_check_branch
      %23 = sbr.rel (0) target = $region25
    $region24: #{_lambda_.5} parent=1 // pred_region
      %s25 = ssub.s32 1024, 1024
      %26 = vsyncadd [#allocation3], %s25
      %s27 = sshll.u32 [#allocation2], 4
      %s28 = int_to_ptr.vmem [resolvable:$true] %s27
      %33 = dma.hbm_to_vmem [thread:$0]  %s5, 1024, %s28, [#allocation3], 64, 64, 4
    $region25: #{_lambda_.5} parent=1 // pred_fallthru
      _
    // Predicated region
    $region26: #{_lambda_.5} parent=1 // pred_check
      _
    $region27: #{_lambda_.5} parent=1 // pred_check_branch
      %35 = sbr.rel (0) target = $region29
    $region28: #{_lambda_.5} parent=1 // pred_region
      %36 = dma.done [#allocation3], 1024
    $region29: #{_lambda_.5} parent=1 // pred_fallthru
      _
    %v38 = vld [vmem:[%s0] sm:$0xf]
    %v39 = vunpack.c.l.bf16 %v38
    %v40 = vmul.f32 %v39, 12.0
    %v41 = vld [vmem:[%s2] sm:$0x1]
    %v42 = vmul.f32 %v40, %v40
    %43 = vadd.xlane.f32.xlu0 %v42
    %v44 = vpop.xlane.xlu0 %43
    %v45 = vrcp.pop 128.0
    %v46 = vmul.f32 %v44, %v45
    %v47 = vadd.f32 %v46, 1e-06
    %v48 = vrsqrt.pop %v47
    %v49 = vmul.f32 %v40, %v48
    %v51 = vlaneseq
    %v52 = vshrl.u32 %v51, 7
    %v53 = vsub.s32 0, %v52
    %v54 = vrot.slane %v41, %v53
    %v56 = vmul.f32 %v49, %v54
    %v57 = vld [vmem:[%s1] sm:$0xff]
    %v58 = vld [vmem:[%s3] sm:$0x1]
    %v59 = vmul.f32 %v57, %v57
    %60 = vadd.xlane.f32.xlu0 %v59
    %v61 = vpop.xlane.xlu0 %60
    %v62 = vmul.f32 %v61, %v45
    %v63 = vadd.f32 %v62, 1e-06
    %v64 = vrsqrt.pop %v63
    %v65 = vmul.f32 %v57, %v64
    %v67 = vlaneseq
    %v68 = vshrl.u32 %v67, 7
    %v69 = vsub.s32 0, %v68
    %v70 = vrot.slane %v58, %v69
    %v72 = vmul.f32 %v65, %v70
    %v73 = vpack.c.bf16 %v56, %v56
    %v74 = vld [vmem:[%s4] sm:$0xf]
    %v75 = vld [vmem:[%s4 + $0x4] sm:$0xf]
    %v76 = vld [vmem:[%s4 + $0x8] sm:$0xf]
    %v77 = vld [vmem:[%s4 + $0xc] sm:$0xf]
    %v78 = vld [vmem:[%s4 + $0x10] sm:$0xf]
    %v79 = vld [vmem:[%s4 + $0x14] sm:$0xf]
    %v80 = vld [vmem:[%s4 + $0x18] sm:$0xf]
    %v81 = vld [vmem:[%s4 + $0x1c] sm:$0xf]
    %v82 = vld [vmem:[%s4 + $0x20] sm:$0xf]
    %v83 = vld [vmem:[%s4 + $0x24] sm:$0xf]
    %v84 = vld [vmem:[%s4 + $0x28] sm:$0xf]
    %v85 = vld [vmem:[%s4 + $0x2c] sm:$0xf]
    %v86 = vld [vmem:[%s4 + $0x30] sm:$0xf]
    %v87 = vld [vmem:[%s4 + $0x34] sm:$0xf]
    %v88 = vld [vmem:[%s4 + $0x38] sm:$0xf]
    %v89 = vld [vmem:[%s4 + $0x3c] sm:$0xf]
    %v90 = vpack.c.bf16 %v72, %v72
    %v91 = vld [vmem:[#allocation2] sm:$0xf]
    %v92 = vld [vmem:[#allocation2 + $0x4] sm:$0xf]
    %v93 = vld [vmem:[#allocation2 + $0x8] sm:$0xf]
    %v94 = vld [vmem:[#allocation2 + $0xc] sm:$0xf]
    %v95 = vld [vmem:[#allocation2 + $0x10] sm:$0xf]
    %v96 = vld [vmem:[#allocation2 + $0x14] sm:$0xf]
    %v97 = vld [vmem:[#allocation2 + $0x18] sm:$0xf]
    %v98 = vld [vmem:[#allocation2 + $0x1c] sm:$0xf]
    %v99 = vld [vmem:[#allocation2 + $0x20] sm:$0xf]
    %v100 = vld [vmem:[#allocation2 + $0x24] sm:$0xf]
    %v101 = vld [vmem:[#allocation2 + $0x28] sm:$0xf]
    %v102 = vld [vmem:[#allocation2 + $0x2c] sm:$0xf]
    %v103 = vld [vmem:[#allocation2 + $0x30] sm:$0xf]
    %v104 = vld [vmem:[#allocation2 + $0x34] sm:$0xf]
    %v105 = vld [vmem:[#allocation2 + $0x38] sm:$0xf]
    %v106 = vld [vmem:[#allocation2 + $0x3c] sm:$0xf]
    %v123 = vunpack.c.l.b16 %v91
    %v124 = vunpack.c.l.b16 %v92
    %v125 = vunpack.c.l.b16 %v93
    %v126 = vunpack.c.l.b16 %v94
    %v127 = vunpack.c.l.b16 %v95
    %v128 = vunpack.c.l.b16 %v96
    %v129 = vunpack.c.l.b16 %v97
    %v130 = vunpack.c.l.b16 %v98
    %v131 = vunpack.c.l.b16 %v99
    %v132 = vunpack.c.l.b16 %v100
    %v133 = vunpack.c.l.b16 %v101
    %v134 = vunpack.c.l.b16 %v102
    %v135 = vunpack.c.l.b16 %v103
    %v136 = vunpack.c.l.b16 %v104
    %v137 = vunpack.c.l.b16 %v105
    %v138 = vunpack.c.l.b16 %v106
    %v139 = vpack.c.b16 %v124, %v123
    %v140 = vpack.c.b16 %v126, %v125
    %v141 = vpack.c.b16 %v128, %v127
    %v142 = vpack.c.b16 %v130, %v129
    %v143 = vpack.c.b16 %v132, %v131
    %v144 = vpack.c.b16 %v134, %v133
    %v145 = vpack.c.b16 %v136, %v135
    %v146 = vpack.c.b16 %v138, %v137
    %155 = vmatprep.subr.bf16.mxu0 0
    %156 = vmatpush1.bf16.msra.mxu0 %v139
    %157 = vmatprep.subr.bf16.mxu0 0
    %158 = vmatpush1.bf16.msra.mxu0 %v140
    %159 = vmatprep.subr.bf16.mxu0 0
    %160 = vmatpush1.bf16.msra.mxu0 %v141
    %161 = vmatprep.subr.bf16.mxu0 0
    %162 = vmatpush1.bf16.msra.mxu0 %v142
    %163 = vmatprep.subr.bf16.mxu0 0
    %164 = vmatpush1.bf16.msra.mxu0 %v143
    %165 = vmatprep.subr.bf16.mxu0 0
    %166 = vmatpush1.bf16.msra.mxu0 %v144
    %167 = vmatprep.subr.bf16.mxu0 0
    %168 = vmatpush1.bf16.msra.mxu0 %v145
    %169 = vmatprep.subr.bf16.mxu0 0
    %170 = vmatpush1.bf16.msra.mxu0 %v146
    %171 = vmatprep.subr.bf16.mxu0 0
    %172 = vmatpush1.bf16.msra.mxu0 0
    %173 = vmatprep.subr.bf16.mxu0 0
    %174 = vmatpush1.bf16.msra.mxu0 0
    %175 = vmatprep.subr.bf16.mxu0 0
    %176 = vmatpush1.bf16.msra.mxu0 0
    %177 = vmatprep.subr.bf16.mxu0 0
    %178 = vmatpush1.bf16.msra.mxu0 0
    %179 = vmatprep.subr.bf16.mxu0 0
    %180 = vmatpush1.bf16.msra.mxu0 0
    %181 = vmatprep.subr.bf16.mxu0 0
    %182 = vmatpush1.bf16.msra.mxu0 0
    %183 = vmatprep.subr.bf16.mxu0 0
    %184 = vmatpush1.bf16.msra.mxu0 0
    %185 = vmatprep.subr.bf16.mxu0 0
    %186 = vmatpush1.bf16.msra.mxu0 0
    %187 = vmatprep.mubr.bf16.mxu0 0
    %188 = vmatmul.mubr.bf16.gmra.mrb[0].mxu0 %v90
    %v189 = vpop.f32.mrb[0].mxu0
    %v190 = vadd.f32 0.0, %v189
    %v191 = vpop.f32.mrb[0].mxu0
    %v192 = vpop.f32.mrb[0].mxu0
    %v193 = vpop.f32.mrb[0].mxu0
    %194 = vdwg.mxu0
    %v211 = vunpack.c.l.b16 %v74
    %v212 = vunpack.c.l.b16 %v75
    %v213 = vunpack.c.l.b16 %v76
    %v214 = vunpack.c.l.b16 %v77
    %v215 = vunpack.c.l.b16 %v78
    %v216 = vunpack.c.l.b16 %v79
    %v217 = vunpack.c.l.b16 %v80
    %v218 = vunpack.c.l.b16 %v81
    %v219 = vunpack.c.l.b16 %v82
    %v220 = vunpack.c.l.b16 %v83
    %v221 = vunpack.c.l.b16 %v84
    %v222 = vunpack.c.l.b16 %v85
    %v223 = vunpack.c.l.b16 %v86
    %v224 = vunpack.c.l.b16 %v87
    %v225 = vunpack.c.l.b16 %v88
    %v226 = vunpack.c.l.b16 %v89
    %v227 = vpack.c.b16 %v212, %v211
    %v228 = vpack.c.b16 %v214, %v213
    %v229 = vpack.c.b16 %v216, %v215
    %v230 = vpack.c.b16 %v218, %v217
    %v231 = vpack.c.b16 %v220, %v219
    %v232 = vpack.c.b16 %v222, %v221
    %v233 = vpack.c.b16 %v224, %v223
    %v234 = vpack.c.b16 %v226, %v225
    %243 = vmatprep.subr.bf16.mxu0 0
    %244 = vmatpush1.bf16.msra.mxu0 %v227
    %245 = vmatprep.subr.bf16.mxu0 0
    %246 = vmatpush1.bf16.msra.mxu0 %v228
    %247 = vmatprep.subr.bf16.mxu0 0
    %248 = vmatpush1.bf16.msra.mxu0 %v229
    %249 = vmatprep.subr.bf16.mxu0 0
    %250 = vmatpush1.bf16.msra.mxu0 %v230
    %251 = vmatprep.subr.bf16.mxu0 0
    %252 = vmatpush1.bf16.msra.mxu0 %v231
    %253 = vmatprep.subr.bf16.mxu0 0
    %254 = vmatpush1.bf16.msra.mxu0 %v232
    %255 = vmatprep.subr.bf16.mxu0 0
    %256 = vmatpush1.bf16.msra.mxu0 %v233
    %257 = vmatprep.subr.bf16.mxu0 0
    %258 = vmatpush1.bf16.msra.mxu0 %v234
    %259 = vmatprep.subr.bf16.mxu0 0
    %260 = vmatpush1.bf16.msra.mxu0 0
    %261 = vmatprep.subr.bf16.mxu0 0
    %262 = vmatpush1.bf16.msra.mxu0 0
    %263 = vmatprep.subr.bf16.mxu0 0
    %264 = vmatpush1.bf16.msra.mxu0 0
    %265 = vmatprep.subr.bf16.mxu0 0
    %266 = vmatpush1.bf16.msra.mxu0 0
    %267 = vmatprep.subr.bf16.mxu0 0
    %268 = vmatpush1.bf16.msra.mxu0 0
    %269 = vmatprep.subr.bf16.mxu0 0
    %270 = vmatpush1.bf16.msra.mxu0 0
    %271 = vmatprep.subr.bf16.mxu0 0
    %272 = vmatpush1.bf16.msra.mxu0 0
    %273 = vmatprep.subr.bf16.mxu0 0
    %274 = vmatpush1.bf16.msra.mxu0 0
    %275 = vmatprep.mubr.bf16.mxu0 0
    %276 = vmatmul.mubr.bf16.gmra.mrb[0].mxu0 %v73
    %v277 = vpop.f32.mrb[0].mxu0
    %v278 = vadd.f32 %v190, %v277
    %v279 = vpop.f32.mrb[0].mxu0
    %v280 = vpop.f32.mrb[0].mxu0
    %v281 = vpop.f32.mrb[0].mxu0
    %282 = vdwg.mxu0
    %283 = vst [vmem:[%s6] sm:$0xff] %v278
    // Predicated region
    $region30: #{_lambda_.5} parent=1 // pred_check
      _
    $region31: #{_lambda_.5} parent=1 // pred_check_branch
      %285 = sbr.rel (0) target = $region33
    $region32: #{_lambda_.5} parent=1 // pred_region
      _
    $region33: #{_lambda_.5} parent=1 // pred_fallthru
      _
    // Predicated region
    $region34: #{_lambda_.5} parent=1 // pred_check
      _
    $region35: #{_lambda_.5} parent=1 // pred_check_branch
      %287 = sbr.rel (0) target = $region37
    $region36: #{_lambda_.5} parent=1 // pred_region
      _
    $region37: #{_lambda_.5} parent=1 // pred_fallthru
      _
    %288 = vsyncpa [#allocation3], 1

// kernel: _lambda_.7
$region0: #{_lambda_.7}
  #allocation0 [shape = 'u32[]', space=smem, size = 0x4, offset = 0x4, fixed_abs, tag = 'smem constant byte address 0x4 - core index']
  #allocation1 [shape = 'u32[144,128]{1,0:T(1,128)}', space=vmem, size = 0x12000, scoped, tag = 'internal scratch']
  #allocation2 [shape = 'f32[8,128]{1,0:T(8,128)}', space=vmem, size = 0x1000, scoped, tag = 'scratch operand']
  #allocation3 [shape = 'f32[8,128]{1,0:T(8,128)}', space=vmem, size = 0x1000, scoped, tag = 'scratch operand']
  %s0 = inlined_call_operand.vmem [shape: f32[8,128], index: 0, kind: input, shape index: {}]
  %s1 = inlined_call_operand.hbm [shape: f32[1,128], index: 1, kind: input, shape index: {}]
  %s2 = inlined_call_operand.vmem [shape: bf16[128,384], index: 2, kind: input, shape index: {}]
  %s3 = inlined_call_operand.vmem [shape: bf16[128,384], index: 3, kind: input, shape index: {}]
  %s4 = inlined_call_operand.vmem [shape: bf16[384,128], index: 4, kind: input, shape index: {}]
  %s5 = inlined_call_operand.vmem [shape: f32[8,128], index: 5, kind: output, shape index: {}]
  %s6 = sld [smem:[#allocation0]]
  $region147: #{_lambda_.7} parent=0
    _
  %s8 = ssub.s32 1, %s6
  %s9 = scalar_select 0, %s8, %s6
  $region1: #{_lambda_.7} parent=0
    #allocation4 [shape = 'u8[512]{0}', space=vmem, size = 0x400, scoped, tag = 'input window, operand 1, single buffered']
    #allocation5 [shape = 's32[2]{0}', space=sflag, size = 0x8, scoped, tag = 'scoped memory for _lambda_.7']
    #allocation6 [shape = 'u8[65536]{0}', space=vmem, size = 0x10000, scoped, tag = 'input window, operand 2']
    #allocation7 [shape = 'u8[65536]{0}', space=vmem, size = 0x10000, scoped, tag = 'input window, operand 3']
    %10 = vsyncpa [#allocation5], 0
    loop: start=0, step=1, limit=5
    $region2: #{_lambda_.7} parent=1 // loop_pre_header
      _
    $region3: #{_lambda_.7} parent=1 // loop_header
      %s12 = sphi 0, %s16
      %p13 = scmp.ge.s32.totalorder %s12, 5
      %s20 = sphi 0, %s20
      %s22 = sphi 0, %s20
      %s23 = sphi 0, %s22
      %s37 = sphi 0, %s23
      %s41 = sphi 0, %s41
      %s43 = sphi 0, %s41
      %s44 = sphi 0, %s43
      %s58 = sphi 0, %s44
      %s64 = sphi 0, %s66
      %s67 = sphi 0, %s64
      %s68 = sphi 0, %s67
      %s84 = sphi 0, %s68
      %s90 = sphi 0, %s92
      %s93 = sphi 0, %s90
      %s94 = sphi 0, %s93
      %s110 = sphi 0, %s94
      %s116 = sphi 0, %s118
      %s119 = sphi 0, %s116
      %s120 = sphi 0, %s119
      %s136 = sphi 0, %s120
      %s140 = sphi 0, %s140
      %s142 = sphi 0, %s140
      %s143 = sphi 0, %s142
      %s157 = sphi 0, %s143
    $region4: #{_lambda_.7} parent=1 // loop_header_branch
      %15 = sbr.rel (%p13) target = $region8
    $region5: #{_lambda_.7} parent=1 // loop_body
      %s17 = ssub.s32 %s12, 1
      %s18 = ssub.s32 %s12, 2
      %s19 = sadd.s32 %s12, 1
      %s21 = sadd.s32 %s20, 1
      %p24 = scmp.eq.s32.totalorder %s12, 2
      %p25 = scmp.ne.s32.totalorder %s20, %s22
      %p26 = scmp.eq.s32.totalorder %s12, 0
      %p27 = por %p25, %p26
      %p28 = scmp.ne.s32.totalorder %s20, %s22
      %p29 = scmp.eq.s32.totalorder %s17, 2
      %p30 = por %p28, %p29
      %p31 = scmp.ne.s32.totalorder %s22, %s23
      %p32 = scmp.eq.s32.totalorder %s17, 0
      %p33 = por %p31, %p32
      %p34 = scmp.ne.s32.totalorder %s22, %s23
      %p35 = scmp.eq.s32.totalorder %s18, 2
      %p36 = por %p34, %p35
      %p38 = scmp.ne.s32.totalorder %s23, %s37
      %p39 = scmp.eq.s32.totalorder %s18, 0
      %p40 = por %p38, %p39
      %s42 = sadd.s32 %s41, 1
      %p45 = scmp.eq.s32.totalorder %s12, 2
      %p46 = scmp.ne.s32.totalorder %s41, %s43
      %p47 = scmp.eq.s32.totalorder %s12, 0
      %p48 = por %p46, %p47
      %p49 = scmp.ne.s32.totalorder %s41, %s43
      %p50 = scmp.eq.s32.totalorder %s17, 2
      %p51 = por %p49, %p50
      %p52 = scmp.ne.s32.totalorder %s43, %s44
      %p53 = scmp.eq.s32.totalorder %s17, 0
      %p54 = por %p52, %p53
      %p55 = scmp.ne.s32.totalorder %s43, %s44
      %p56 = scmp.eq.s32.totalorder %s18, 2
      %p57 = por %p55, %p56
      %p59 = scmp.ne.s32.totalorder %s44, %s58
      %p60 = scmp.eq.s32.totalorder %s18, 0
      %p61 = por %p59, %p60
      %s62 = ssub.s32 %s12, %s19
      %p63 = scmp.eq.s32.totalorder %s62, 0
      %s65 = sadd.s32 %s64, 1
      %s66 = scalar_select %p63, %s64, %s65
      %p69 = pneg %p63
      %p70 = scmp.eq.s32.totalorder %s12, 2
      %p71 = por %p69, %p70
      %p72 = scmp.ne.s32.totalorder %s64, %s67
      %p73 = scmp.eq.s32.totalorder %s12, 0
      %p74 = por %p72, %p73
      %p75 = scmp.ne.s32.totalorder %s64, %s67
      %p76 = scmp.eq.s32.totalorder %s17, 2
      %p77 = por %p75, %p76
      %p78 = scmp.ne.s32.totalorder %s67, %s68
      %p79 = scmp.eq.s32.totalorder %s17, 0
      %p80 = por %p78, %p79
      %p81 = scmp.ne.s32.totalorder %s67, %s68
      %p82 = scmp.eq.s32.totalorder %s18, 2
      %p83 = por %p81, %p82
      %p85 = scmp.ne.s32.totalorder %s68, %s84
      %p86 = scmp.eq.s32.totalorder %s18, 0
      %p87 = por %p85, %p86
      %s88 = ssub.s32 %s12, %s19
      %p89 = scmp.eq.s32.totalorder %s88, 0
      %s91 = sadd.s32 %s90, 1
      %s92 = scalar_select %p89, %s90, %s91
      %p95 = pneg %p89
      %p96 = scmp.eq.s32.totalorder %s12, 2
      %p97 = por %p95, %p96
      %p98 = scmp.ne.s32.totalorder %s90, %s93
      %p99 = scmp.eq.s32.totalorder %s12, 0
      %p100 = por %p98, %p99
      %p101 = scmp.ne.s32.totalorder %s90, %s93
      %p102 = scmp.eq.s32.totalorder %s17, 2
      %p103 = por %p101, %p102
      %p104 = scmp.ne.s32.totalorder %s93, %s94
      %p105 = scmp.eq.s32.totalorder %s17, 0
      %p106 = por %p104, %p105
      %p107 = scmp.ne.s32.totalorder %s93, %s94
      %p108 = scmp.eq.s32.totalorder %s18, 2
      %p109 = por %p107, %p108
      %p111 = scmp.ne.s32.totalorder %s94, %s110
      %p112 = scmp.eq.s32.totalorder %s18, 0
      %p113 = por %p111, %p112
      %s114 = ssub.s32 %s12, %s19
      %p115 = scmp.eq.s32.totalorder %s114, 0
      %s117 = sadd.s32 %s116, 1
      %s118 = scalar_select %p115, %s116, %s117
      %p121 = pneg %p115
      %p122 = scmp.eq.s32.totalorder %s12, 2
      %p123 = por %p121, %p122
      %p124 = scmp.ne.s32.totalorder %s116, %s119
      %p125 = scmp.eq.s32.totalorder %s12, 0
      %p126 = por %p124, %p125
      %p127 = scmp.ne.s32.totalorder %s116, %s119
      %p128 = scmp.eq.s32.totalorder %s17, 2
      %p129 = por %p127, %p128
      %p130 = scmp.ne.s32.totalorder %s119, %s120
      %p131 = scmp.eq.s32.totalorder %s17, 0
      %p132 = por %p130, %p131
      %p133 = scmp.ne.s32.totalorder %s119, %s120
      %p134 = scmp.eq.s32.totalorder %s18, 2
      %p135 = por %p133, %p134
      %p137 = scmp.ne.s32.totalorder %s120, %s136
      %p138 = scmp.eq.s32.totalorder %s18, 0
      %p139 = por %p137, %p138
      %s141 = sadd.s32 %s140, 1
      %p144 = scmp.eq.s32.totalorder %s12, 2
      %p145 = scmp.ne.s32.totalorder %s140, %s142
      %p146 = scmp.eq.s32.totalorder %s12, 0
      %p147 = por %p145, %p146
      %p148 = scmp.ne.s32.totalorder %s140, %s142
      %p149 = scmp.eq.s32.totalorder %s17, 2
      %p150 = por %p148, %p149
      %p151 = scmp.ne.s32.totalorder %s142, %s143
      %p152 = scmp.eq.s32.totalorder %s17, 0
      %p153 = por %p151, %p152
      %p154 = scmp.ne.s32.totalorder %s142, %s143
      %p155 = scmp.eq.s32.totalorder %s18, 2
      %p156 = por %p154, %p155
      %p158 = scmp.ne.s32.totalorder %s143, %s157
      %p159 = scmp.eq.s32.totalorder %s18, 0
      %p160 = por %p158, %p159
      %p161 = scmp.le.s32.totalorder 1, %s12
      %p162 = scmp.lt.s32.totalorder %s12, 4
      %p163 = pnand %p161, %p162
      %p164 = pneg %p163
      // Predicated region
      $region9: #{_lambda_.7} parent=5 // pred_check
        _
      $region10: #{_lambda_.7} parent=5 // pred_check_branch
        %166 = sbr.rel (%p163) target = $region12
      $region11: #{_lambda_.7} parent=5 // pred_region
        %s167 = ssub.s32 %s12, 1
        // Predicated region
        $region13: #{_lambda_.7} parent=11 // pred_check
          %p168 = pneg %p33
        $region14: #{_lambda_.7} parent=11 // pred_check_branch
          %170 = sbr.rel (%p168) target = $region16
        $region15: #{_lambda_.7} parent=11 // pred_region
          _
        $region16: #{_lambda_.7} parent=11 // pred_fallthru
          _
        // Predicated region
        $region17: #{_lambda_.7} parent=11 // pred_check
          %p171 = pneg %p54
        $region18: #{_lambda_.7} parent=11 // pred_check_branch
          %173 = sbr.rel (%p171) target = $region20
        $region19: #{_lambda_.7} parent=11 // pred_region
          %s175 = ssub.s32 16, 16
          %176 = vsyncadd [#allocation5], %s175
          %s178 = sshll.u32 [#allocation4], 4
          %s179 = int_to_ptr.vmem [resolvable:$true] %s178
          %181 = dma.hbm_to_vmem [thread:$0]  %s1, 16, %s179, [#allocation5]
        $region20: #{_lambda_.7} parent=11 // pred_fallthru
          _
      $region12: #{_lambda_.7} parent=5 // pred_fallthru
        _
      %p182 = scmp.lt.s32.totalorder %s12, 3
      // Predicated region
      $region21: #{_lambda_.7} parent=5 // pred_check
        %p183 = pneg %p182
      $region22: #{_lambda_.7} parent=5 // pred_check_branch
        %185 = sbr.rel (%p183) target = $region24
      $region23: #{_lambda_.7} parent=5 // pred_region
        // Predicated region
        $region25: #{_lambda_.7} parent=23 // pred_check
          %p186 = pneg %p74
        $region26: #{_lambda_.7} parent=23 // pred_check_branch
          %188 = sbr.rel (%p186) target = $region28
        $region27: #{_lambda_.7} parent=23 // pred_region
          %s189 = sand.u32 %s64, 1
          %s190 = sand.u32 %s64, 1
          %s191 = smul.addr %s190, 64
          %s192 = scalar_lea.vmem [#allocation6], %s191
          %s193 = smul.addr %s12, 4
          %s194 = scalar_lea.vmem %s2, %s193
          // Predicated region
          $region29: #{_lambda_.7} parent=27 // pred_check
            _
          $region30: #{_lambda_.7} parent=27 // pred_check_branch
            %196 = sbr.rel (0) target = $region32
          $region31: #{_lambda_.7} parent=27 // pred_region
            // Predicated region
            $region33: #{_lambda_.7} parent=31 // pred_check
              _
            $region34: #{_lambda_.7} parent=31 // pred_check_branch
              %198 = sbr.rel target = $region36
            $region35: #{_lambda_.7} parent=31 // pred_region
              // Predicated region
              $region48: #{_lambda_.7} parent=35 // pred_check
                _
              $region49: #{_lambda_.7} parent=35 // pred_check_branch
                %243 = sbr.rel (0) target = $region51
              $region50: #{_lambda_.7} parent=35 // pred_region
                loop: start=0, step=1, limit=1
                $region52: #{_lambda_.7} parent=50 // loop_pre_header
                  _
                $region53: #{_lambda_.7} parent=50 // loop_header
                  %s245 = sphi 0, %s249
                  %p246 = scmp.ge.s32.totalorder %s245, 1
                  %s250 = sphi %s194, %s194
                  %s251 = sphi %s192, %s192
                $region54: #{_lambda_.7} parent=50 // loop_header_branch
                  %248 = sbr.rel (%p246) target = $region58
                $region55: #{_lambda_.7} parent=50 // loop_body
                  _
                $region56: #{_lambda_.7} parent=50 // loop_footer
                  %s249 = sadd.s32 1, %s245
                $region57: #{_lambda_.7} parent=50 // loop_footer_branch
                  %244 = sbr.rel target = $region53
                $region58: #{_lambda_.7} parent=50 // loop_exit
                  _
                loop: start=0, step=1, limit=1
                $region59: #{_lambda_.7} parent=50 // loop_pre_header
                  _
                $region60: #{_lambda_.7} parent=50 // loop_header
                  %s254 = sphi 0, %s258
                  %p255 = scmp.ge.s32.totalorder %s254, 1
                  %s259 = sphi %s194, %s194
                  %s260 = sphi %s192, %s192
                $region61: #{_lambda_.7} parent=50 // loop_header_branch
                  %257 = sbr.rel (%p255) target = $region65
                $region62: #{_lambda_.7} parent=50 // loop_body
                  %v261 = vld [vmem:[%s259] sm:$0xf]
                  %262 = vst [vmem:[%s260] sm:$0xf] %v261
                  %v263 = vld [vmem:[%s259 + $0xc] sm:$0xf]
                  %264 = vst [vmem:[%s260 + $0x4] sm:$0xf] %v263
                  %v265 = vld [vmem:[%s259 + $0x18] sm:$0xf]
                  %266 = vst [vmem:[%s260 + $0x8] sm:$0xf] %v265
                  %v267 = vld [vmem:[%s259 + $0x24] sm:$0xf]
                  %268 = vst [vmem:[%s260 + $0xc] sm:$0xf] %v267
                  %v269 = vld [vmem:[%s259 + $0x30] sm:$0xf]
                  %270 = vst [vmem:[%s260 + $0x10] sm:$0xf] %v269
                  %v271 = vld [vmem:[%s259 + $0x3c] sm:$0xf]
                  %272 = vst [vmem:[%s260 + $0x14] sm:$0xf] %v271
                  %v273 = vld [vmem:[%s259 + $0x48] sm:$0xf]
                  %274 = vst [vmem:[%s260 + $0x18] sm:$0xf] %v273
                  %v275 = vld [vmem:[%s259 + $0x54] sm:$0xf]
                  %276 = vst [vmem:[%s260 + $0x1c] sm:$0xf] %v275
                  %v277 = vld [vmem:[%s259 + $0x60] sm:$0xf]
                  %278 = vst [vmem:[%s260 + $0x20] sm:$0xf] %v277
                  %v279 = vld [vmem:[%s259 + $0x6c] sm:$0xf]
                  %280 = vst [vmem:[%s260 + $0x24] sm:$0xf] %v279
                  %v281 = vld [vmem:[%s259 + $0x78] sm:$0xf]
                  %282 = vst [vmem:[%s260 + $0x28] sm:$0xf] %v281
                  %v283 = vld [vmem:[%s259 + $0x84] sm:$0xf]
                  %284 = vst [vmem:[%s260 + $0x2c] sm:$0xf] %v283
                  %v285 = vld [vmem:[%s259 + $0x90] sm:$0xf]
                  %286 = vst [vmem:[%s260 + $0x30] sm:$0xf] %v285
                  %v287 = vld [vmem:[%s259 + $0x9c] sm:$0xf]
                  %288 = vst [vmem:[%s260 + $0x34] sm:$0xf] %v287
                  %v289 = vld [vmem:[%s259 + $0xa8] sm:$0xf]
                  %290 = vst [vmem:[%s260 + $0x38] sm:$0xf] %v289
                  %v291 = vld [vmem:[%s259 + $0xb4] sm:$0xf]
                  %292 = vst [vmem:[%s260 + $0x3c] sm:$0xf] %v291
                $region63: #{_lambda_.7} parent=50 // loop_footer
                  %s258 = sadd.s32 1, %s254
                $region64: #{_lambda_.7} parent=50 // loop_footer_branch
                  %253 = sbr.rel target = $region60
                $region65: #{_lambda_.7} parent=50 // loop_exit
                  _
              $region51: #{_lambda_.7} parent=35 // pred_fallthru
                _
            $region36: #{_lambda_.7} parent=31 // pred_fallthru
              _
            // Predicated region
            $region37: #{_lambda_.7} parent=31 // pred_check
              _
            $region38: #{_lambda_.7} parent=31 // pred_check_branch
              %200 = sbr.rel (0) target = $region40
            $region39: #{_lambda_.7} parent=31 // pred_region
              loop: start=0, step=1, limit=1
              $region41: #{_lambda_.7} parent=39 // loop_pre_header
                _
              $region42: #{_lambda_.7} parent=39 // loop_header
                %s203 = sphi 0, %s207
                %p204 = scmp.ge.s32.totalorder %s203, 1
                %s208 = sphi %s194, %s194
                %s209 = sphi %s192, %s192
              $region43: #{_lambda_.7} parent=39 // loop_header_branch
                %206 = sbr.rel (%p204) target = $region47
              $region44: #{_lambda_.7} parent=39 // loop_body
                %v210 = vld [vmem:[%s208] sm:$0xf]
                %211 = vst [vmem:[%s209] sm:$0xf] %v210
                %v212 = vld [vmem:[%s208 + $0xc] sm:$0xf]
                %213 = vst [vmem:[%s209 + $0x4] sm:$0xf] %v212
                %v214 = vld [vmem:[%s208 + $0x18] sm:$0xf]
                %215 = vst [vmem:[%s209 + $0x8] sm:$0xf] %v214
                %v216 = vld [vmem:[%s208 + $0x24] sm:$0xf]
                %217 = vst [vmem:[%s209 + $0xc] sm:$0xf] %v216
                %v218 = vld [vmem:[%s208 + $0x30] sm:$0xf]
                %219 = vst [vmem:[%s209 + $0x10] sm:$0xf] %v218
                %v220 = vld [vmem:[%s208 + $0x3c] sm:$0xf]
                %221 = vst [vmem:[%s209 + $0x14] sm:$0xf] %v220
                %v222 = vld [vmem:[%s208 + $0x48] sm:$0xf]
                %223 = vst [vmem:[%s209 + $0x18] sm:$0xf] %v222
                %v224 = vld [vmem:[%s208 + $0x54] sm:$0xf]
                %225 = vst [vmem:[%s209 + $0x1c] sm:$0xf] %v224
                %v226 = vld [vmem:[%s208 + $0x60] sm:$0xf]
                %227 = vst [vmem:[%s209 + $0x20] sm:$0xf] %v226
                %v228 = vld [vmem:[%s208 + $0x6c] sm:$0xf]
                %229 = vst [vmem:[%s209 + $0x24] sm:$0xf] %v228
                %v230 = vld [vmem:[%s208 + $0x78] sm:$0xf]
                %231 = vst [vmem:[%s209 + $0x28] sm:$0xf] %v230
                %v232 = vld [vmem:[%s208 + $0x84] sm:$0xf]
                %233 = vst [vmem:[%s209 + $0x2c] sm:$0xf] %v232
                %v234 = vld [vmem:[%s208 + $0x90] sm:$0xf]
                %235 = vst [vmem:[%s209 + $0x30] sm:$0xf] %v234
                %v236 = vld [vmem:[%s208 + $0x9c] sm:$0xf]
                %237 = vst [vmem:[%s209 + $0x34] sm:$0xf] %v236
                %v238 = vld [vmem:[%s208 + $0xa8] sm:$0xf]
                %239 = vst [vmem:[%s209 + $0x38] sm:$0xf] %v238
                %v240 = vld [vmem:[%s208 + $0xb4] sm:$0xf]
                %241 = vst [vmem:[%s209 + $0x3c] sm:$0xf] %v240
              $region45: #{_lambda_.7} parent=39 // loop_footer
                %s207 = sadd.s32 1, %s203
              $region46: #{_lambda_.7} parent=39 // loop_footer_branch
                %202 = sbr.rel target = $region42
              $region47: #{_lambda_.7} parent=39 // loop_exit
                _
            $region40: #{_lambda_.7} parent=31 // pred_fallthru
              _
          $region32: #{_lambda_.7} parent=27 // pred_fallthru
            _
          %293 = vnop
        $region28: #{_lambda_.7} parent=23 // pred_fallthru
          _
        // Predicated region
        $region66: #{_lambda_.7} parent=23 // pred_check
          %p294 = pneg %p100
        $region67: #{_lambda_.7} parent=23 // pred_check_branch
          %296 = sbr.rel (%p294) target = $region69
        $region68: #{_lambda_.7} parent=23 // pred_region
          %s297 = sand.u32 %s90, 1
          %s298 = sand.u32 %s90, 1
          %s299 = smul.addr %s298, 64
          %s300 = scalar_lea.vmem [#allocation7], %s299
          %s301 = smul.addr %s12, 4
          %s302 = scalar_lea.vmem %s3, %s301
          // Predicated region
          $region70: #{_lambda_.7} parent=68 // pred_check
            _
          $region71: #{_lambda_.7} parent=68 // pred_check_branch
            %304 = sbr.rel (0) target = $region73
          $region72: #{_lambda_.7} parent=68 // pred_region
            // Predicated region
            $region74: #{_lambda_.7} parent=72 // pred_check
              _
            $region75: #{_lambda_.7} parent=72 // pred_check_branch
              %306 = sbr.rel target = $region77
            $region76: #{_lambda_.7} parent=72 // pred_region
              // Predicated region
              $region89: #{_lambda_.7} parent=76 // pred_check
                _
              $region90: #{_lambda_.7} parent=76 // pred_check_branch
                %351 = sbr.rel (0) target = $region92
              $region91: #{_lambda_.7} parent=76 // pred_region
                loop: start=0, step=1, limit=1
                $region93: #{_lambda_.7} parent=91 // loop_pre_header
                  _
                $region94: #{_lambda_.7} parent=91 // loop_header
                  %s353 = sphi 0, %s357
                  %p354 = scmp.ge.s32.totalorder %s353, 1
                  %s358 = sphi %s302, %s302
                  %s359 = sphi %s300, %s300
                $region95: #{_lambda_.7} parent=91 // loop_header_branch
                  %356 = sbr.rel (%p354) target = $region99
                $region96: #{_lambda_.7} parent=91 // loop_body
                  _
                $region97: #{_lambda_.7} parent=91 // loop_footer
                  %s357 = sadd.s32 1, %s353
                $region98: #{_lambda_.7} parent=91 // loop_footer_branch
                  %352 = sbr.rel target = $region94
                $region99: #{_lambda_.7} parent=91 // loop_exit
                  _
                loop: start=0, step=1, limit=1
                $region100: #{_lambda_.7} parent=91 // loop_pre_header
                  _
                $region101: #{_lambda_.7} parent=91 // loop_header
                  %s362 = sphi 0, %s366
                  %p363 = scmp.ge.s32.totalorder %s362, 1
                  %s367 = sphi %s302, %s302
                  %s368 = sphi %s300, %s300
                $region102: #{_lambda_.7} parent=91 // loop_header_branch
                  %365 = sbr.rel (%p363) target = $region106
                $region103: #{_lambda_.7} parent=91 // loop_body
                  %v369 = vld [vmem:[%s367] sm:$0xf]
                  %370 = vst [vmem:[%s368] sm:$0xf] %v369
                  %v371 = vld [vmem:[%s367 + $0xc] sm:$0xf]
                  %372 = vst [vmem:[%s368 + $0x4] sm:$0xf] %v371
                  %v373 = vld [vmem:[%s367 + $0x18] sm:$0xf]
                  %374 = vst [vmem:[%s368 + $0x8] sm:$0xf] %v373
                  %v375 = vld [vmem:[%s367 + $0x24] sm:$0xf]
                  %376 = vst [vmem:[%s368 + $0xc] sm:$0xf] %v375
                  %v377 = vld [vmem:[%s367 + $0x30] sm:$0xf]
                  %378 = vst [vmem:[%s368 + $0x10] sm:$0xf] %v377
                  %v379 = vld [vmem:[%s367 + $0x3c] sm:$0xf]
                  %380 = vst [vmem:[%s368 + $0x14] sm:$0xf] %v379
                  %v381 = vld [vmem:[%s367 + $0x48] sm:$0xf]
                  %382 = vst [vmem:[%s368 + $0x18] sm:$0xf] %v381
                  %v383 = vld [vmem:[%s367 + $0x54] sm:$0xf]
                  %384 = vst [vmem:[%s368 + $0x1c] sm:$0xf] %v383
                  %v385 = vld [vmem:[%s367 + $0x60] sm:$0xf]
                  %386 = vst [vmem:[%s368 + $0x20] sm:$0xf] %v385
                  %v387 = vld [vmem:[%s367 + $0x6c] sm:$0xf]
                  %388 = vst [vmem:[%s368 + $0x24] sm:$0xf] %v387
                  %v389 = vld [vmem:[%s367 + $0x78] sm:$0xf]
                  %390 = vst [vmem:[%s368 + $0x28] sm:$0xf] %v389
                  %v391 = vld [vmem:[%s367 + $0x84] sm:$0xf]
                  %392 = vst [vmem:[%s368 + $0x2c] sm:$0xf] %v391
                  %v393 = vld [vmem:[%s367 + $0x90] sm:$0xf]
                  %394 = vst [vmem:[%s368 + $0x30] sm:$0xf] %v393
                  %v395 = vld [vmem:[%s367 + $0x9c] sm:$0xf]
                  %396 = vst [vmem:[%s368 + $0x34] sm:$0xf] %v395
                  %v397 = vld [vmem:[%s367 + $0xa8] sm:$0xf]
                  %398 = vst [vmem:[%s368 + $0x38] sm:$0xf] %v397
                  %v399 = vld [vmem:[%s367 + $0xb4] sm:$0xf]
                  %400 = vst [vmem:[%s368 + $0x3c] sm:$0xf] %v399
                $region104: #{_lambda_.7} parent=91 // loop_footer
                  %s366 = sadd.s32 1, %s362
                $region105: #{_lambda_.7} parent=91 // loop_footer_branch
                  %361 = sbr.rel target = $region101
                $region106: #{_lambda_.7} parent=91 // loop_exit
                  _
              $region92: #{_lambda_.7} parent=76 // pred_fallthru
                _
            $region77: #{_lambda_.7} parent=72 // pred_fallthru
              _
            // Predicated region
            $region78: #{_lambda_.7} parent=72 // pred_check
              _
            $region79: #{_lambda_.7} parent=72 // pred_check_branch
              %308 = sbr.rel (0) target = $region81
            $region80: #{_lambda_.7} parent=72 // pred_region
              loop: start=0, step=1, limit=1
              $region82: #{_lambda_.7} parent=80 // loop_pre_header
                _
              $region83: #{_lambda_.7} parent=80 // loop_header
                %s311 = sphi 0, %s315
                %p312 = scmp.ge.s32.totalorder %s311, 1
                %s316 = sphi %s302, %s302
                %s317 = sphi %s300, %s300
              $region84: #{_lambda_.7} parent=80 // loop_header_branch
                %314 = sbr.rel (%p312) target = $region88
              $region85: #{_lambda_.7} parent=80 // loop_body
                %v318 = vld [vmem:[%s316] sm:$0xf]
                %319 = vst [vmem:[%s317] sm:$0xf] %v318
                %v320 = vld [vmem:[%s316 + $0xc] sm:$0xf]
                %321 = vst [vmem:[%s317 + $0x4] sm:$0xf] %v320
                %v322 = vld [vmem:[%s316 + $0x18] sm:$0xf]
                %323 = vst [vmem:[%s317 + $0x8] sm:$0xf] %v322
                %v324 = vld [vmem:[%s316 + $0x24] sm:$0xf]
                %325 = vst [vmem:[%s317 + $0xc] sm:$0xf] %v324
                %v326 = vld [vmem:[%s316 + $0x30] sm:$0xf]
                %327 = vst [vmem:[%s317 + $0x10] sm:$0xf] %v326
                %v328 = vld [vmem:[%s316 + $0x3c] sm:$0xf]
                %329 = vst [vmem:[%s317 + $0x14] sm:$0xf] %v328
                %v330 = vld [vmem:[%s316 + $0x48] sm:$0xf]
                %331 = vst [vmem:[%s317 + $0x18] sm:$0xf] %v330
                %v332 = vld [vmem:[%s316 + $0x54] sm:$0xf]
                %333 = vst [vmem:[%s317 + $0x1c] sm:$0xf] %v332
                %v334 = vld [vmem:[%s316 + $0x60] sm:$0xf]
                %335 = vst [vmem:[%s317 + $0x20] sm:$0xf] %v334
                %v336 = vld [vmem:[%s316 + $0x6c] sm:$0xf]
                %337 = vst [vmem:[%s317 + $0x24] sm:$0xf] %v336
                %v338 = vld [vmem:[%s316 + $0x78] sm:$0xf]
                %339 = vst [vmem:[%s317 + $0x28] sm:$0xf] %v338
                %v340 = vld [vmem:[%s316 + $0x84] sm:$0xf]
                %341 = vst [vmem:[%s317 + $0x2c] sm:$0xf] %v340
                %v342 = vld [vmem:[%s316 + $0x90] sm:$0xf]
                %343 = vst [vmem:[%s317 + $0x30] sm:$0xf] %v342
                %v344 = vld [vmem:[%s316 + $0x9c] sm:$0xf]
                %345 = vst [vmem:[%s317 + $0x34] sm:$0xf] %v344
                %v346 = vld [vmem:[%s316 + $0xa8] sm:$0xf]
                %347 = vst [vmem:[%s317 + $0x38] sm:$0xf] %v346
                %v348 = vld [vmem:[%s316 + $0xb4] sm:$0xf]
                %349 = vst [vmem:[%s317 + $0x3c] sm:$0xf] %v348
              $region86: #{_lambda_.7} parent=80 // loop_footer
                %s315 = sadd.s32 1, %s311
              $region87: #{_lambda_.7} parent=80 // loop_footer_branch
                %310 = sbr.rel target = $region83
              $region88: #{_lambda_.7} parent=80 // loop_exit
                _
            $region81: #{_lambda_.7} parent=72 // pred_fallthru
              _
          $region73: #{_lambda_.7} parent=68 // pred_fallthru
            _
          %401 = vnop
        $region69: #{_lambda_.7} parent=23 // pred_fallthru
          _
        // Predicated region
        $region107: #{_lambda_.7} parent=23 // pred_check
          %p402 = pneg %p126
        $region108: #{_lambda_.7} parent=23 // pred_check_branch
          %404 = sbr.rel (%p402) target = $region110
        $region109: #{_lambda_.7} parent=23 // pred_region
          %s405 = smul.u32 16, %s12
          %p406 = scmp.lt.s32.totalorder %s405, 47
          %s407 = scalar_select %p406, %s405, 47
          %s408 = smul.addr %s407, 4
          %s409 = scalar_lea.vmem %s4, %s408
          %s410 = smul.u32 16, %s12
        $region110: #{_lambda_.7} parent=23 // pred_fallthru
          _
      $region24: #{_lambda_.7} parent=5 // pred_fallthru
        _
      %p411 = scmp.le.s32.totalorder 1, %s12
      %p412 = scmp.lt.s32.totalorder %s12, 4
      %p413 = pnand %p411, %p412
      %p414 = pneg %p413
      // Predicated region
      $region111: #{_lambda_.7} parent=5 // pred_check
        _
      $region112: #{_lambda_.7} parent=5 // pred_check_branch
        %416 = sbr.rel (%p413) target = $region114
      $region113: #{_lambda_.7} parent=5 // pred_region
        %s417 = ssub.s32 %s12, 1
        // Predicated region
        $region115: #{_lambda_.7} parent=113 // pred_check
          %p418 = pneg %p54
        $region116: #{_lambda_.7} parent=113 // pred_check_branch
          %420 = sbr.rel (%p418) target = $region118
        $region117: #{_lambda_.7} parent=113 // pred_region
          %421 = dma.done [#allocation5], 16
        $region118: #{_lambda_.7} parent=113 // pred_fallthru
          _
        %s422 = sand.u32 %s67, 1
        %s423 = sand.u32 %s67, 1
        %s424 = smul.addr %s423, 64
        %s425 = scalar_lea.vmem [#allocation6], %s424
        // Predicated region
        $region119: #{_lambda_.7} parent=113 // pred_check
          %p426 = pneg %p80
        $region120: #{_lambda_.7} parent=113 // pred_check_branch
          %428 = sbr.rel (%p426) target = $region122
        $region121: #{_lambda_.7} parent=113 // pred_region
          _
        $region122: #{_lambda_.7} parent=113 // pred_fallthru
          _
        %s429 = sand.u32 %s93, 1
        %s430 = sand.u32 %s93, 1
        %s431 = smul.addr %s430, 64
        %s432 = scalar_lea.vmem [#allocation7], %s431
        // Predicated region
        $region123: #{_lambda_.7} parent=113 // pred_check
          %p433 = pneg %p106
        $region124: #{_lambda_.7} parent=113 // pred_check_branch
          %435 = sbr.rel (%p433) target = $region126
        $region125: #{_lambda_.7} parent=113 // pred_region
          _
        $region126: #{_lambda_.7} parent=113 // pred_fallthru
          _
        %p436 = pneg %p33
        %p437 = pneg %p30
        %p438 = pneg %p54
        %p439 = pneg %p51
        %s440 = sand.u32 %s67, 1
        %s441 = sand.u32 %s67, 1
        %s442 = smul.addr %s441, 64
        %s443 = scalar_lea.vmem [#allocation6], %s442
        %p444 = pneg %p80
        %p445 = pneg %p77
        %s446 = sand.u32 %s93, 1
        %s447 = sand.u32 %s93, 1
        %s448 = smul.addr %s447, 64
        %s449 = scalar_lea.vmem [#allocation7], %s448
        %p450 = pneg %p106
        %p451 = pneg %p103
        %s452 = smul.u32 16, %s17
        %p453 = scmp.lt.s32.totalorder %s452, 47
        %s454 = scalar_select %p453, %s452, 47
        %s455 = smul.addr %s454, 4
        %s456 = scalar_lea.vmem %s4, %s455
        %p457 = pneg %p132
        %p458 = pneg %p129
        %p459 = pneg %p153
        %p460 = pneg %p150
        %s461 = smul.u32 16, %s17
        %p462 = scmp.lt.s32.totalorder %s461, 47
        %s463 = scalar_select %p462, %s461, 47
        %s464 = smul.addr %s463, 4
        %s465 = scalar_lea.vmem %s4, %s464
        %s466 = smul.u32 16, %s17
        %p468 = scmp.eq.s32.totalorder %s17, 0
        // Predicated region
        $region127: #{_lambda_.7} parent=113 // pred_check
          %p469 = pneg %p468
        $region128: #{_lambda_.7} parent=113 // pred_check_branch
          %471 = sbr.rel (%p469) target = $region130
        $region129: #{_lambda_.7} parent=113 // pred_region
          %v472 = vld [vmem:[%s0] sm:$0xff]
          %v473 = vmul.f32 %v472, %v472
          %474 = vadd.xlane.f32.xlu0 %v473
          %v475 = vpop.xlane.xlu0 %474
          %v476 = vrcp.pop 128.0
          %v477 = vmul.f32 %v475, %v476
          %v478 = vadd.f32 %v477, 1e-06
          %v479 = vrsqrt.pop %v478
          %v480 = vmul.f32 %v472, %v479
          %v481 = vld [vmem:[#allocation4] sm:$0x1]
          %v483 = vlaneseq
          %v484 = vshrl.u32 %v483, 7
          %v485 = vsub.s32 0, %v484
          %v486 = vrot.slane %v481, %v485
          %v488 = vmul.f32 %v480, %v486
          %489 = vst [vmem:[#allocation2] sm:$0xff] %v488
          %490 = vst [vmem:[#allocation3] sm:$0xff] 0.0
        $region130: #{_lambda_.7} parent=113 // pred_fallthru
          _
        %v491 = vld [vmem:[#allocation2] sm:$0xff]
        %v492 = vpack.c.bf16 %v491, %v491
        %v493 = vld [vmem:[%s425] sm:$0xf]
        %v494 = vld [vmem:[%s425 + $0x4] sm:$0xf]
        %v495 = vld [vmem:[%s425 + $0x8] sm:$0xf]
        %v496 = vld [vmem:[%s425 + $0xc] sm:$0xf]
        %v497 = vld [vmem:[%s425 + $0x10] sm:$0xf]
        %v498 = vld [vmem:[%s425 + $0x14] sm:$0xf]
        %v499 = vld [vmem:[%s425 + $0x18] sm:$0xf]
        %v500 = vld [vmem:[%s425 + $0x1c] sm:$0xf]
        %v501 = vld [vmem:[%s425 + $0x20] sm:$0xf]
        %v502 = vld [vmem:[%s425 + $0x24] sm:$0xf]
        %v503 = vld [vmem:[%s425 + $0x28] sm:$0xf]
        %v504 = vld [vmem:[%s425 + $0x2c] sm:$0xf]
        %v505 = vld [vmem:[%s425 + $0x30] sm:$0xf]
        %v506 = vld [vmem:[%s425 + $0x34] sm:$0xf]
        %v507 = vld [vmem:[%s425 + $0x38] sm:$0xf]
        %v508 = vld [vmem:[%s425 + $0x3c] sm:$0xf]
        %v525 = vunpack.c.l.b16 %v493
        %v526 = vunpack.c.l.b16 %v494
        %v527 = vunpack.c.l.b16 %v495
        %v528 = vunpack.c.l.b16 %v496
        %v529 = vunpack.c.l.b16 %v497
        %v530 = vunpack.c.l.b16 %v498
        %v531 = vunpack.c.l.b16 %v499
        %v532 = vunpack.c.l.b16 %v500
        %v533 = vunpack.c.l.b16 %v501
        %v534 = vunpack.c.l.b16 %v502
        %v535 = vunpack.c.l.b16 %v503
        %v536 = vunpack.c.l.b16 %v504
        %v537 = vunpack.c.l.b16 %v505
        %v538 = vunpack.c.l.b16 %v506
        %v539 = vunpack.c.l.b16 %v507
        %v540 = vunpack.c.l.b16 %v508
        %v541 = vpack.c.b16 %v526, %v525
        %v542 = vpack.c.b16 %v528, %v527
        %v543 = vpack.c.b16 %v530, %v529
        %v544 = vpack.c.b16 %v532, %v531
        %v545 = vpack.c.b16 %v534, %v533
        %v546 = vpack.c.b16 %v536, %v535
        %v547 = vpack.c.b16 %v538, %v537
        %v548 = vpack.c.b16 %v540, %v539
        %557 = vmatprep.subr.bf16.mxu0 0
        %558 = vmatpush1.bf16.msra.mxu0 %v541
        %559 = vmatprep.subr.bf16.mxu0 0
        %560 = vmatpush1.bf16.msra.mxu0 %v542
        %561 = vmatprep.subr.bf16.mxu0 0
        %562 = vmatpush1.bf16.msra.mxu0 %v543
        %563 = vmatprep.subr.bf16.mxu0 0
        %564 = vmatpush1.bf16.msra.mxu0 %v544
        %565 = vmatprep.subr.bf16.mxu0 0
        %566 = vmatpush1.bf16.msra.mxu0 %v545
        %567 = vmatprep.subr.bf16.mxu0 0
        %568 = vmatpush1.bf16.msra.mxu0 %v546
        %569 = vmatprep.subr.bf16.mxu0 0
        %570 = vmatpush1.bf16.msra.mxu0 %v547
        %571 = vmatprep.subr.bf16.mxu0 0
        %572 = vmatpush1.bf16.msra.mxu0 %v548
        %573 = vmatprep.subr.bf16.mxu0 0
        %574 = vmatpush1.bf16.msra.mxu0 0
        %575 = vmatprep.subr.bf16.mxu0 0
        %576 = vmatpush1.bf16.msra.mxu0 0
        %577 = vmatprep.subr.bf16.mxu0 0
        %578 = vmatpush1.bf16.msra.mxu0 0
        %579 = vmatprep.subr.bf16.mxu0 0
        %580 = vmatpush1.bf16.msra.mxu0 0
        %581 = vmatprep.subr.bf16.mxu0 0
        %582 = vmatpush1.bf16.msra.mxu0 0
        %583 = vmatprep.subr.bf16.mxu0 0
        %584 = vmatpush1.bf16.msra.mxu0 0
        %585 = vmatprep.subr.bf16.mxu0 0
        %586 = vmatpush1.bf16.msra.mxu0 0
        %587 = vmatprep.subr.bf16.mxu0 0
        %588 = vmatpush1.bf16.msra.mxu0 0
        %589 = vmatprep.mubr.bf16.mxu0 0
        %590 = vmatmul.mubr.bf16.gmra.mrb[0].mxu0 %v492
        %v591 = vpop.f32.mrb[0].mxu0
        %v592 = vadd.f32 0.0, %v591
        %v593 = vpop.f32.mrb[0].mxu0
        %v594 = vpop.f32.mrb[0].mxu0
        %v595 = vpop.f32.mrb[0].mxu0
        %596 = vdwg.mxu0
        %v597 = vld [vmem:[%s432] sm:$0xf]
        %v598 = vld [vmem:[%s432 + $0x4] sm:$0xf]
        %v599 = vld [vmem:[%s432 + $0x8] sm:$0xf]
        %v600 = vld [vmem:[%s432 + $0xc] sm:$0xf]
        %v601 = vld [vmem:[%s432 + $0x10] sm:$0xf]
        %v602 = vld [vmem:[%s432 + $0x14] sm:$0xf]
        %v603 = vld [vmem:[%s432 + $0x18] sm:$0xf]
        %v604 = vld [vmem:[%s432 + $0x1c] sm:$0xf]
        %v605 = vld [vmem:[%s432 + $0x20] sm:$0xf]
        %v606 = vld [vmem:[%s432 + $0x24] sm:$0xf]
        %v607 = vld [vmem:[%s432 + $0x28] sm:$0xf]
        %v608 = vld [vmem:[%s432 + $0x2c] sm:$0xf]
        %v609 = vld [vmem:[%s432 + $0x30] sm:$0xf]
        %v610 = vld [vmem:[%s432 + $0x34] sm:$0xf]
        %v611 = vld [vmem:[%s432 + $0x38] sm:$0xf]
        %v612 = vld [vmem:[%s432 + $0x3c] sm:$0xf]
        %v629 = vunpack.c.l.b16 %v597
        %v630 = vunpack.c.l.b16 %v598
        %v631 = vunpack.c.l.b16 %v599
        %v632 = vunpack.c.l.b16 %v600
        %v633 = vunpack.c.l.b16 %v601
        %v634 = vunpack.c.l.b16 %v602
        %v635 = vunpack.c.l.b16 %v603
        %v636 = vunpack.c.l.b16 %v604
        %v637 = vunpack.c.l.b16 %v605
        %v638 = vunpack.c.l.b16 %v606
        %v639 = vunpack.c.l.b16 %v607
        %v640 = vunpack.c.l.b16 %v608
        %v641 = vunpack.c.l.b16 %v609
        %v642 = vunpack.c.l.b16 %v610
        %v643 = vunpack.c.l.b16 %v611
        %v644 = vunpack.c.l.b16 %v612
        %v645 = vpack.c.b16 %v630, %v629
        %v646 = vpack.c.b16 %v632, %v631
        %v647 = vpack.c.b16 %v634, %v633
        %v648 = vpack.c.b16 %v636, %v635
        %v649 = vpack.c.b16 %v638, %v637
        %v650 = vpack.c.b16 %v640, %v639
        %v651 = vpack.c.b16 %v642, %v641
        %v652 = vpack.c.b16 %v644, %v643
        %661 = vmatprep.subr.bf16.mxu0 0
        %662 = vmatpush1.bf16.msra.mxu0 %v645
        %663 = vmatprep.subr.bf16.mxu0 0
        %664 = vmatpush1.bf16.msra.mxu0 %v646
        %665 = vmatprep.subr.bf16.mxu0 0
        %666 = vmatpush1.bf16.msra.mxu0 %v647
        %667 = vmatprep.subr.bf16.mxu0 0
        %668 = vmatpush1.bf16.msra.mxu0 %v648
        %669 = vmatprep.subr.bf16.mxu0 0
        %670 = vmatpush1.bf16.msra.mxu0 %v649
        %671 = vmatprep.subr.bf16.mxu0 0
        %672 = vmatpush1.bf16.msra.mxu0 %v650
        %673 = vmatprep.subr.bf16.mxu0 0
        %674 = vmatpush1.bf16.msra.mxu0 %v651
        %675 = vmatprep.subr.bf16.mxu0 0
        %676 = vmatpush1.bf16.msra.mxu0 %v652
        %677 = vmatprep.subr.bf16.mxu0 0
        %678 = vmatpush1.bf16.msra.mxu0 0
        %679 = vmatprep.subr.bf16.mxu0 0
        %680 = vmatpush1.bf16.msra.mxu0 0
        %681 = vmatprep.subr.bf16.mxu0 0
        %682 = vmatpush1.bf16.msra.mxu0 0
        %683 = vmatprep.subr.bf16.mxu0 0
        %684 = vmatpush1.bf16.msra.mxu0 0
        %685 = vmatprep.subr.bf16.mxu0 0
        %686 = vmatpush1.bf16.msra.mxu0 0
        %687 = vmatprep.subr.bf16.mxu0 0
        %688 = vmatpush1.bf16.msra.mxu0 0
        %689 = vmatprep.subr.bf16.mxu0 0
        %690 = vmatpush1.bf16.msra.mxu0 0
        %691 = vmatprep.subr.bf16.mxu0 0
        %692 = vmatpush1.bf16.msra.mxu0 0
        %693 = vmatprep.mubr.bf16.mxu0 0
        %694 = vmatmul.mubr.bf16.gmra.mrb[0].mxu0 %v492
        %v695 = vpop.f32.mrb[0].mxu0
        %v696 = vadd.f32 0.0, %v695
        %v697 = vpop.f32.mrb[0].mxu0
        %v698 = vpop.f32.mrb[0].mxu0
        %v699 = vpop.f32.mrb[0].mxu0
        %700 = vdwg.mxu0
        %v701 = vxor.u32 %v592, 2147483648
        %v702 = vmul.f32 %v701, 1.442695
        %v703 = vpow.pop %v702
        %v704 = vadd.f32 %v703, 1.0
        %v705 = vrcp.pop %v704
        %v706 = vmul.f32 1.0, %v705
        %v707 = vmul.f32 %v592, %v706
        %v708 = vmul.f32 %v707, %v696
        %v709 = vld [vmem:[#allocation3] sm:$0xff]
        %v710 = vpack.c.bf16 %v708, %v708
        %v711 = vld [vmem:[%s465] sm:$0xf]
        %v712 = vld [vmem:[%s465 + $0x4] sm:$0xf]
        %v713 = vld [vmem:[%s465 + $0x8] sm:$0xf]
        %v714 = vld [vmem:[%s465 + $0xc] sm:$0xf]
        %v715 = vld [vmem:[%s465 + $0x10] sm:$0xf]
        %v716 = vld [vmem:[%s465 + $0x14] sm:$0xf]
        %v717 = vld [vmem:[%s465 + $0x18] sm:$0xf]
        %v718 = vld [vmem:[%s465 + $0x1c] sm:$0xf]
        %v719 = vld [vmem:[%s465 + $0x20] sm:$0xf]
        %v720 = vld [vmem:[%s465 + $0x24] sm:$0xf]
        %v721 = vld [vmem:[%s465 + $0x28] sm:$0xf]
        %v722 = vld [vmem:[%s465 + $0x2c] sm:$0xf]
        %v723 = vld [vmem:[%s465 + $0x30] sm:$0xf]
        %v724 = vld [vmem:[%s465 + $0x34] sm:$0xf]
        %v725 = vld [vmem:[%s465 + $0x38] sm:$0xf]
        %v726 = vld [vmem:[%s465 + $0x3c] sm:$0xf]
        %v743 = vunpack.c.l.b16 %v711
        %v744 = vunpack.c.l.b16 %v712
        %v745 = vunpack.c.l.b16 %v713
        %v746 = vunpack.c.l.b16 %v714
        %v747 = vunpack.c.l.b16 %v715
        %v748 = vunpack.c.l.b16 %v716
        %v749 = vunpack.c.l.b16 %v717
        %v750 = vunpack.c.l.b16 %v718
        %v751 = vunpack.c.l.b16 %v719
        %v752 = vunpack.c.l.b16 %v720
        %v753 = vunpack.c.l.b16 %v721
        %v754 = vunpack.c.l.b16 %v722
        %v755 = vunpack.c.l.b16 %v723
        %v756 = vunpack.c.l.b16 %v724
        %v757 = vunpack.c.l.b16 %v725
        %v758 = vunpack.c.l.b16 %v726
        %v759 = vpack.c.b16 %v744, %v743
        %v760 = vpack.c.b16 %v746, %v745
        %v761 = vpack.c.b16 %v748, %v747
        %v762 = vpack.c.b16 %v750, %v749
        %v763 = vpack.c.b16 %v752, %v751
        %v764 = vpack.c.b16 %v754, %v753
        %v765 = vpack.c.b16 %v756, %v755
        %v766 = vpack.c.b16 %v758, %v757
        %775 = vmatprep.subr.bf16.mxu0 0
        %776 = vmatpush1.bf16.msra.mxu0 %v759
        %777 = vmatprep.subr.bf16.mxu0 0
        %778 = vmatpush1.bf16.msra.mxu0 %v760
        %779 = vmatprep.subr.bf16.mxu0 0
        %780 = vmatpush1.bf16.msra.mxu0 %v761
        %781 = vmatprep.subr.bf16.mxu0 0
        %782 = vmatpush1.bf16.msra.mxu0 %v762
        %783 = vmatprep.subr.bf16.mxu0 0
        %784 = vmatpush1.bf16.msra.mxu0 %v763
        %785 = vmatprep.subr.bf16.mxu0 0
        %786 = vmatpush1.bf16.msra.mxu0 %v764
        %787 = vmatprep.subr.bf16.mxu0 0
        %788 = vmatpush1.bf16.msra.mxu0 %v765
        %789 = vmatprep.subr.bf16.mxu0 0
        %790 = vmatpush1.bf16.msra.mxu0 %v766
        %791 = vmatprep.subr.bf16.mxu0 0
        %792 = vmatpush1.bf16.msra.mxu0 0
        %793 = vmatprep.subr.bf16.mxu0 0
        %794 = vmatpush1.bf16.msra.mxu0 0
        %795 = vmatprep.subr.bf16.mxu0 0
        %796 = vmatpush1.bf16.msra.mxu0 0
        %797 = vmatprep.subr.bf16.mxu0 0
        %798 = vmatpush1.bf16.msra.mxu0 0
        %799 = vmatprep.subr.bf16.mxu0 0
        %800 = vmatpush1.bf16.msra.mxu0 0
        %801 = vmatprep.subr.bf16.mxu0 0
        %802 = vmatpush1.bf16.msra.mxu0 0
        %803 = vmatprep.subr.bf16.mxu0 0
        %804 = vmatpush1.bf16.msra.mxu0 0
        %805 = vmatprep.subr.bf16.mxu0 0
        %806 = vmatpush1.bf16.msra.mxu0 0
        %807 = vmatprep.mubr.bf16.mxu0 0
        %808 = vmatmul.mubr.bf16.gmra.mrb[0].mxu0 %v710
        %v809 = vpop.f32.mrb[0].mxu0
        %v810 = vadd.f32 0.0, %v809
        %v811 = vpop.f32.mrb[0].mxu0
        %v812 = vpop.f32.mrb[0].mxu0
        %v813 = vpop.f32.mrb[0].mxu0
        %814 = vdwg.mxu0
        %v815 = vadd.f32 %v709, %v810
        %816 = vst [vmem:[#allocation3] sm:$0xff] %v815
        %p817 = scmp.eq.s32.totalorder %s17, 2
        // Predicated region
        $region131: #{_lambda_.7} parent=113 // pred_check
          %p818 = pneg %p817
        $region132: #{_lambda_.7} parent=113 // pred_check_branch
          %820 = sbr.rel (%p818) target = $region134
        $region133: #{_lambda_.7} parent=113 // pred_region
          %v821 = vld [vmem:[%s0] sm:$0xff]
          %v822 = vld [vmem:[#allocation3] sm:$0xff]
          %v823 = vmul.f32 %v822, 0.7
          %v824 = vadd.f32 %v821, %v823
          %825 = vst [vmem:[%s5] sm:$0xff] %v824
        $region134: #{_lambda_.7} parent=113 // pred_fallthru
          _
        // Predicated region
        $region135: #{_lambda_.7} parent=113 // pred_check
          %p826 = pneg %p150
        $region136: #{_lambda_.7} parent=113 // pred_check_branch
          %828 = sbr.rel (%p826) target = $region138
        $region137: #{_lambda_.7} parent=113 // pred_region
          _
        $region138: #{_lambda_.7} parent=113 // pred_fallthru
          _
        // Predicated region
        $region139: #{_lambda_.7} parent=113 // pred_check
          %p829 = pneg %p150
        $region140: #{_lambda_.7} parent=113 // pred_check_branch
          %831 = sbr.rel (%p829) target = $region142
        $region141: #{_lambda_.7} parent=113 // pred_region
          _
        $region142: #{_lambda_.7} parent=113 // pred_fallthru
          _
      $region114: #{_lambda_.7} parent=5 // pred_fallthru
        _
      %p832 = scmp.le.s32.totalorder 2, %s12
      // Predicated region
      $region143: #{_lambda_.7} parent=5 // pred_check
        %p833 = pneg %p832
      $region144: #{_lambda_.7} parent=5 // pred_check_branch
        %835 = sbr.rel (%p833) target = $region146
      $region145: #{_lambda_.7} parent=5 // pred_region
        %s836 = ssub.s32 %s12, 2
      $region146: #{_lambda_.7} parent=5 // pred_fallthru
        _
    $region6: #{_lambda_.7} parent=1 // loop_footer
      %s16 = sadd.s32 1, %s12
    $region7: #{_lambda_.7} parent=1 // loop_footer_branch
      %11 = sbr.rel target = $region3
    $region8: #{_lambda_.7} parent=1 // loop_exit
      _
    %837 = vsyncpa [#allocation5], 1
    %s838 = scalar_lea.sflag [#allocation5], 1
    %839 = vsyncpa %s838, 1

// kernel: _lambda_.8
$region0: #{_lambda_.8}
  #allocation0 [shape = 'u32[]', space=smem, size = 0x4, offset = 0x4, fixed_abs, tag = 'smem constant byte address 0x4 - core index']
  #allocation1 [shape = 'u32[144,128]{1,0:T(1,128)}', space=vmem, size = 0x12000, scoped, tag = 'internal scratch']
  #allocation2 [shape = 'f32[8,128]{1,0:T(8,128)}', space=vmem, size = 0x1000, scoped, tag = 'scratch operand']
  #allocation3 [shape = 'f32[8,128]{1,0:T(8,128)}', space=vmem, size = 0x1000, scoped, tag = 'scratch operand']
  %s0 = inlined_call_operand.vmem [shape: f32[8,128], index: 0, kind: input, shape index: {}]
  %s1 = inlined_call_operand.vmem [shape: f32[1,128], index: 1, kind: input, shape index: {}]
  %s2 = inlined_call_operand.vmem [shape: bf16[1,128,128], index: 2, kind: input, shape index: {}]
  %s3 = inlined_call_operand.vmem [shape: bf16[1,128,64], index: 3, kind: input, shape index: {}]
  %s4 = inlined_call_operand.vmem [shape: bf16[1,128,64], index: 4, kind: input, shape index: {}]
  %s5 = inlined_call_operand.vmem [shape: bf16[1,128,128], index: 5, kind: input, shape index: {}]
  %s6 = inlined_call_operand.vmem [shape: f32[8,32], index: 6, kind: input, shape index: {}]
  %s7 = inlined_call_operand.vmem [shape: f32[8,32], index: 7, kind: input, shape index: {}]
  %s8 = inlined_call_operand.vmem [shape: f32[8,128], index: 8, kind: output, shape index: {}]
  %s9 = sld [smem:[#allocation0]]
  $region50: #{_lambda_.8} parent=0
    _
  %s11 = ssub.s32 1, %s9
  %s12 = scalar_select 0, %s11, %s9
  // Predicated region
  $region2: #{_lambda_.8} parent=0 // pred_check
    _
  $region3: #{_lambda_.8} parent=0 // pred_check_branch
    %14 = sbr.rel (0) target = $region5
  $region4: #{_lambda_.8} parent=0 // pred_region
    _
  $region5: #{_lambda_.8} parent=0 // pred_fallthru
    _
  // Predicated region
  $region6: #{_lambda_.8} parent=0 // pred_check
    _
  $region7: #{_lambda_.8} parent=0 // pred_check_branch
    %16 = sbr.rel (0) target = $region9
  $region8: #{_lambda_.8} parent=0 // pred_region
    _
  $region9: #{_lambda_.8} parent=0 // pred_fallthru
    _
  // Predicated region
  $region10: #{_lambda_.8} parent=0 // pred_check
    _
  $region11: #{_lambda_.8} parent=0 // pred_check_branch
    %18 = sbr.rel (0) target = $region13
  $region12: #{_lambda_.8} parent=0 // pred_region
    _
  $region13: #{_lambda_.8} parent=0 // pred_fallthru
    _
  // Predicated region
  $region14: #{_lambda_.8} parent=0 // pred_check
    _
  $region15: #{_lambda_.8} parent=0 // pred_check_branch
    %20 = sbr.rel (0) target = $region17
  $region16: #{_lambda_.8} parent=0 // pred_region
    _
  $region17: #{_lambda_.8} parent=0 // pred_fallthru
    _
  // Predicated region
  $region18: #{_lambda_.8} parent=0 // pred_check
    _
  $region19: #{_lambda_.8} parent=0 // pred_check_branch
    %22 = sbr.rel (0) target = $region21
  $region20: #{_lambda_.8} parent=0 // pred_region
    _
  $region21: #{_lambda_.8} parent=0 // pred_fallthru
    _
  // Predicated region
  $region22: #{_lambda_.8} parent=0 // pred_check
    _
  $region23: #{_lambda_.8} parent=0 // pred_check_branch
    %24 = sbr.rel (0) target = $region25
  $region24: #{_lambda_.8} parent=0 // pred_region
    _
  $region25: #{_lambda_.8} parent=0 // pred_fallthru
    _
  // Predicated region
  $region26: #{_lambda_.8} parent=0 // pred_check
    _
  $region27: #{_lambda_.8} parent=0 // pred_check_branch
    %26 = sbr.rel (0) target = $region29
  $region28: #{_lambda_.8} parent=0 // pred_region
    _
  $region29: #{_lambda_.8} parent=0 // pred_fallthru
    _
  // Predicated region
  $region30: #{_lambda_.8} parent=0 // pred_check
    _
  $region31: #{_lambda_.8} parent=0 // pred_check_branch
    %28 = sbr.rel (0) target = $region33
  $region32: #{_lambda_.8} parent=0 // pred_region
    _
  $region33: #{_lambda_.8} parent=0 // pred_fallthru
    _
  %p30 = scmp.eq.s32.totalorder 0, 0
  // Predicated region
  $region34: #{_lambda_.8} parent=0 // pred_check
    %p31 = pneg %p30
  $region35: #{_lambda_.8} parent=0 // pred_check_branch
    %33 = sbr.rel (%p31) target = $region37
  $region36: #{_lambda_.8} parent=0 // pred_region
    %v34 = vld [vmem:[%s0] sm:$0xff]
    %v35 = vmul.f32 %v34, %v34
    %36 = vadd.xlane.f32.xlu0 %v35
    %v37 = vpop.xlane.xlu0 %36
    %v38 = vrcp.pop 128.0
    %v39 = vmul.f32 %v37, %v38
    %v40 = vadd.f32 %v39, 1e-06
    %v41 = vrsqrt.pop %v40
    %v42 = vmul.f32 %v34, %v41
    %v43 = vld [vmem:[%s1] sm:$0x1]
    %v45 = vlaneseq
    %v46 = vshrl.u32 %v45, 7
    %v47 = vsub.s32 0, %v46
    %v48 = vrot.slane %v43, %v47
    %v50 = vmul.f32 %v42, %v48
    %51 = vst [vmem:[#allocation2] sm:$0xff] %v50
    %52 = vst [vmem:[#allocation3] sm:$0xff] 0.0
  $region37: #{_lambda_.8} parent=0 // pred_fallthru
    _
  %v53 = vld [vmem:[#allocation2] sm:$0xff]
  %v54 = vpack.c.bf16 %v53, %v53
  %v55 = vld [vmem:[%s6] sm:$0xff]
  %v56 = vld [vmem:[%s7] sm:$0xff]
  %v57 = vld [vmem:[%s2] sm:$0xf]
  %v58 = vld [vmem:[%s2 + $0x4] sm:$0xf]
  %v59 = vld [vmem:[%s2 + $0x8] sm:$0xf]
  %v60 = vld [vmem:[%s2 + $0xc] sm:$0xf]
  %v61 = vld [vmem:[%s2 + $0x10] sm:$0xf]
  %v62 = vld [vmem:[%s2 + $0x14] sm:$0xf]
  %v63 = vld [vmem:[%s2 + $0x18] sm:$0xf]
  %v64 = vld [vmem:[%s2 + $0x1c] sm:$0xf]
  %v65 = vld [vmem:[%s2 + $0x20] sm:$0xf]
  %v66 = vld [vmem:[%s2 + $0x24] sm:$0xf]
  %v67 = vld [vmem:[%s2 + $0x28] sm:$0xf]
  %v68 = vld [vmem:[%s2 + $0x2c] sm:$0xf]
  %v69 = vld [vmem:[%s2 + $0x30] sm:$0xf]
  %v70 = vld [vmem:[%s2 + $0x34] sm:$0xf]
  %v71 = vld [vmem:[%s2 + $0x38] sm:$0xf]
  %v72 = vld [vmem:[%s2 + $0x3c] sm:$0xf]
  %v89 = vunpack.c.l.b16 %v57
  %v90 = vunpack.c.l.b16 %v58
  %v91 = vunpack.c.l.b16 %v59
  %v92 = vunpack.c.l.b16 %v60
  %v93 = vunpack.c.l.b16 %v61
  %v94 = vunpack.c.l.b16 %v62
  %v95 = vunpack.c.l.b16 %v63
  %v96 = vunpack.c.l.b16 %v64
  %v97 = vunpack.c.l.b16 %v65
  %v98 = vunpack.c.l.b16 %v66
  %v99 = vunpack.c.l.b16 %v67
  %v100 = vunpack.c.l.b16 %v68
  %v101 = vunpack.c.l.b16 %v69
  %v102 = vunpack.c.l.b16 %v70
  %v103 = vunpack.c.l.b16 %v71
  %v104 = vunpack.c.l.b16 %v72
  %v105 = vpack.c.b16 %v90, %v89
  %v106 = vpack.c.b16 %v92, %v91
  %v107 = vpack.c.b16 %v94, %v93
  %v108 = vpack.c.b16 %v96, %v95
  %v109 = vpack.c.b16 %v98, %v97
  %v110 = vpack.c.b16 %v100, %v99
  %v111 = vpack.c.b16 %v102, %v101
  %v112 = vpack.c.b16 %v104, %v103
  %121 = vmatprep.subr.bf16.mxu0 0
  %122 = vmatpush1.bf16.msra.mxu0 %v105
  %123 = vmatprep.subr.bf16.mxu0 0
  %124 = vmatpush1.bf16.msra.mxu0 %v106
  %125 = vmatprep.subr.bf16.mxu0 0
  %126 = vmatpush1.bf16.msra.mxu0 %v107
  %127 = vmatprep.subr.bf16.mxu0 0
  %128 = vmatpush1.bf16.msra.mxu0 %v108
  %129 = vmatprep.subr.bf16.mxu0 0
  %130 = vmatpush1.bf16.msra.mxu0 %v109
  %131 = vmatprep.subr.bf16.mxu0 0
  %132 = vmatpush1.bf16.msra.mxu0 %v110
  %133 = vmatprep.subr.bf16.mxu0 0
  %134 = vmatpush1.bf16.msra.mxu0 %v111
  %135 = vmatprep.subr.bf16.mxu0 0
  %136 = vmatpush1.bf16.msra.mxu0 %v112
  %137 = vmatprep.subr.bf16.mxu0 0
  %138 = vmatpush1.bf16.msra.mxu0 0
  %139 = vmatprep.subr.bf16.mxu0 0
  %140 = vmatpush1.bf16.msra.mxu0 0
  %141 = vmatprep.subr.bf16.mxu0 0
  %142 = vmatpush1.bf16.msra.mxu0 0
  %143 = vmatprep.subr.bf16.mxu0 0
  %144 = vmatpush1.bf16.msra.mxu0 0
  %145 = vmatprep.subr.bf16.mxu0 0
  %146 = vmatpush1.bf16.msra.mxu0 0
  %147 = vmatprep.subr.bf16.mxu0 0
  %148 = vmatpush1.bf16.msra.mxu0 0
  %149 = vmatprep.subr.bf16.mxu0 0
  %150 = vmatpush1.bf16.msra.mxu0 0
  %151 = vmatprep.subr.bf16.mxu0 0
  %152 = vmatpush1.bf16.msra.mxu0 0
  %153 = vmatprep.mubr.bf16.mxu0 0
  %154 = vmatmul.mubr.bf16.gmra.mrb[0].mxu0 %v54
  %v155 = vpop.f32.mrb[0].mxu0
  %v156 = vadd.f32 0.0, %v155
  %v157 = vpop.f32.mrb[0].mxu0
  %v158 = vpop.f32.mrb[0].mxu0
  %v159 = vpop.f32.mrb[0].mxu0
  %160 = vdwg.mxu0
  %v161 = vmul.f32 %v156, 0.17677669
  %v162 = vld [vmem:[%s3] sm:$0xf]
  %v163 = vld [vmem:[%s3 + $0x4] sm:$0xf]
  %v164 = vld [vmem:[%s3 + $0x8] sm:$0xf]
  %v165 = vld [vmem:[%s3 + $0xc] sm:$0xf]
  %v166 = vld [vmem:[%s3 + $0x10] sm:$0xf]
  %v167 = vld [vmem:[%s3 + $0x14] sm:$0xf]
  %v168 = vld [vmem:[%s3 + $0x18] sm:$0xf]
  %v169 = vld [vmem:[%s3 + $0x1c] sm:$0xf]
  %v170 = vld [vmem:[%s3 + $0x20] sm:$0xf]
  %v171 = vld [vmem:[%s3 + $0x24] sm:$0xf]
  %v172 = vld [vmem:[%s3 + $0x28] sm:$0xf]
  %v173 = vld [vmem:[%s3 + $0x2c] sm:$0xf]
  %v174 = vld [vmem:[%s3 + $0x30] sm:$0xf]
  %v175 = vld [vmem:[%s3 + $0x34] sm:$0xf]
  %v176 = vld [vmem:[%s3 + $0x38] sm:$0xf]
  %v177 = vld [vmem:[%s3 + $0x3c] sm:$0xf]
  %v194 = vunpack.c.l.b16 %v162
  %v195 = vunpack.c.l.b16 %v163
  %v196 = vunpack.c.l.b16 %v164
  %v197 = vunpack.c.l.b16 %v165
  %v198 = vunpack.c.l.b16 %v166
  %v199 = vunpack.c.l.b16 %v167
  %v200 = vunpack.c.l.b16 %v168
  %v201 = vunpack.c.l.b16 %v169
  %v202 = vunpack.c.l.b16 %v170
  %v203 = vunpack.c.l.b16 %v171
  %v204 = vunpack.c.l.b16 %v172
  %v205 = vunpack.c.l.b16 %v173
  %v206 = vunpack.c.l.b16 %v174
  %v207 = vunpack.c.l.b16 %v175
  %v208 = vunpack.c.l.b16 %v176
  %v209 = vunpack.c.l.b16 %v177
  %v210 = vpack.c.b16 %v195, %v194
  %v211 = vpack.c.b16 %v197, %v196
  %v212 = vpack.c.b16 %v199, %v198
  %v213 = vpack.c.b16 %v201, %v200
  %v214 = vpack.c.b16 %v203, %v202
  %v215 = vpack.c.b16 %v205, %v204
  %v216 = vpack.c.b16 %v207, %v206
  %v217 = vpack.c.b16 %v209, %v208
  %226 = vmatprep.subr.bf16.mxu0 0
  %227 = vmatpush1.bf16.msra.mxu0 %v210
  %228 = vmatprep.subr.bf16.mxu0 0
  %229 = vmatpush1.bf16.msra.mxu0 %v211
  %230 = vmatprep.subr.bf16.mxu0 0
  %231 = vmatpush1.bf16.msra.mxu0 %v212
  %232 = vmatprep.subr.bf16.mxu0 0
  %233 = vmatpush1.bf16.msra.mxu0 %v213
  %234 = vmatprep.subr.bf16.mxu0 0
  %235 = vmatpush1.bf16.msra.mxu0 %v214
  %236 = vmatprep.subr.bf16.mxu0 0
  %237 = vmatpush1.bf16.msra.mxu0 %v215
  %238 = vmatprep.subr.bf16.mxu0 0
  %239 = vmatpush1.bf16.msra.mxu0 %v216
  %240 = vmatprep.subr.bf16.mxu0 0
  %241 = vmatpush1.bf16.msra.mxu0 %v217
  %242 = vmatprep.subr.bf16.mxu0 0
  %243 = vmatpush1.bf16.msra.mxu0 0
  %244 = vmatprep.subr.bf16.mxu0 0
  %245 = vmatpush1.bf16.msra.mxu0 0
  %246 = vmatprep.subr.bf16.mxu0 0
  %247 = vmatpush1.bf16.msra.mxu0 0
  %248 = vmatprep.subr.bf16.mxu0 0
  %249 = vmatpush1.bf16.msra.mxu0 0
  %250 = vmatprep.subr.bf16.mxu0 0
  %251 = vmatpush1.bf16.msra.mxu0 0
  %252 = vmatprep.subr.bf16.mxu0 0
  %253 = vmatpush1.bf16.msra.mxu0 0
  %254 = vmatprep.subr.bf16.mxu0 0
  %255 = vmatpush1.bf16.msra.mxu0 0
  %256 = vmatprep.subr.bf16.mxu0 0
  %257 = vmatpush1.bf16.msra.mxu0 0
  %258 = vmatprep.mubr.bf16.mxu0 0
  %259 = vmatmul.mubr.bf16.gmra.mrb[0].mxu0 %v54
  %v260 = vpop.f32.mrb[0].mxu0
  %v261 = vadd.f32 0.0, %v260
  %v262 = vpop.f32.mrb[0].mxu0
  %v263 = vpop.f32.mrb[0].mxu0
  %v264 = vpop.f32.mrb[0].mxu0
  %265 = vdwg.mxu0
  %v266 = vld [vmem:[%s4] sm:$0xf]
  %v267 = vld [vmem:[%s4 + $0x4] sm:$0xf]
  %v268 = vld [vmem:[%s4 + $0x8] sm:$0xf]
  %v269 = vld [vmem:[%s4 + $0xc] sm:$0xf]
  %v270 = vld [vmem:[%s4 + $0x10] sm:$0xf]
  %v271 = vld [vmem:[%s4 + $0x14] sm:$0xf]
  %v272 = vld [vmem:[%s4 + $0x18] sm:$0xf]
  %v273 = vld [vmem:[%s4 + $0x1c] sm:$0xf]
  %v274 = vld [vmem:[%s4 + $0x20] sm:$0xf]
  %v275 = vld [vmem:[%s4 + $0x24] sm:$0xf]
  %v276 = vld [vmem:[%s4 + $0x28] sm:$0xf]
  %v277 = vld [vmem:[%s4 + $0x2c] sm:$0xf]
  %v278 = vld [vmem:[%s4 + $0x30] sm:$0xf]
  %v279 = vld [vmem:[%s4 + $0x34] sm:$0xf]
  %v280 = vld [vmem:[%s4 + $0x38] sm:$0xf]
  %v281 = vld [vmem:[%s4 + $0x3c] sm:$0xf]
  %v298 = vunpack.c.l.b16 %v266
  %v299 = vunpack.c.l.b16 %v267
  %v300 = vunpack.c.l.b16 %v268
  %v301 = vunpack.c.l.b16 %v269
  %v302 = vunpack.c.l.b16 %v270
  %v303 = vunpack.c.l.b16 %v271
  %v304 = vunpack.c.l.b16 %v272
  %v305 = vunpack.c.l.b16 %v273
  %v306 = vunpack.c.l.b16 %v274
  %v307 = vunpack.c.l.b16 %v275
  %v308 = vunpack.c.l.b16 %v276
  %v309 = vunpack.c.l.b16 %v277
  %v310 = vunpack.c.l.b16 %v278
  %v311 = vunpack.c.l.b16 %v279
  %v312 = vunpack.c.l.b16 %v280
  %v313 = vunpack.c.l.b16 %v281
  %v314 = vpack.c.b16 %v299, %v298
  %v315 = vpack.c.b16 %v301, %v300
  %v316 = vpack.c.b16 %v303, %v302
  %v317 = vpack.c.b16 %v305, %v304
  %v318 = vpack.c.b16 %v307, %v306
  %v319 = vpack.c.b16 %v309, %v308
  %v320 = vpack.c.b16 %v311, %v310
  %v321 = vpack.c.b16 %v313, %v312
  %330 = vmatprep.subr.bf16.mxu0 0
  %331 = vmatpush1.bf16.msra.mxu0 %v314
  %332 = vmatprep.subr.bf16.mxu0 0
  %333 = vmatpush1.bf16.msra.mxu0 %v315
  %334 = vmatprep.subr.bf16.mxu0 0
  %335 = vmatpush1.bf16.msra.mxu0 %v316
  %336 = vmatprep.subr.bf16.mxu0 0
  %337 = vmatpush1.bf16.msra.mxu0 %v317
  %338 = vmatprep.subr.bf16.mxu0 0
  %339 = vmatpush1.bf16.msra.mxu0 %v318
  %340 = vmatprep.subr.bf16.mxu0 0
  %341 = vmatpush1.bf16.msra.mxu0 %v319
  %342 = vmatprep.subr.bf16.mxu0 0
  %343 = vmatpush1.bf16.msra.mxu0 %v320
  %344 = vmatprep.subr.bf16.mxu0 0
  %345 = vmatpush1.bf16.msra.mxu0 %v321
  %346 = vmatprep.subr.bf16.mxu0 0
  %347 = vmatpush1.bf16.msra.mxu0 0
  %348 = vmatprep.subr.bf16.mxu0 0
  %349 = vmatpush1.bf16.msra.mxu0 0
  %350 = vmatprep.subr.bf16.mxu0 0
  %351 = vmatpush1.bf16.msra.mxu0 0
  %352 = vmatprep.subr.bf16.mxu0 0
  %353 = vmatpush1.bf16.msra.mxu0 0
  %354 = vmatprep.subr.bf16.mxu0 0
  %355 = vmatpush1.bf16.msra.mxu0 0
  %356 = vmatprep.subr.bf16.mxu0 0
  %357 = vmatpush1.bf16.msra.mxu0 0
  %358 = vmatprep.subr.bf16.mxu0 0
  %359 = vmatpush1.bf16.msra.mxu0 0
  %360 = vmatprep.subr.bf16.mxu0 0
  %361 = vmatpush1.bf16.msra.mxu0 0
  %362 = vmatprep.mubr.bf16.mxu0 0
  %363 = vmatmul.mubr.bf16.gmra.mrb[0].mxu0 %v54
  %v364 = vpop.f32.mrb[0].mxu0
  %v365 = vadd.f32 0.0, %v364
  %v366 = vpop.f32.mrb[0].mxu0
  %v367 = vpop.f32.mrb[0].mxu0
  %v368 = vpop.f32.mrb[0].mxu0
  %369 = vdwg.mxu0
  %v370 = vlaneseq
  %v371 = vshrl.u32 %v370, 7
  %v372 = vlaneseq
  %v373 = vand.u32 %v372, 127
  %vm374 = vcmp.le.s32.totalorder %v373, %v371
  %376 = vrot.lane.b32.xlu0 %v261, 112
  %v377 = vpop.permute.xlu0 %376
  %379 = vrot.lane.b32.xlu0 %v261, 16
  %v380 = vpop.permute.xlu0 %379
  %vm382 = vcmask 130048
  %v383 = vsel %vm382, %v377, %v380
  %v384 = vmul.f32 %v261, %v55
  %v385 = vmul.f32 %v383, %v56
  %v386 = vadd.f32 %v384, %v385
  %v387 = vpack.c.bf16 %v386, %v386
  %v388 = vpack.c.bf16 %v365, %v365
  %390 = vrot.lane.b32.xlu0 %v161, 112
  %v391 = vpop.permute.xlu0 %390
  %393 = vrot.lane.b32.xlu0 %v161, 16
  %v394 = vpop.permute.xlu0 %393
  %v396 = vsel %vm382, %v391, %v394
  %v397 = vmul.f32 %v161, %v55
  %v398 = vmul.f32 %v396, %v56
  %v399 = vadd.f32 %v397, %v398
  %v400 = vpack.c.bf16 %v399, %v399
  %vm401 = vcmask 261120
  %v403 = vsel %vm401, %v400, 0
  %v406 = vsel %vm401, %v387, 0
  %408 = vmatprep.subr.bf16.mxu0 0
  %409 = vmatpush1.bf16.xpose.msra.mxu0 %v406
  %410 = vmatprep.subr.bf16.mxu0 0
  %411 = vmatpush1.bf16.xpose.msra.mxu0 0
  %412 = vmatprep.subr.bf16.mxu0 0
  %413 = vmatpush1.bf16.xpose.msra.mxu0 0
  %414 = vmatprep.subr.bf16.mxu0 0
  %415 = vmatpush1.bf16.xpose.msra.mxu0 0
  %416 = vmatprep.subr.bf16.mxu0 0
  %417 = vmatpush1.bf16.xpose.msra.mxu0 0
  %418 = vmatprep.subr.bf16.mxu0 0
  %419 = vmatpush1.bf16.xpose.msra.mxu0 0
  %420 = vmatprep.subr.bf16.mxu0 0
  %421 = vmatpush1.bf16.xpose.msra.mxu0 0
  %422 = vmatprep.subr.bf16.mxu0 0
  %423 = vmatpush1.bf16.xpose.msra.mxu0 0
  %424 = vmatprep.subr.bf16.mxu0 0
  %425 = vmatpush1.bf16.xpose.msra.mxu0 0
  %426 = vmatprep.subr.bf16.mxu0 0
  %427 = vmatpush1.bf16.xpose.msra.mxu0 0
  %428 = vmatprep.subr.bf16.mxu0 0
  %429 = vmatpush1.bf16.xpose.msra.mxu0 0
  %430 = vmatprep.subr.bf16.mxu0 0
  %431 = vmatpush1.bf16.xpose.msra.mxu0 0
  %432 = vmatprep.subr.bf16.mxu0 0
  %433 = vmatpush1.bf16.xpose.msra.mxu0 0
  %434 = vmatprep.subr.bf16.mxu0 0
  %435 = vmatpush1.bf16.xpose.msra.mxu0 0
  %436 = vmatprep.subr.bf16.mxu0 0
  %437 = vmatpush1.bf16.xpose.msra.mxu0 0
  %438 = vmatprep.subr.bf16.mxu0 0
  %439 = vmatpush1.bf16.xpose.msra.mxu0 0
  %440 = vmatprep.mubr.bf16.mxu0 0
  %441 = vmatmul.mubr.bf16.gmra.mrb[0].mxu0 %v403
  %v442 = vpop.f32.mrb[0].mxu0
  %v443 = vadd.f32 0.0, %v442
  %v444 = vpop.f32.mrb[0].mxu0
  %v445 = vpop.f32.mrb[0].mxu0
  %v446 = vpop.f32.mrb[0].mxu0
  %447 = vdwg.mxu0
  %v448 = vsel %vm374, %v443, -1e+30
  %vm449 = vcmask 64512
  %v450 = vsel %vm449, %v448, -inf
  %451 = vmax.xlane.f32.xlu0 %v450
  %v452 = vpop.xlane.xlu0 %451
  %v453 = vsub.f32 %v448, %v452
  %v454 = vmul.f32 %v453, 1.442695
  %v455 = vpow.pop %v454
  %v456 = vsel %vm449, %v455, 0.0
  %457 = vadd.xlane.f32.xlu0 %v456
  %v458 = vpop.xlane.xlu0 %457
  %v459 = vrcp.pop %v458
  %v460 = vmul.f32 %v455, %v459
  %v461 = vpack.c.bf16 %v460, %v460
  %v463 = vsel %vm449, %v461, 0
  %vm465 = vcmask 1043456
  %v467 = vsel %vm465, %v388, 0
  %469 = vmatprep.subr.bf16.mxu0 0
  %470 = vmatpush1.bf16.msra.mxu0 %v467
  %471 = vmatprep.subr.bf16.mxu0 0
  %472 = vmatpush1.bf16.msra.mxu0 0
  %473 = vmatprep.subr.bf16.mxu0 0
  %474 = vmatpush1.bf16.msra.mxu0 0
  %475 = vmatprep.subr.bf16.mxu0 0
  %476 = vmatpush1.bf16.msra.mxu0 0
  %477 = vmatprep.subr.bf16.mxu0 0
  %478 = vmatpush1.bf16.msra.mxu0 0
  %479 = vmatprep.subr.bf16.mxu0 0
  %480 = vmatpush1.bf16.msra.mxu0 0
  %481 = vmatprep.subr.bf16.mxu0 0
  %482 = vmatpush1.bf16.msra.mxu0 0
  %483 = vmatprep.subr.bf16.mxu0 0
  %484 = vmatpush1.bf16.msra.mxu0 0
  %485 = vmatprep.subr.bf16.mxu0 0
  %486 = vmatpush1.bf16.msra.mxu0 0
  %487 = vmatprep.subr.bf16.mxu0 0
  %488 = vmatpush1.bf16.msra.mxu0 0
  %489 = vmatprep.subr.bf16.mxu0 0
  %490 = vmatpush1.bf16.msra.mxu0 0
  %491 = vmatprep.subr.bf16.mxu0 0
  %492 = vmatpush1.bf16.msra.mxu0 0
  %493 = vmatprep.subr.bf16.mxu0 0
  %494 = vmatpush1.bf16.msra.mxu0 0
  %495 = vmatprep.subr.bf16.mxu0 0
  %496 = vmatpush1.bf16.msra.mxu0 0
  %497 = vmatprep.subr.bf16.mxu0 0
  %498 = vmatpush1.bf16.msra.mxu0 0
  %499 = vmatprep.subr.bf16.mxu0 0
  %500 = vmatpush1.bf16.msra.mxu0 0
  %501 = vmatprep.mubr.bf16.mxu0 0
  %502 = vmatmul.mubr.bf16.gmra.mrb[0].mxu0 %v463
  %v503 = vpop.f32.mrb[0].mxu0
  %v504 = vadd.f32 0.0, %v503
  %v505 = vpop.f32.mrb[0].mxu0
  %v506 = vpop.f32.mrb[0].mxu0
  %v507 = vpop.f32.mrb[0].mxu0
  %508 = vdwg.mxu0
  %509 = vrot.lane.b32.xlu0 %v161, 80
  %v510 = vpop.permute.xlu0 %509
  %v512 = vsel %vm382, %v510, %v391
  %514 = vrot.lane.b32.xlu0 %v55, 32
  %v515 = vpop.permute.xlu0 %514
  %v517 = vmul.f32 %v161, %v515
  %v518 = vmul.f32 %v512, %v56
  %520 = vrot.lane.b32.xlu0 %v518, 32
  %v521 = vpop.permute.xlu0 %520
  %v523 = vadd.f32 %v517, %v521
  %v524 = vpack.c.bf16 %v523, %v523
  %526 = vrot.lane.b32.xlu0 %v524, 96
  %v527 = vpop.permute.xlu0 %526
  %v529 = vsel %vm401, %v527, 0
  %531 = vmatprep.subr.bf16.mxu0 0
  %532 = vmatpush1.bf16.xpose.msra.mxu0 %v406
  %533 = vmatprep.subr.bf16.mxu0 0
  %534 = vmatpush1.bf16.xpose.msra.mxu0 0
  %535 = vmatprep.subr.bf16.mxu0 0
  %536 = vmatpush1.bf16.xpose.msra.mxu0 0
  %537 = vmatprep.subr.bf16.mxu0 0
  %538 = vmatpush1.bf16.xpose.msra.mxu0 0
  %539 = vmatprep.subr.bf16.mxu0 0
  %540 = vmatpush1.bf16.xpose.msra.mxu0 0
  %541 = vmatprep.subr.bf16.mxu0 0
  %542 = vmatpush1.bf16.xpose.msra.mxu0 0
  %543 = vmatprep.subr.bf16.mxu0 0
  %544 = vmatpush1.bf16.xpose.msra.mxu0 0
  %545 = vmatprep.subr.bf16.mxu0 0
  %546 = vmatpush1.bf16.xpose.msra.mxu0 0
  %547 = vmatprep.subr.bf16.mxu0 0
  %548 = vmatpush1.bf16.xpose.msra.mxu0 0
  %549 = vmatprep.subr.bf16.mxu0 0
  %550 = vmatpush1.bf16.xpose.msra.mxu0 0
  %551 = vmatprep.subr.bf16.mxu0 0
  %552 = vmatpush1.bf16.xpose.msra.mxu0 0
  %553 = vmatprep.subr.bf16.mxu0 0
  %554 = vmatpush1.bf16.xpose.msra.mxu0 0
  %555 = vmatprep.subr.bf16.mxu0 0
  %556 = vmatpush1.bf16.xpose.msra.mxu0 0
  %557 = vmatprep.subr.bf16.mxu0 0
  %558 = vmatpush1.bf16.xpose.msra.mxu0 0
  %559 = vmatprep.subr.bf16.mxu0 0
  %560 = vmatpush1.bf16.xpose.msra.mxu0 0
  %561 = vmatprep.subr.bf16.mxu0 0
  %562 = vmatpush1.bf16.xpose.msra.mxu0 0
  %563 = vmatprep.mubr.bf16.mxu0 0
  %564 = vmatmul.mubr.bf16.gmra.mrb[0].mxu0 %v529
  %v565 = vpop.f32.mrb[0].mxu0
  %v566 = vadd.f32 0.0, %v565
  %v567 = vpop.f32.mrb[0].mxu0
  %v568 = vpop.f32.mrb[0].mxu0
  %v569 = vpop.f32.mrb[0].mxu0
  %570 = vdwg.mxu0
  %v571 = vsel %vm374, %v566, -1e+30
  %v572 = vsel %vm449, %v571, -inf
  %573 = vmax.xlane.f32.xlu0 %v572
  %v574 = vpop.xlane.xlu0 %573
  %v575 = vsub.f32 %v571, %v574
  %v576 = vmul.f32 %v575, 1.442695
  %v577 = vpow.pop %v576
  %v578 = vsel %vm449, %v577, 0.0
  %579 = vadd.xlane.f32.xlu0 %v578
  %v580 = vpop.xlane.xlu0 %579
  %v581 = vrcp.pop %v580
  %v582 = vmul.f32 %v577, %v581
  %v583 = vpack.c.bf16 %v582, %v582
  %v585 = vsel %vm449, %v583, 0
  %587 = vmatprep.subr.bf16.mxu0 0
  %588 = vmatpush1.bf16.msra.mxu0 %v467
  %589 = vmatprep.subr.bf16.mxu0 0
  %590 = vmatpush1.bf16.msra.mxu0 0
  %591 = vmatprep.subr.bf16.mxu0 0
  %592 = vmatpush1.bf16.msra.mxu0 0
  %593 = vmatprep.subr.bf16.mxu0 0
  %594 = vmatpush1.bf16.msra.mxu0 0
  %595 = vmatprep.subr.bf16.mxu0 0
  %596 = vmatpush1.bf16.msra.mxu0 0
  %597 = vmatprep.subr.bf16.mxu0 0
  %598 = vmatpush1.bf16.msra.mxu0 0
  %599 = vmatprep.subr.bf16.mxu0 0
  %600 = vmatpush1.bf16.msra.mxu0 0
  %601 = vmatprep.subr.bf16.mxu0 0
  %602 = vmatpush1.bf16.msra.mxu0 0
  %603 = vmatprep.subr.bf16.mxu0 0
  %604 = vmatpush1.bf16.msra.mxu0 0
  %605 = vmatprep.subr.bf16.mxu0 0
  %606 = vmatpush1.bf16.msra.mxu0 0
  %607 = vmatprep.subr.bf16.mxu0 0
  %608 = vmatpush1.bf16.msra.mxu0 0
  %609 = vmatprep.subr.bf16.mxu0 0
  %610 = vmatpush1.bf16.msra.mxu0 0
  %611 = vmatprep.subr.bf16.mxu0 0
  %612 = vmatpush1.bf16.msra.mxu0 0
  %613 = vmatprep.subr.bf16.mxu0 0
  %614 = vmatpush1.bf16.msra.mxu0 0
  %615 = vmatprep.subr.bf16.mxu0 0
  %616 = vmatpush1.bf16.msra.mxu0 0
  %617 = vmatprep.subr.bf16.mxu0 0
  %618 = vmatpush1.bf16.msra.mxu0 0
  %619 = vmatprep.mubr.bf16.mxu0 0
  %620 = vmatmul.mubr.bf16.gmra.mrb[0].mxu0 %v585
  %v621 = vpop.f32.mrb[0].mxu0
  %v622 = vadd.f32 0.0, %v621
  %v623 = vpop.f32.mrb[0].mxu0
  %v624 = vpop.f32.mrb[0].mxu0
  %v625 = vpop.f32.mrb[0].mxu0
  %626 = vdwg.mxu0
  %627 = vrot.lane.b32.xlu0 %v261, 80
  %v628 = vpop.permute.xlu0 %627
  %v630 = vsel %vm382, %v628, %v377
  %v631 = vmul.f32 %v261, %v515
  %v632 = vmul.f32 %v630, %v56
  %634 = vrot.lane.b32.xlu0 %v632, 32
  %v635 = vpop.permute.xlu0 %634
  %v637 = vadd.f32 %v631, %v635
  %v638 = vpack.c.bf16 %v637, %v637
  %639 = vrot.lane.b32.xlu0 %v161, 48
  %v640 = vpop.permute.xlu0 %639
  %v642 = vsel %vm382, %v640, %v510
  %643 = vrot.lane.b32.xlu0 %v55, 64
  %v644 = vpop.permute.xlu0 %643
  %v646 = vmul.f32 %v161, %v644
  %v647 = vmul.f32 %v642, %v56
  %649 = vrot.lane.b32.xlu0 %v647, 64
  %v650 = vpop.permute.xlu0 %649
  %v652 = vadd.f32 %v646, %v650
  %v653 = vpack.c.bf16 %v652, %v652
  %655 = vrot.lane.b32.xlu0 %v653, 64
  %v656 = vpop.permute.xlu0 %655
  %658 = vrot.lane.b32.xlu0 %v638, 96
  %v659 = vpop.permute.xlu0 %658
  %v661 = vsel %vm401, %v656, 0
  %v664 = vsel %vm401, %v659, 0
  %666 = vmatprep.subr.bf16.mxu0 0
  %667 = vmatpush1.bf16.xpose.msra.mxu0 %v664
  %668 = vmatprep.subr.bf16.mxu0 0
  %669 = vmatpush1.bf16.xpose.msra.mxu0 0
  %670 = vmatprep.subr.bf16.mxu0 0
  %671 = vmatpush1.bf16.xpose.msra.mxu0 0
  %672 = vmatprep.subr.bf16.mxu0 0
  %673 = vmatpush1.bf16.xpose.msra.mxu0 0
  %674 = vmatprep.subr.bf16.mxu0 0
  %675 = vmatpush1.bf16.xpose.msra.mxu0 0
  %676 = vmatprep.subr.bf16.mxu0 0
  %677 = vmatpush1.bf16.xpose.msra.mxu0 0
  %678 = vmatprep.subr.bf16.mxu0 0
  %679 = vmatpush1.bf16.xpose.msra.mxu0 0
  %680 = vmatprep.subr.bf16.mxu0 0
  %681 = vmatpush1.bf16.xpose.msra.mxu0 0
  %682 = vmatprep.subr.bf16.mxu0 0
  %683 = vmatpush1.bf16.xpose.msra.mxu0 0
  %684 = vmatprep.subr.bf16.mxu0 0
  %685 = vmatpush1.bf16.xpose.msra.mxu0 0
  %686 = vmatprep.subr.bf16.mxu0 0
  %687 = vmatpush1.bf16.xpose.msra.mxu0 0
  %688 = vmatprep.subr.bf16.mxu0 0
  %689 = vmatpush1.bf16.xpose.msra.mxu0 0
  %690 = vmatprep.subr.bf16.mxu0 0
  %691 = vmatpush1.bf16.xpose.msra.mxu0 0
  %692 = vmatprep.subr.bf16.mxu0 0
  %693 = vmatpush1.bf16.xpose.msra.mxu0 0
  %694 = vmatprep.subr.bf16.mxu0 0
  %695 = vmatpush1.bf16.xpose.msra.mxu0 0
  %696 = vmatprep.subr.bf16.mxu0 0
  %697 = vmatpush1.bf16.xpose.msra.mxu0 0
  %698 = vmatprep.mubr.bf16.mxu0 0
  %699 = vmatmul.mubr.bf16.gmra.mrb[0].mxu0 %v661
  %v700 = vpop.f32.mrb[0].mxu0
  %v701 = vadd.f32 0.0, %v700
  %v702 = vpop.f32.mrb[0].mxu0
  %v703 = vpop.f32.mrb[0].mxu0
  %v704 = vpop.f32.mrb[0].mxu0
  %705 = vdwg.mxu0
  %v706 = vsel %vm374, %v701, -1e+30
  %v707 = vsel %vm449, %v706, -inf
  %708 = vmax.xlane.f32.xlu0 %v707
  %v709 = vpop.xlane.xlu0 %708
  %v710 = vsub.f32 %v706, %v709
  %v711 = vmul.f32 %v710, 1.442695
  %v712 = vpow.pop %v711
  %v713 = vsel %vm449, %v712, 0.0
  %714 = vadd.xlane.f32.xlu0 %v713
  %v715 = vpop.xlane.xlu0 %714
  %v716 = vrcp.pop %v715
  %v717 = vmul.f32 %v712, %v716
  %v718 = vpack.c.bf16 %v717, %v717
  %720 = vrot.lane.b32.xlu0 %v388, 96
  %v721 = vpop.permute.xlu0 %720
  %v723 = vsel %vm449, %v718, 0
  %v726 = vsel %vm465, %v721, 0
  %728 = vmatprep.subr.bf16.mxu0 0
  %729 = vmatpush1.bf16.msra.mxu0 %v726
  %730 = vmatprep.subr.bf16.mxu0 0
  %731 = vmatpush1.bf16.msra.mxu0 0
  %732 = vmatprep.subr.bf16.mxu0 0
  %733 = vmatpush1.bf16.msra.mxu0 0
  %734 = vmatprep.subr.bf16.mxu0 0
  %735 = vmatpush1.bf16.msra.mxu0 0
  %736 = vmatprep.subr.bf16.mxu0 0
  %737 = vmatpush1.bf16.msra.mxu0 0
  %738 = vmatprep.subr.bf16.mxu0 0
  %739 = vmatpush1.bf16.msra.mxu0 0
  %740 = vmatprep.subr.bf16.mxu0 0
  %741 = vmatpush1.bf16.msra.mxu0 0
  %742 = vmatprep.subr.bf16.mxu0 0
  %743 = vmatpush1.bf16.msra.mxu0 0
  %744 = vmatprep.subr.bf16.mxu0 0
  %745 = vmatpush1.bf16.msra.mxu0 0
  %746 = vmatprep.subr.bf16.mxu0 0
  %747 = vmatpush1.bf16.msra.mxu0 0
  %748 = vmatprep.subr.bf16.mxu0 0
  %749 = vmatpush1.bf16.msra.mxu0 0
  %750 = vmatprep.subr.bf16.mxu0 0
  %751 = vmatpush1.bf16.msra.mxu0 0
  %752 = vmatprep.subr.bf16.mxu0 0
  %753 = vmatpush1.bf16.msra.mxu0 0
  %754 = vmatprep.subr.bf16.mxu0 0
  %755 = vmatpush1.bf16.msra.mxu0 0
  %756 = vmatprep.subr.bf16.mxu0 0
  %757 = vmatpush1.bf16.msra.mxu0 0
  %758 = vmatprep.subr.bf16.mxu0 0
  %759 = vmatpush1.bf16.msra.mxu0 0
  %760 = vmatprep.mubr.bf16.mxu0 0
  %761 = vmatmul.mubr.bf16.gmra.mrb[0].mxu0 %v723
  %v762 = vpop.f32.mrb[0].mxu0
  %v763 = vadd.f32 0.0, %v762
  %v764 = vpop.f32.mrb[0].mxu0
  %v765 = vpop.f32.mrb[0].mxu0
  %v766 = vpop.f32.mrb[0].mxu0
  %767 = vdwg.mxu0
  %v768 = vsel %vm382, %v394, %v640
  %769 = vrot.lane.b32.xlu0 %v55, 96
  %v770 = vpop.permute.xlu0 %769
  %v772 = vmul.f32 %v161, %v770
  %v773 = vmul.f32 %v768, %v56
  %775 = vrot.lane.b32.xlu0 %v773, 96
  %v776 = vpop.permute.xlu0 %775
  %v778 = vadd.f32 %v772, %v776
  %v779 = vpack.c.bf16 %v778, %v778
  %781 = vrot.lane.b32.xlu0 %v779, 32
  %v782 = vpop.permute.xlu0 %781
  %v784 = vsel %vm401, %v782, 0
  %786 = vmatprep.subr.bf16.mxu0 0
  %787 = vmatpush1.bf16.xpose.msra.mxu0 %v664
  %788 = vmatprep.subr.bf16.mxu0 0
  %789 = vmatpush1.bf16.xpose.msra.mxu0 0
  %790 = vmatprep.subr.bf16.mxu0 0
  %791 = vmatpush1.bf16.xpose.msra.mxu0 0
  %792 = vmatprep.subr.bf16.mxu0 0
  %793 = vmatpush1.bf16.xpose.msra.mxu0 0
  %794 = vmatprep.subr.bf16.mxu0 0
  %795 = vmatpush1.bf16.xpose.msra.mxu0 0
  %796 = vmatprep.subr.bf16.mxu0 0
  %797 = vmatpush1.bf16.xpose.msra.mxu0 0
  %798 = vmatprep.subr.bf16.mxu0 0
  %799 = vmatpush1.bf16.xpose.msra.mxu0 0
  %800 = vmatprep.subr.bf16.mxu0 0
  %801 = vmatpush1.bf16.xpose.msra.mxu0 0
  %802 = vmatprep.subr.bf16.mxu0 0
  %803 = vmatpush1.bf16.xpose.msra.mxu0 0
  %804 = vmatprep.subr.bf16.mxu0 0
  %805 = vmatpush1.bf16.xpose.msra.mxu0 0
  %806 = vmatprep.subr.bf16.mxu0 0
  %807 = vmatpush1.bf16.xpose.msra.mxu0 0
  %808 = vmatprep.subr.bf16.mxu0 0
  %809 = vmatpush1.bf16.xpose.msra.mxu0 0
  %810 = vmatprep.subr.bf16.mxu0 0
  %811 = vmatpush1.bf16.xpose.msra.mxu0 0
  %812 = vmatprep.subr.bf16.mxu0 0
  %813 = vmatpush1.bf16.xpose.msra.mxu0 0
  %814 = vmatprep.subr.bf16.mxu0 0
  %815 = vmatpush1.bf16.xpose.msra.mxu0 0
  %816 = vmatprep.subr.bf16.mxu0 0
  %817 = vmatpush1.bf16.xpose.msra.mxu0 0
  %818 = vmatprep.mubr.bf16.mxu0 0
  %819 = vmatmul.mubr.bf16.gmra.mrb[0].mxu0 %v784
  %v820 = vpop.f32.mrb[0].mxu0
  %v821 = vadd.f32 0.0, %v820
  %v822 = vpop.f32.mrb[0].mxu0
  %v823 = vpop.f32.mrb[0].mxu0
  %v824 = vpop.f32.mrb[0].mxu0
  %825 = vdwg.mxu0
  %v826 = vsel %vm374, %v821, -1e+30
  %v827 = vsel %vm449, %v826, -inf
  %828 = vmax.xlane.f32.xlu0 %v827
  %v829 = vpop.xlane.xlu0 %828
  %v830 = vsub.f32 %v826, %v829
  %v831 = vmul.f32 %v830, 1.442695
  %v832 = vpow.pop %v831
  %v833 = vsel %vm449, %v832, 0.0
  %834 = vadd.xlane.f32.xlu0 %v833
  %v835 = vpop.xlane.xlu0 %834
  %v836 = vrcp.pop %v835
  %v837 = vmul.f32 %v832, %v836
  %v838 = vpack.c.bf16 %v837, %v837
  %v840 = vsel %vm449, %v838, 0
  %842 = vmatprep.subr.bf16.mxu0 0
  %843 = vmatpush1.bf16.msra.mxu0 %v726
  %844 = vmatprep.subr.bf16.mxu0 0
  %845 = vmatpush1.bf16.msra.mxu0 0
  %846 = vmatprep.subr.bf16.mxu0 0
  %847 = vmatpush1.bf16.msra.mxu0 0
  %848 = vmatprep.subr.bf16.mxu0 0
  %849 = vmatpush1.bf16.msra.mxu0 0
  %850 = vmatprep.subr.bf16.mxu0 0
  %851 = vmatpush1.bf16.msra.mxu0 0
  %852 = vmatprep.subr.bf16.mxu0 0
  %853 = vmatpush1.bf16.msra.mxu0 0
  %854 = vmatprep.subr.bf16.mxu0 0
  %855 = vmatpush1.bf16.msra.mxu0 0
  %856 = vmatprep.subr.bf16.mxu0 0
  %857 = vmatpush1.bf16.msra.mxu0 0
  %858 = vmatprep.subr.bf16.mxu0 0
  %859 = vmatpush1.bf16.msra.mxu0 0
  %860 = vmatprep.subr.bf16.mxu0 0
  %861 = vmatpush1.bf16.msra.mxu0 0
  %862 = vmatprep.subr.bf16.mxu0 0
  %863 = vmatpush1.bf16.msra.mxu0 0
  %864 = vmatprep.subr.bf16.mxu0 0
  %865 = vmatpush1.bf16.msra.mxu0 0
  %866 = vmatprep.subr.bf16.mxu0 0
  %867 = vmatpush1.bf16.msra.mxu0 0
  %868 = vmatprep.subr.bf16.mxu0 0
  %869 = vmatpush1.bf16.msra.mxu0 0
  %870 = vmatprep.subr.bf16.mxu0 0
  %871 = vmatpush1.bf16.msra.mxu0 0
  %872 = vmatprep.subr.bf16.mxu0 0
  %873 = vmatpush1.bf16.msra.mxu0 0
  %874 = vmatprep.mubr.bf16.mxu0 0
  %875 = vmatmul.mubr.bf16.gmra.mrb[0].mxu0 %v840
  %v876 = vpop.f32.mrb[0].mxu0
  %v877 = vadd.f32 0.0, %v876
  %v878 = vpop.f32.mrb[0].mxu0
  %v879 = vpop.f32.mrb[0].mxu0
  %v880 = vpop.f32.mrb[0].mxu0
  %881 = vdwg.mxu0
  %883 = vrot.lane.b32.xlu0 %v622, 32
  %v884 = vpop.permute.xlu0 %883
  %887 = vrot.lane.b32.xlu0 %v763, 64
  %v888 = vpop.permute.xlu0 %887
  %891 = vrot.lane.b32.xlu0 %v877, 96
  %v892 = vpop.permute.xlu0 %891
  %v894 = vsel %vm401, %v504, %v884
  %vm895 = vcmask 523264
  %v896 = vsel %vm895, %v894, %v888
  %vm897 = vcmask 785408
  %v898 = vsel %vm897, %v896, %v892
  %v899 = vpack.c.bf16 %v898, %v898
  %v900 = vld [vmem:[#allocation3] sm:$0xff]
  %v901 = vld [vmem:[%s5] sm:$0xf]
  %v902 = vld [vmem:[%s5 + $0x4] sm:$0xf]
  %v903 = vld [vmem:[%s5 + $0x8] sm:$0xf]
  %v904 = vld [vmem:[%s5 + $0xc] sm:$0xf]
  %v905 = vld [vmem:[%s5 + $0x10] sm:$0xf]
  %v906 = vld [vmem:[%s5 + $0x14] sm:$0xf]
  %v907 = vld [vmem:[%s5 + $0x18] sm:$0xf]
  %v908 = vld [vmem:[%s5 + $0x1c] sm:$0xf]
  %v909 = vld [vmem:[%s5 + $0x20] sm:$0xf]
  %v910 = vld [vmem:[%s5 + $0x24] sm:$0xf]
  %v911 = vld [vmem:[%s5 + $0x28] sm:$0xf]
  %v912 = vld [vmem:[%s5 + $0x2c] sm:$0xf]
  %v913 = vld [vmem:[%s5 + $0x30] sm:$0xf]
  %v914 = vld [vmem:[%s5 + $0x34] sm:$0xf]
  %v915 = vld [vmem:[%s5 + $0x38] sm:$0xf]
  %v916 = vld [vmem:[%s5 + $0x3c] sm:$0xf]
  %v933 = vunpack.c.l.b16 %v901
  %v934 = vunpack.c.l.b16 %v902
  %v935 = vunpack.c.l.b16 %v903
  %v936 = vunpack.c.l.b16 %v904
  %v937 = vunpack.c.l.b16 %v905
  %v938 = vunpack.c.l.b16 %v906
  %v939 = vunpack.c.l.b16 %v907
  %v940 = vunpack.c.l.b16 %v908
  %v941 = vunpack.c.l.b16 %v909
  %v942 = vunpack.c.l.b16 %v910
  %v943 = vunpack.c.l.b16 %v911
  %v944 = vunpack.c.l.b16 %v912
  %v945 = vunpack.c.l.b16 %v913
  %v946 = vunpack.c.l.b16 %v914
  %v947 = vunpack.c.l.b16 %v915
  %v948 = vunpack.c.l.b16 %v916
  %v949 = vpack.c.b16 %v934, %v933
  %v950 = vpack.c.b16 %v936, %v935
  %v951 = vpack.c.b16 %v938, %v937
  %v952 = vpack.c.b16 %v940, %v939
  %v953 = vpack.c.b16 %v942, %v941
  %v954 = vpack.c.b16 %v944, %v943
  %v955 = vpack.c.b16 %v946, %v945
  %v956 = vpack.c.b16 %v948, %v947
  %965 = vmatprep.subr.bf16.mxu0 0
  %966 = vmatpush1.bf16.msra.mxu0 %v949
  %967 = vmatprep.subr.bf16.mxu0 0
  %968 = vmatpush1.bf16.msra.mxu0 %v950
  %969 = vmatprep.subr.bf16.mxu0 0
  %970 = vmatpush1.bf16.msra.mxu0 %v951
  %971 = vmatprep.subr.bf16.mxu0 0
  %972 = vmatpush1.bf16.msra.mxu0 %v952
  %973 = vmatprep.subr.bf16.mxu0 0
  %974 = vmatpush1.bf16.msra.mxu0 %v953
  %975 = vmatprep.subr.bf16.mxu0 0
  %976 = vmatpush1.bf16.msra.mxu0 %v954
  %977 = vmatprep.subr.bf16.mxu0 0
  %978 = vmatpush1.bf16.msra.mxu0 %v955
  %979 = vmatprep.subr.bf16.mxu0 0
  %980 = vmatpush1.bf16.msra.mxu0 %v956
  %981 = vmatprep.subr.bf16.mxu0 0
  %982 = vmatpush1.bf16.msra.mxu0 0
  %983 = vmatprep.subr.bf16.mxu0 0
  %984 = vmatpush1.bf16.msra.mxu0 0
  %985 = vmatprep.subr.bf16.mxu0 0
  %986 = vmatpush1.bf16.msra.mxu0 0
  %987 = vmatprep.subr.bf16.mxu0 0
  %988 = vmatpush1.bf16.msra.mxu0 0
  %989 = vmatprep.subr.bf16.mxu0 0
  %990 = vmatpush1.bf16.msra.mxu0 0
  %991 = vmatprep.subr.bf16.mxu0 0
  %992 = vmatpush1.bf16.msra.mxu0 0
  %993 = vmatprep.subr.bf16.mxu0 0
  %994 = vmatpush1.bf16.msra.mxu0 0
  %995 = vmatprep.subr.bf16.mxu0 0
  %996 = vmatpush1.bf16.msra.mxu0 0
  %997 = vmatprep.mubr.bf16.mxu0 0
  %998 = vmatmul.mubr.bf16.gmra.mrb[0].mxu0 %v899
  %v999 = vpop.f32.mrb[0].mxu0
  %v1000 = vadd.f32 0.0, %v999
  %v1001 = vpop.f32.mrb[0].mxu0
  %v1002 = vpop.f32.mrb[0].mxu0
  %v1003 = vpop.f32.mrb[0].mxu0
  %1004 = vdwg.mxu0
  %v1005 = vadd.f32 %v900, %v1000
  %1006 = vst [vmem:[#allocation3] sm:$0xff] %v1005
  // Predicated region
  $region38: #{_lambda_.8} parent=0 // pred_check
    %p1007 = pneg %p30
  $region39: #{_lambda_.8} parent=0 // pred_check_branch
    %1009 = sbr.rel (%p1007) target = $region41
  $region40: #{_lambda_.8} parent=0 // pred_region
    %v1010 = vld [vmem:[%s0] sm:$0xff]
    %v1011 = vld [vmem:[#allocation3] sm:$0xff]
    %v1012 = vmul.f32 %v1011, 0.7
    %v1013 = vadd.f32 %v1010, %v1012
    %1014 = vst [vmem:[%s8] sm:$0xff] %v1013
  $region41: #{_lambda_.8} parent=0 // pred_fallthru
    _
  // Predicated region
  $region42: #{_lambda_.8} parent=0 // pred_check
    _
  $region43: #{_lambda_.8} parent=0 // pred_check_branch
    %1016 = sbr.rel (0) target = $region45
  $region44: #{_lambda_.8} parent=0 // pred_region
    _
  $region45: #{_lambda_.8} parent=0 // pred_fallthru
    _
  // Predicated region
  $region46: #{_lambda_.8} parent=0 // pred_check
    _
  $region47: #{_lambda_.8} parent=0 // pred_check_branch
    %1018 = sbr.rel (0) target = $region49
  $region48: #{_lambda_.8} parent=0 // pred_region
    _
  $region49: #{_lambda_.8} parent=0 // pred_fallthru
    _

// kernel: _lambda_.6
$region0: #{_lambda_.6}
  #allocation0 [shape = 'u32[]', space=smem, size = 0x4, offset = 0x4, fixed_abs, tag = 'smem constant byte address 0x4 - core index']
  #allocation1 [shape = 'u32[144,128]{1,0:T(1,128)}', space=vmem, size = 0x12000, scoped, tag = 'internal scratch']
  #allocation2 [shape = 'f32[8,128]{1,0:T(8,128)}', space=vmem, size = 0x1000, scoped, tag = 'scratch operand']
  #allocation3 [shape = 'f32[8,128]{1,0:T(8,128)}', space=vmem, size = 0x1000, scoped, tag = 'scratch operand']
  %s0 = inlined_call_operand.vmem [shape: f32[8,128], index: 0, kind: input, shape index: {}]
  %s1 = inlined_call_operand.hbm [shape: f32[1,128], index: 1, kind: input, shape index: {}]
  %s2 = inlined_call_operand.vmem [shape: bf16[1,128,128], index: 2, kind: input, shape index: {}]
  %s3 = inlined_call_operand.vmem [shape: bf16[1,128,64], index: 3, kind: input, shape index: {}]
  %s4 = inlined_call_operand.vmem [shape: bf16[1,128,64], index: 4, kind: input, shape index: {}]
  %s5 = inlined_call_operand.vmem [shape: bf16[1,128,128], index: 5, kind: input, shape index: {}]
  %s6 = inlined_call_operand.vmem [shape: f32[8,32], index: 6, kind: input, shape index: {}]
  %s7 = inlined_call_operand.vmem [shape: f32[8,32], index: 7, kind: input, shape index: {}]
  %s8 = inlined_call_operand.vmem [shape: f32[8,128], index: 8, kind: output, shape index: {}]
  %s9 = sld [smem:[#allocation0]]
  $region54: #{_lambda_.6} parent=0
    _
  %s11 = ssub.s32 1, %s9
  %s12 = scalar_select 0, %s11, %s9
  $region1: #{_lambda_.6} parent=0
    #allocation4 [shape = 'u8[512]{0}', space=vmem, size = 0x400, scoped, tag = 'input window, operand 1, single buffered']
    #allocation5 [shape = 's32[1]{0}', space=sflag, size = 0x4, scoped, tag = 'scoped memory for _lambda_.6']
    %13 = vsyncpa [#allocation5], 0
    // Predicated region
    $region2: #{_lambda_.6} parent=1 // pred_check
      _
    $region3: #{_lambda_.6} parent=1 // pred_check_branch
      %15 = sbr.rel (0) target = $region5
    $region4: #{_lambda_.6} parent=1 // pred_region
      _
    $region5: #{_lambda_.6} parent=1 // pred_fallthru
      _
    // Predicated region
    $region6: #{_lambda_.6} parent=1 // pred_check
      _
    $region7: #{_lambda_.6} parent=1 // pred_check_branch
      %17 = sbr.rel (0) target = $region9
    $region8: #{_lambda_.6} parent=1 // pred_region
      %s19 = ssub.s32 16, 16
      %20 = vsyncadd [#allocation5], %s19
      %s22 = sshll.u32 [#allocation4], 4
      %s23 = int_to_ptr.vmem [resolvable:$true] %s22
      %25 = dma.hbm_to_vmem [thread:$0]  %s1, 16, %s23, [#allocation5]
    $region9: #{_lambda_.6} parent=1 // pred_fallthru
      _
    // Predicated region
    $region10: #{_lambda_.6} parent=1 // pred_check
      _
    $region11: #{_lambda_.6} parent=1 // pred_check_branch
      %27 = sbr.rel (0) target = $region13
    $region12: #{_lambda_.6} parent=1 // pred_region
      _
    $region13: #{_lambda_.6} parent=1 // pred_fallthru
      _
    // Predicated region
    $region14: #{_lambda_.6} parent=1 // pred_check
      _
    $region15: #{_lambda_.6} parent=1 // pred_check_branch
      %29 = sbr.rel (0) target = $region17
    $region16: #{_lambda_.6} parent=1 // pred_region
      _
    $region17: #{_lambda_.6} parent=1 // pred_fallthru
      _
    // Predicated region
    $region18: #{_lambda_.6} parent=1 // pred_check
      _
    $region19: #{_lambda_.6} parent=1 // pred_check_branch
      %31 = sbr.rel (0) target = $region21
    $region20: #{_lambda_.6} parent=1 // pred_region
      _
    $region21: #{_lambda_.6} parent=1 // pred_fallthru
      _
    // Predicated region
    $region22: #{_lambda_.6} parent=1 // pred_check
      _
    $region23: #{_lambda_.6} parent=1 // pred_check_branch
      %33 = sbr.rel (0) target = $region25
    $region24: #{_lambda_.6} parent=1 // pred_region
      _
    $region25: #{_lambda_.6} parent=1 // pred_fallthru
      _
    // Predicated region
    $region26: #{_lambda_.6} parent=1 // pred_check
      _
    $region27: #{_lambda_.6} parent=1 // pred_check_branch
      %35 = sbr.rel (0) target = $region29
    $region28: #{_lambda_.6} parent=1 // pred_region
      _
    $region29: #{_lambda_.6} parent=1 // pred_fallthru
      _
    // Predicated region
    $region30: #{_lambda_.6} parent=1 // pred_check
      _
    $region31: #{_lambda_.6} parent=1 // pred_check_branch
      %37 = sbr.rel (0) target = $region33
    $region32: #{_lambda_.6} parent=1 // pred_region
      _
    $region33: #{_lambda_.6} parent=1 // pred_fallthru
      _
    // Predicated region
    $region34: #{_lambda_.6} parent=1 // pred_check
      _
    $region35: #{_lambda_.6} parent=1 // pred_check_branch
      %39 = sbr.rel (0) target = $region37
    $region36: #{_lambda_.6} parent=1 // pred_region
      %40 = dma.done [#allocation5], 16
    $region37: #{_lambda_.6} parent=1 // pred_fallthru
      _
    %p42 = scmp.eq.s32.totalorder 0, 0
    // Predicated region
    $region38: #{_lambda_.6} parent=1 // pred_check
      %p43 = pneg %p42
    $region39: #{_lambda_.6} parent=1 // pred_check_branch
      %45 = sbr.rel (%p43) target = $region41
    $region40: #{_lambda_.6} parent=1 // pred_region
      %v46 = vld [vmem:[%s0] sm:$0xff]
      %v47 = vmul.f32 %v46, %v46
      %48 = vadd.xlane.f32.xlu0 %v47
      %v49 = vpop.xlane.xlu0 %48
      %v50 = vrcp.pop 128.0
      %v51 = vmul.f32 %v49, %v50
      %v52 = vadd.f32 %v51, 1e-06
      %v53 = vrsqrt.pop %v52
      %v54 = vmul.f32 %v46, %v53
      %v55 = vld [vmem:[#allocation4] sm:$0x1]
      %v57 = vlaneseq
      %v58 = vshrl.u32 %v57, 7
      %v59 = vsub.s32 0, %v58
      %v60 = vrot.slane %v55, %v59
      %v62 = vmul.f32 %v54, %v60
      %63 = vst [vmem:[#allocation2] sm:$0xff] %v62
      %64 = vst [vmem:[#allocation3] sm:$0xff] 0.0
    $region41: #{_lambda_.6} parent=1 // pred_fallthru
      _
    %v65 = vld [vmem:[#allocation2] sm:$0xff]
    %v66 = vpack.c.bf16 %v65, %v65
    %v67 = vld [vmem:[%s6] sm:$0xff]
    %v68 = vld [vmem:[%s7] sm:$0xff]
    %v69 = vld [vmem:[%s2] sm:$0xf]
    %v70 = vld [vmem:[%s2 + $0x4] sm:$0xf]
    %v71 = vld [vmem:[%s2 + $0x8] sm:$0xf]
    %v72 = vld [vmem:[%s2 + $0xc] sm:$0xf]
    %v73 = vld [vmem:[%s2 + $0x10] sm:$0xf]
    %v74 = vld [vmem:[%s2 + $0x14] sm:$0xf]
    %v75 = vld [vmem:[%s2 + $0x18] sm:$0xf]
    %v76 = vld [vmem:[%s2 + $0x1c] sm:$0xf]
    %v77 = vld [vmem:[%s2 + $0x20] sm:$0xf]
    %v78 = vld [vmem:[%s2 + $0x24] sm:$0xf]
    %v79 = vld [vmem:[%s2 + $0x28] sm:$0xf]
    %v80 = vld [vmem:[%s2 + $0x2c] sm:$0xf]
    %v81 = vld [vmem:[%s2 + $0x30] sm:$0xf]
    %v82 = vld [vmem:[%s2 + $0x34] sm:$0xf]
    %v83 = vld [vmem:[%s2 + $0x38] sm:$0xf]
    %v84 = vld [vmem:[%s2 + $0x3c] sm:$0xf]
    %v101 = vunpack.c.l.b16 %v69
    %v102 = vunpack.c.l.b16 %v70
    %v103 = vunpack.c.l.b16 %v71
    %v104 = vunpack.c.l.b16 %v72
    %v105 = vunpack.c.l.b16 %v73
    %v106 = vunpack.c.l.b16 %v74
    %v107 = vunpack.c.l.b16 %v75
    %v108 = vunpack.c.l.b16 %v76
    %v109 = vunpack.c.l.b16 %v77
    %v110 = vunpack.c.l.b16 %v78
    %v111 = vunpack.c.l.b16 %v79
    %v112 = vunpack.c.l.b16 %v80
    %v113 = vunpack.c.l.b16 %v81
    %v114 = vunpack.c.l.b16 %v82
    %v115 = vunpack.c.l.b16 %v83
    %v116 = vunpack.c.l.b16 %v84
    %v117 = vpack.c.b16 %v102, %v101
    %v118 = vpack.c.b16 %v104, %v103
    %v119 = vpack.c.b16 %v106, %v105
    %v120 = vpack.c.b16 %v108, %v107
    %v121 = vpack.c.b16 %v110, %v109
    %v122 = vpack.c.b16 %v112, %v111
    %v123 = vpack.c.b16 %v114, %v113
    %v124 = vpack.c.b16 %v116, %v115
    %133 = vmatprep.subr.bf16.mxu0 0
    %134 = vmatpush1.bf16.msra.mxu0 %v117
    %135 = vmatprep.subr.bf16.mxu0 0
    %136 = vmatpush1.bf16.msra.mxu0 %v118
    %137 = vmatprep.subr.bf16.mxu0 0
    %138 = vmatpush1.bf16.msra.mxu0 %v119
    %139 = vmatprep.subr.bf16.mxu0 0
    %140 = vmatpush1.bf16.msra.mxu0 %v120
    %141 = vmatprep.subr.bf16.mxu0 0
    %142 = vmatpush1.bf16.msra.mxu0 %v121
    %143 = vmatprep.subr.bf16.mxu0 0
    %144 = vmatpush1.bf16.msra.mxu0 %v122
    %145 = vmatprep.subr.bf16.mxu0 0
    %146 = vmatpush1.bf16.msra.mxu0 %v123
    %147 = vmatprep.subr.bf16.mxu0 0
    %148 = vmatpush1.bf16.msra.mxu0 %v124
    %149 = vmatprep.subr.bf16.mxu0 0
    %150 = vmatpush1.bf16.msra.mxu0 0
    %151 = vmatprep.subr.bf16.mxu0 0
    %152 = vmatpush1.bf16.msra.mxu0 0
    %153 = vmatprep.subr.bf16.mxu0 0
    %154 = vmatpush1.bf16.msra.mxu0 0
    %155 = vmatprep.subr.bf16.mxu0 0
    %156 = vmatpush1.bf16.msra.mxu0 0
    %157 = vmatprep.subr.bf16.mxu0 0
    %158 = vmatpush1.bf16.msra.mxu0 0
    %159 = vmatprep.subr.bf16.mxu0 0
    %160 = vmatpush1.bf16.msra.mxu0 0
    %161 = vmatprep.subr.bf16.mxu0 0
    %162 = vmatpush1.bf16.msra.mxu0 0
    %163 = vmatprep.subr.bf16.mxu0 0
    %164 = vmatpush1.bf16.msra.mxu0 0
    %165 = vmatprep.mubr.bf16.mxu0 0
    %166 = vmatmul.mubr.bf16.gmra.mrb[0].mxu0 %v66
    %v167 = vpop.f32.mrb[0].mxu0
    %v168 = vadd.f32 0.0, %v167
    %v169 = vpop.f32.mrb[0].mxu0
    %v170 = vpop.f32.mrb[0].mxu0
    %v171 = vpop.f32.mrb[0].mxu0
    %172 = vdwg.mxu0
    %v173 = vmul.f32 %v168, 0.17677669
    %v174 = vld [vmem:[%s3] sm:$0xf]
    %v175 = vld [vmem:[%s3 + $0x4] sm:$0xf]
    %v176 = vld [vmem:[%s3 + $0x8] sm:$0xf]
    %v177 = vld [vmem:[%s3 + $0xc] sm:$0xf]
    %v178 = vld [vmem:[%s3 + $0x10] sm:$0xf]
    %v179 = vld [vmem:[%s3 + $0x14] sm:$0xf]
    %v180 = vld [vmem:[%s3 + $0x18] sm:$0xf]
    %v181 = vld [vmem:[%s3 + $0x1c] sm:$0xf]
    %v182 = vld [vmem:[%s3 + $0x20] sm:$0xf]
    %v183 = vld [vmem:[%s3 + $0x24] sm:$0xf]
    %v184 = vld [vmem:[%s3 + $0x28] sm:$0xf]
    %v185 = vld [vmem:[%s3 + $0x2c] sm:$0xf]
    %v186 = vld [vmem:[%s3 + $0x30] sm:$0xf]
    %v187 = vld [vmem:[%s3 + $0x34] sm:$0xf]
    %v188 = vld [vmem:[%s3 + $0x38] sm:$0xf]
    %v189 = vld [vmem:[%s3 + $0x3c] sm:$0xf]
    %v206 = vunpack.c.l.b16 %v174
    %v207 = vunpack.c.l.b16 %v175
    %v208 = vunpack.c.l.b16 %v176
    %v209 = vunpack.c.l.b16 %v177
    %v210 = vunpack.c.l.b16 %v178
    %v211 = vunpack.c.l.b16 %v179
    %v212 = vunpack.c.l.b16 %v180
    %v213 = vunpack.c.l.b16 %v181
    %v214 = vunpack.c.l.b16 %v182
    %v215 = vunpack.c.l.b16 %v183
    %v216 = vunpack.c.l.b16 %v184
    %v217 = vunpack.c.l.b16 %v185
    %v218 = vunpack.c.l.b16 %v186
    %v219 = vunpack.c.l.b16 %v187
    %v220 = vunpack.c.l.b16 %v188
    %v221 = vunpack.c.l.b16 %v189
    %v222 = vpack.c.b16 %v207, %v206
    %v223 = vpack.c.b16 %v209, %v208
    %v224 = vpack.c.b16 %v211, %v210
    %v225 = vpack.c.b16 %v213, %v212
    %v226 = vpack.c.b16 %v215, %v214
    %v227 = vpack.c.b16 %v217, %v216
    %v228 = vpack.c.b16 %v219, %v218
    %v229 = vpack.c.b16 %v221, %v220
    %238 = vmatprep.subr.bf16.mxu0 0
    %239 = vmatpush1.bf16.msra.mxu0 %v222
    %240 = vmatprep.subr.bf16.mxu0 0
    %241 = vmatpush1.bf16.msra.mxu0 %v223
    %242 = vmatprep.subr.bf16.mxu0 0
    %243 = vmatpush1.bf16.msra.mxu0 %v224
    %244 = vmatprep.subr.bf16.mxu0 0
    %245 = vmatpush1.bf16.msra.mxu0 %v225
    %246 = vmatprep.subr.bf16.mxu0 0
    %247 = vmatpush1.bf16.msra.mxu0 %v226
    %248 = vmatprep.subr.bf16.mxu0 0
    %249 = vmatpush1.bf16.msra.mxu0 %v227
    %250 = vmatprep.subr.bf16.mxu0 0
    %251 = vmatpush1.bf16.msra.mxu0 %v228
    %252 = vmatprep.subr.bf16.mxu0 0
    %253 = vmatpush1.bf16.msra.mxu0 %v229
    %254 = vmatprep.subr.bf16.mxu0 0
    %255 = vmatpush1.bf16.msra.mxu0 0
    %256 = vmatprep.subr.bf16.mxu0 0
    %257 = vmatpush1.bf16.msra.mxu0 0
    %258 = vmatprep.subr.bf16.mxu0 0
    %259 = vmatpush1.bf16.msra.mxu0 0
    %260 = vmatprep.subr.bf16.mxu0 0
    %261 = vmatpush1.bf16.msra.mxu0 0
    %262 = vmatprep.subr.bf16.mxu0 0
    %263 = vmatpush1.bf16.msra.mxu0 0
    %264 = vmatprep.subr.bf16.mxu0 0
    %265 = vmatpush1.bf16.msra.mxu0 0
    %266 = vmatprep.subr.bf16.mxu0 0
    %267 = vmatpush1.bf16.msra.mxu0 0
    %268 = vmatprep.subr.bf16.mxu0 0
    %269 = vmatpush1.bf16.msra.mxu0 0
    %270 = vmatprep.mubr.bf16.mxu0 0
    %271 = vmatmul.mubr.bf16.gmra.mrb[0].mxu0 %v66
    %v272 = vpop.f32.mrb[0].mxu0
    %v273 = vadd.f32 0.0, %v272
    %v274 = vpop.f32.mrb[0].mxu0
    %v275 = vpop.f32.mrb[0].mxu0
    %v276 = vpop.f32.mrb[0].mxu0
    %277 = vdwg.mxu0
    %v278 = vld [vmem:[%s4] sm:$0xf]
    %v279 = vld [vmem:[%s4 + $0x4] sm:$0xf]
    %v280 = vld [vmem:[%s4 + $0x8] sm:$0xf]
    %v281 = vld [vmem:[%s4 + $0xc] sm:$0xf]
    %v282 = vld [vmem:[%s4 + $0x10] sm:$0xf]
    %v283 = vld [vmem:[%s4 + $0x14] sm:$0xf]
    %v284 = vld [vmem:[%s4 + $0x18] sm:$0xf]
    %v285 = vld [vmem:[%s4 + $0x1c] sm:$0xf]
    %v286 = vld [vmem:[%s4 + $0x20] sm:$0xf]
    %v287 = vld [vmem:[%s4 + $0x24] sm:$0xf]
    %v288 = vld [vmem:[%s4 + $0x28] sm:$0xf]
    %v289 = vld [vmem:[%s4 + $0x2c] sm:$0xf]
    %v290 = vld [vmem:[%s4 + $0x30] sm:$0xf]
    %v291 = vld [vmem:[%s4 + $0x34] sm:$0xf]
    %v292 = vld [vmem:[%s4 + $0x38] sm:$0xf]
    %v293 = vld [vmem:[%s4 + $0x3c] sm:$0xf]
    %v310 = vunpack.c.l.b16 %v278
    %v311 = vunpack.c.l.b16 %v279
    %v312 = vunpack.c.l.b16 %v280
    %v313 = vunpack.c.l.b16 %v281
    %v314 = vunpack.c.l.b16 %v282
    %v315 = vunpack.c.l.b16 %v283
    %v316 = vunpack.c.l.b16 %v284
    %v317 = vunpack.c.l.b16 %v285
    %v318 = vunpack.c.l.b16 %v286
    %v319 = vunpack.c.l.b16 %v287
    %v320 = vunpack.c.l.b16 %v288
    %v321 = vunpack.c.l.b16 %v289
    %v322 = vunpack.c.l.b16 %v290
    %v323 = vunpack.c.l.b16 %v291
    %v324 = vunpack.c.l.b16 %v292
    %v325 = vunpack.c.l.b16 %v293
    %v326 = vpack.c.b16 %v311, %v310
    %v327 = vpack.c.b16 %v313, %v312
    %v328 = vpack.c.b16 %v315, %v314
    %v329 = vpack.c.b16 %v317, %v316
    %v330 = vpack.c.b16 %v319, %v318
    %v331 = vpack.c.b16 %v321, %v320
    %v332 = vpack.c.b16 %v323, %v322
    %v333 = vpack.c.b16 %v325, %v324
    %342 = vmatprep.subr.bf16.mxu0 0
    %343 = vmatpush1.bf16.msra.mxu0 %v326
    %344 = vmatprep.subr.bf16.mxu0 0
    %345 = vmatpush1.bf16.msra.mxu0 %v327
    %346 = vmatprep.subr.bf16.mxu0 0
    %347 = vmatpush1.bf16.msra.mxu0 %v328
    %348 = vmatprep.subr.bf16.mxu0 0
    %349 = vmatpush1.bf16.msra.mxu0 %v329
    %350 = vmatprep.subr.bf16.mxu0 0
    %351 = vmatpush1.bf16.msra.mxu0 %v330
    %352 = vmatprep.subr.bf16.mxu0 0
    %353 = vmatpush1.bf16.msra.mxu0 %v331
    %354 = vmatprep.subr.bf16.mxu0 0
    %355 = vmatpush1.bf16.msra.mxu0 %v332
    %356 = vmatprep.subr.bf16.mxu0 0
    %357 = vmatpush1.bf16.msra.mxu0 %v333
    %358 = vmatprep.subr.bf16.mxu0 0
    %359 = vmatpush1.bf16.msra.mxu0 0
    %360 = vmatprep.subr.bf16.mxu0 0
    %361 = vmatpush1.bf16.msra.mxu0 0
    %362 = vmatprep.subr.bf16.mxu0 0
    %363 = vmatpush1.bf16.msra.mxu0 0
    %364 = vmatprep.subr.bf16.mxu0 0
    %365 = vmatpush1.bf16.msra.mxu0 0
    %366 = vmatprep.subr.bf16.mxu0 0
    %367 = vmatpush1.bf16.msra.mxu0 0
    %368 = vmatprep.subr.bf16.mxu0 0
    %369 = vmatpush1.bf16.msra.mxu0 0
    %370 = vmatprep.subr.bf16.mxu0 0
    %371 = vmatpush1.bf16.msra.mxu0 0
    %372 = vmatprep.subr.bf16.mxu0 0
    %373 = vmatpush1.bf16.msra.mxu0 0
    %374 = vmatprep.mubr.bf16.mxu0 0
    %375 = vmatmul.mubr.bf16.gmra.mrb[0].mxu0 %v66
    %v376 = vpop.f32.mrb[0].mxu0
    %v377 = vadd.f32 0.0, %v376
    %v378 = vpop.f32.mrb[0].mxu0
    %v379 = vpop.f32.mrb[0].mxu0
    %v380 = vpop.f32.mrb[0].mxu0
    %381 = vdwg.mxu0
    %v382 = vlaneseq
    %v383 = vshrl.u32 %v382, 7
    %v384 = vlaneseq
    %v385 = vand.u32 %v384, 127
    %vm386 = vcmp.le.s32.totalorder %v385, %v383
    %388 = vrot.lane.b32.xlu0 %v273, 112
    %v389 = vpop.permute.xlu0 %388
    %391 = vrot.lane.b32.xlu0 %v273, 16
    %v392 = vpop.permute.xlu0 %391
    %vm394 = vcmask 130048
    %v395 = vsel %vm394, %v389, %v392
    %v396 = vmul.f32 %v273, %v67
    %v397 = vmul.f32 %v395, %v68
    %v398 = vadd.f32 %v396, %v397
    %v399 = vpack.c.bf16 %v398, %v398
    %v400 = vpack.c.bf16 %v377, %v377
    %402 = vrot.lane.b32.xlu0 %v173, 112
    %v403 = vpop.permute.xlu0 %402
    %405 = vrot.lane.b32.xlu0 %v173, 16
    %v406 = vpop.permute.xlu0 %405
    %v408 = vsel %vm394, %v403, %v406
    %v409 = vmul.f32 %v173, %v67
    %v410 = vmul.f32 %v408, %v68
    %v411 = vadd.f32 %v409, %v410
    %v412 = vpack.c.bf16 %v411, %v411
    %vm413 = vcmask 261120
    %v415 = vsel %vm413, %v412, 0
    %v418 = vsel %vm413, %v399, 0
    %420 = vmatprep.subr.bf16.mxu0 0
    %421 = vmatpush1.bf16.xpose.msra.mxu0 %v418
    %422 = vmatprep.subr.bf16.mxu0 0
    %423 = vmatpush1.bf16.xpose.msra.mxu0 0
    %424 = vmatprep.subr.bf16.mxu0 0
    %425 = vmatpush1.bf16.xpose.msra.mxu0 0
    %426 = vmatprep.subr.bf16.mxu0 0
    %427 = vmatpush1.bf16.xpose.msra.mxu0 0
    %428 = vmatprep.subr.bf16.mxu0 0
    %429 = vmatpush1.bf16.xpose.msra.mxu0 0
    %430 = vmatprep.subr.bf16.mxu0 0
    %431 = vmatpush1.bf16.xpose.msra.mxu0 0
    %432 = vmatprep.subr.bf16.mxu0 0
    %433 = vmatpush1.bf16.xpose.msra.mxu0 0
    %434 = vmatprep.subr.bf16.mxu0 0
    %435 = vmatpush1.bf16.xpose.msra.mxu0 0
    %436 = vmatprep.subr.bf16.mxu0 0
    %437 = vmatpush1.bf16.xpose.msra.mxu0 0
    %438 = vmatprep.subr.bf16.mxu0 0
    %439 = vmatpush1.bf16.xpose.msra.mxu0 0
    %440 = vmatprep.subr.bf16.mxu0 0
    %441 = vmatpush1.bf16.xpose.msra.mxu0 0
    %442 = vmatprep.subr.bf16.mxu0 0
    %443 = vmatpush1.bf16.xpose.msra.mxu0 0
    %444 = vmatprep.subr.bf16.mxu0 0
    %445 = vmatpush1.bf16.xpose.msra.mxu0 0
    %446 = vmatprep.subr.bf16.mxu0 0
    %447 = vmatpush1.bf16.xpose.msra.mxu0 0
    %448 = vmatprep.subr.bf16.mxu0 0
    %449 = vmatpush1.bf16.xpose.msra.mxu0 0
    %450 = vmatprep.subr.bf16.mxu0 0
    %451 = vmatpush1.bf16.xpose.msra.mxu0 0
    %452 = vmatprep.mubr.bf16.mxu0 0
    %453 = vmatmul.mubr.bf16.gmra.mrb[0].mxu0 %v415
    %v454 = vpop.f32.mrb[0].mxu0
    %v455 = vadd.f32 0.0, %v454
    %v456 = vpop.f32.mrb[0].mxu0
    %v457 = vpop.f32.mrb[0].mxu0
    %v458 = vpop.f32.mrb[0].mxu0
    %459 = vdwg.mxu0
    %v460 = vsel %vm386, %v455, -1e+30
    %vm461 = vcmask 64512
    %v462 = vsel %vm461, %v460, -inf
    %463 = vmax.xlane.f32.xlu0 %v462
    %v464 = vpop.xlane.xlu0 %463
    %v465 = vsub.f32 %v460, %v464
    %v466 = vmul.f32 %v465, 1.442695
    %v467 = vpow.pop %v466
    %v468 = vsel %vm461, %v467, 0.0
    %469 = vadd.xlane.f32.xlu0 %v468
    %v470 = vpop.xlane.xlu0 %469
    %v471 = vrcp.pop %v470
    %v472 = vmul.f32 %v467, %v471
    %v473 = vpack.c.bf16 %v472, %v472
    %v475 = vsel %vm461, %v473, 0
    %vm477 = vcmask 1043456
    %v479 = vsel %vm477, %v400, 0
    %481 = vmatprep.subr.bf16.mxu0 0
    %482 = vmatpush1.bf16.msra.mxu0 %v479
    %483 = vmatprep.subr.bf16.mxu0 0
    %484 = vmatpush1.bf16.msra.mxu0 0
    %485 = vmatprep.subr.bf16.mxu0 0
    %486 = vmatpush1.bf16.msra.mxu0 0
    %487 = vmatprep.subr.bf16.mxu0 0
    %488 = vmatpush1.bf16.msra.mxu0 0
    %489 = vmatprep.subr.bf16.mxu0 0
    %490 = vmatpush1.bf16.msra.mxu0 0
    %491 = vmatprep.subr.bf16.mxu0 0
    %492 = vmatpush1.bf16.msra.mxu0 0
    %493 = vmatprep.subr.bf16.mxu0 0
    %494 = vmatpush1.bf16.msra.mxu0 0
    %495 = vmatprep.subr.bf16.mxu0 0
    %496 = vmatpush1.bf16.msra.mxu0 0
    %497 = vmatprep.subr.bf16.mxu0 0
    %498 = vmatpush1.bf16.msra.mxu0 0
    %499 = vmatprep.subr.bf16.mxu0 0
    %500 = vmatpush1.bf16.msra.mxu0 0
    %501 = vmatprep.subr.bf16.mxu0 0
    %502 = vmatpush1.bf16.msra.mxu0 0
    %503 = vmatprep.subr.bf16.mxu0 0
    %504 = vmatpush1.bf16.msra.mxu0 0
    %505 = vmatprep.subr.bf16.mxu0 0
    %506 = vmatpush1.bf16.msra.mxu0 0
    %507 = vmatprep.subr.bf16.mxu0 0
    %508 = vmatpush1.bf16.msra.mxu0 0
    %509 = vmatprep.subr.bf16.mxu0 0
    %510 = vmatpush1.bf16.msra.mxu0 0
    %511 = vmatprep.subr.bf16.mxu0 0
    %512 = vmatpush1.bf16.msra.mxu0 0
    %513 = vmatprep.mubr.bf16.mxu0 0
    %514 = vmatmul.mubr.bf16.gmra.mrb[0].mxu0 %v475
    %v515 = vpop.f32.mrb[0].mxu0
    %v516 = vadd.f32 0.0, %v515
    %v517 = vpop.f32.mrb[0].mxu0
    %v518 = vpop.f32.mrb[0].mxu0
    %v519 = vpop.f32.mrb[0].mxu0
    %520 = vdwg.mxu0
    %521 = vrot.lane.b32.xlu0 %v173, 80
    %v522 = vpop.permute.xlu0 %521
    %v524 = vsel %vm394, %v522, %v403
    %526 = vrot.lane.b32.xlu0 %v67, 32
    %v527 = vpop.permute.xlu0 %526
    %v529 = vmul.f32 %v173, %v527
    %v530 = vmul.f32 %v524, %v68
    %532 = vrot.lane.b32.xlu0 %v530, 32
    %v533 = vpop.permute.xlu0 %532
    %v535 = vadd.f32 %v529, %v533
    %v536 = vpack.c.bf16 %v535, %v535
    %538 = vrot.lane.b32.xlu0 %v536, 96
    %v539 = vpop.permute.xlu0 %538
    %v541 = vsel %vm413, %v539, 0
    %543 = vmatprep.subr.bf16.mxu0 0
    %544 = vmatpush1.bf16.xpose.msra.mxu0 %v418
    %545 = vmatprep.subr.bf16.mxu0 0
    %546 = vmatpush1.bf16.xpose.msra.mxu0 0
    %547 = vmatprep.subr.bf16.mxu0 0
    %548 = vmatpush1.bf16.xpose.msra.mxu0 0
    %549 = vmatprep.subr.bf16.mxu0 0
    %550 = vmatpush1.bf16.xpose.msra.mxu0 0
    %551 = vmatprep.subr.bf16.mxu0 0
    %552 = vmatpush1.bf16.xpose.msra.mxu0 0
    %553 = vmatprep.subr.bf16.mxu0 0
    %554 = vmatpush1.bf16.xpose.msra.mxu0 0
    %555 = vmatprep.subr.bf16.mxu0 0
    %556 = vmatpush1.bf16.xpose.msra.mxu0 0
    %557 = vmatprep.subr.bf16.mxu0 0
    %558 = vmatpush1.bf16.xpose.msra.mxu0 0
    %559 = vmatprep.subr.bf16.mxu0 0
    %560 = vmatpush1.bf16.xpose.msra.mxu0 0
    %561 = vmatprep.subr.bf16.mxu0 0
    %562 = vmatpush1.bf16.xpose.msra.mxu0 0
    %563 = vmatprep.subr.bf16.mxu0 0
    %564 = vmatpush1.bf16.xpose.msra.mxu0 0
    %565 = vmatprep.subr.bf16.mxu0 0
    %566 = vmatpush1.bf16.xpose.msra.mxu0 0
    %567 = vmatprep.subr.bf16.mxu0 0
    %568 = vmatpush1.bf16.xpose.msra.mxu0 0
    %569 = vmatprep.subr.bf16.mxu0 0
    %570 = vmatpush1.bf16.xpose.msra.mxu0 0
    %571 = vmatprep.subr.bf16.mxu0 0
    %572 = vmatpush1.bf16.xpose.msra.mxu0 0
    %573 = vmatprep.subr.bf16.mxu0 0
    %574 = vmatpush1.bf16.xpose.msra.mxu0 0
    %575 = vmatprep.mubr.bf16.mxu0 0
    %576 = vmatmul.mubr.bf16.gmra.mrb[0].mxu0 %v541
    %v577 = vpop.f32.mrb[0].mxu0
    %v578 = vadd.f32 0.0, %v577
    %v579 = vpop.f32.mrb[0].mxu0
    %v580 = vpop.f32.mrb[0].mxu0
    %v581 = vpop.f32.mrb[0].mxu0
    %582 = vdwg.mxu0
    %v583 = vsel %vm386, %v578, -1e+30
    %v584 = vsel %vm461, %v583, -inf
    %585 = vmax.xlane.f32.xlu0 %v584
    %v586 = vpop.xlane.xlu0 %585
    %v587 = vsub.f32 %v583, %v586
    %v588 = vmul.f32 %v587, 1.442695
    %v589 = vpow.pop %v588
    %v590 = vsel %vm461, %v589, 0.0
    %591 = vadd.xlane.f32.xlu0 %v590
    %v592 = vpop.xlane.xlu0 %591
    %v593 = vrcp.pop %v592
    %v594 = vmul.f32 %v589, %v593
    %v595 = vpack.c.bf16 %v594, %v594
    %v597 = vsel %vm461, %v595, 0
    %599 = vmatprep.subr.bf16.mxu0 0
    %600 = vmatpush1.bf16.msra.mxu0 %v479
    %601 = vmatprep.subr.bf16.mxu0 0
    %602 = vmatpush1.bf16.msra.mxu0 0
    %603 = vmatprep.subr.bf16.mxu0 0
    %604 = vmatpush1.bf16.msra.mxu0 0
    %605 = vmatprep.subr.bf16.mxu0 0
    %606 = vmatpush1.bf16.msra.mxu0 0
    %607 = vmatprep.subr.bf16.mxu0 0
    %608 = vmatpush1.bf16.msra.mxu0 0
    %609 = vmatprep.subr.bf16.mxu0 0
    %610 = vmatpush1.bf16.msra.mxu0 0
    %611 = vmatprep.subr.bf16.mxu0 0
    %612 = vmatpush1.bf16.msra.mxu0 0
    %613 = vmatprep.subr.bf16.mxu0 0
    %614 = vmatpush1.bf16.msra.mxu0 0
    %615 = vmatprep.subr.bf16.mxu0 0
    %616 = vmatpush1.bf16.msra.mxu0 0
    %617 = vmatprep.subr.bf16.mxu0 0
    %618 = vmatpush1.bf16.msra.mxu0 0
    %619 = vmatprep.subr.bf16.mxu0 0
    %620 = vmatpush1.bf16.msra.mxu0 0
    %621 = vmatprep.subr.bf16.mxu0 0
    %622 = vmatpush1.bf16.msra.mxu0 0
    %623 = vmatprep.subr.bf16.mxu0 0
    %624 = vmatpush1.bf16.msra.mxu0 0
    %625 = vmatprep.subr.bf16.mxu0 0
    %626 = vmatpush1.bf16.msra.mxu0 0
    %627 = vmatprep.subr.bf16.mxu0 0
    %628 = vmatpush1.bf16.msra.mxu0 0
    %629 = vmatprep.subr.bf16.mxu0 0
    %630 = vmatpush1.bf16.msra.mxu0 0
    %631 = vmatprep.mubr.bf16.mxu0 0
    %632 = vmatmul.mubr.bf16.gmra.mrb[0].mxu0 %v597
    %v633 = vpop.f32.mrb[0].mxu0
    %v634 = vadd.f32 0.0, %v633
    %v635 = vpop.f32.mrb[0].mxu0
    %v636 = vpop.f32.mrb[0].mxu0
    %v637 = vpop.f32.mrb[0].mxu0
    %638 = vdwg.mxu0
    %639 = vrot.lane.b32.xlu0 %v273, 80
    %v640 = vpop.permute.xlu0 %639
    %v642 = vsel %vm394, %v640, %v389
    %v643 = vmul.f32 %v273, %v527
    %v644 = vmul.f32 %v642, %v68
    %646 = vrot.lane.b32.xlu0 %v644, 32
    %v647 = vpop.permute.xlu0 %646
    %v649 = vadd.f32 %v643, %v647
    %v650 = vpack.c.bf16 %v649, %v649
    %651 = vrot.lane.b32.xlu0 %v173, 48
    %v652 = vpop.permute.xlu0 %651
    %v654 = vsel %vm394, %v652, %v522
    %655 = vrot.lane.b32.xlu0 %v67, 64
    %v656 = vpop.permute.xlu0 %655
    %v658 = vmul.f32 %v173, %v656
    %v659 = vmul.f32 %v654, %v68
    %661 = vrot.lane.b32.xlu0 %v659, 64
    %v662 = vpop.permute.xlu0 %661
    %v664 = vadd.f32 %v658, %v662
    %v665 = vpack.c.bf16 %v664, %v664
    %667 = vrot.lane.b32.xlu0 %v665, 64
    %v668 = vpop.permute.xlu0 %667
    %670 = vrot.lane.b32.xlu0 %v650, 96
    %v671 = vpop.permute.xlu0 %670
    %v673 = vsel %vm413, %v668, 0
    %v676 = vsel %vm413, %v671, 0
    %678 = vmatprep.subr.bf16.mxu0 0
    %679 = vmatpush1.bf16.xpose.msra.mxu0 %v676
    %680 = vmatprep.subr.bf16.mxu0 0
    %681 = vmatpush1.bf16.xpose.msra.mxu0 0
    %682 = vmatprep.subr.bf16.mxu0 0
    %683 = vmatpush1.bf16.xpose.msra.mxu0 0
    %684 = vmatprep.subr.bf16.mxu0 0
    %685 = vmatpush1.bf16.xpose.msra.mxu0 0
    %686 = vmatprep.subr.bf16.mxu0 0
    %687 = vmatpush1.bf16.xpose.msra.mxu0 0
    %688 = vmatprep.subr.bf16.mxu0 0
    %689 = vmatpush1.bf16.xpose.msra.mxu0 0
    %690 = vmatprep.subr.bf16.mxu0 0
    %691 = vmatpush1.bf16.xpose.msra.mxu0 0
    %692 = vmatprep.subr.bf16.mxu0 0
    %693 = vmatpush1.bf16.xpose.msra.mxu0 0
    %694 = vmatprep.subr.bf16.mxu0 0
    %695 = vmatpush1.bf16.xpose.msra.mxu0 0
    %696 = vmatprep.subr.bf16.mxu0 0
    %697 = vmatpush1.bf16.xpose.msra.mxu0 0
    %698 = vmatprep.subr.bf16.mxu0 0
    %699 = vmatpush1.bf16.xpose.msra.mxu0 0
    %700 = vmatprep.subr.bf16.mxu0 0
    %701 = vmatpush1.bf16.xpose.msra.mxu0 0
    %702 = vmatprep.subr.bf16.mxu0 0
    %703 = vmatpush1.bf16.xpose.msra.mxu0 0
    %704 = vmatprep.subr.bf16.mxu0 0
    %705 = vmatpush1.bf16.xpose.msra.mxu0 0
    %706 = vmatprep.subr.bf16.mxu0 0
    %707 = vmatpush1.bf16.xpose.msra.mxu0 0
    %708 = vmatprep.subr.bf16.mxu0 0
    %709 = vmatpush1.bf16.xpose.msra.mxu0 0
    %710 = vmatprep.mubr.bf16.mxu0 0
    %711 = vmatmul.mubr.bf16.gmra.mrb[0].mxu0 %v673
    %v712 = vpop.f32.mrb[0].mxu0
    %v713 = vadd.f32 0.0, %v712
    %v714 = vpop.f32.mrb[0].mxu0
    %v715 = vpop.f32.mrb[0].mxu0
    %v716 = vpop.f32.mrb[0].mxu0
    %717 = vdwg.mxu0
    %v718 = vsel %vm386, %v713, -1e+30
    %v719 = vsel %vm461, %v718, -inf
    %720 = vmax.xlane.f32.xlu0 %v719
    %v721 = vpop.xlane.xlu0 %720
    %v722 = vsub.f32 %v718, %v721
    %v723 = vmul.f32 %v722, 1.442695
    %v724 = vpow.pop %v723
    %v725 = vsel %vm461, %v724, 0.0
    %726 = vadd.xlane.f32.xlu0 %v725
    %v727 = vpop.xlane.xlu0 %726
    %v728 = vrcp.pop %v727
    %v729 = vmul.f32 %v724, %v728
    %v730 = vpack.c.bf16 %v729, %v729
    %732 = vrot.lane.b32.xlu0 %v400, 96
    %v733 = vpop.permute.xlu0 %732
    %v735 = vsel %vm461, %v730, 0
    %v738 = vsel %vm477, %v733, 0
    %740 = vmatprep.subr.bf16.mxu0 0
    %741 = vmatpush1.bf16.msra.mxu0 %v738
    %742 = vmatprep.subr.bf16.mxu0 0
    %743 = vmatpush1.bf16.msra.mxu0 0
    %744 = vmatprep.subr.bf16.mxu0 0
    %745 = vmatpush1.bf16.msra.mxu0 0
    %746 = vmatprep.subr.bf16.mxu0 0
    %747 = vmatpush1.bf16.msra.mxu0 0
    %748 = vmatprep.subr.bf16.mxu0 0
    %749 = vmatpush1.bf16.msra.mxu0 0
    %750 = vmatprep.subr.bf16.mxu0 0
    %751 = vmatpush1.bf16.msra.mxu0 0
    %752 = vmatprep.subr.bf16.mxu0 0
    %753 = vmatpush1.bf16.msra.mxu0 0
    %754 = vmatprep.subr.bf16.mxu0 0
    %755 = vmatpush1.bf16.msra.mxu0 0
    %756 = vmatprep.subr.bf16.mxu0 0
    %757 = vmatpush1.bf16.msra.mxu0 0
    %758 = vmatprep.subr.bf16.mxu0 0
    %759 = vmatpush1.bf16.msra.mxu0 0
    %760 = vmatprep.subr.bf16.mxu0 0
    %761 = vmatpush1.bf16.msra.mxu0 0
    %762 = vmatprep.subr.bf16.mxu0 0
    %763 = vmatpush1.bf16.msra.mxu0 0
    %764 = vmatprep.subr.bf16.mxu0 0
    %765 = vmatpush1.bf16.msra.mxu0 0
    %766 = vmatprep.subr.bf16.mxu0 0
    %767 = vmatpush1.bf16.msra.mxu0 0
    %768 = vmatprep.subr.bf16.mxu0 0
    %769 = vmatpush1.bf16.msra.mxu0 0
    %770 = vmatprep.subr.bf16.mxu0 0
    %771 = vmatpush1.bf16.msra.mxu0 0
    %772 = vmatprep.mubr.bf16.mxu0 0
    %773 = vmatmul.mubr.bf16.gmra.mrb[0].mxu0 %v735
    %v774 = vpop.f32.mrb[0].mxu0
    %v775 = vadd.f32 0.0, %v774
    %v776 = vpop.f32.mrb[0].mxu0
    %v777 = vpop.f32.mrb[0].mxu0
    %v778 = vpop.f32.mrb[0].mxu0
    %779 = vdwg.mxu0
    %v780 = vsel %vm394, %v406, %v652
    %781 = vrot.lane.b32.xlu0 %v67, 96
    %v782 = vpop.permute.xlu0 %781
    %v784 = vmul.f32 %v173, %v782
    %v785 = vmul.f32 %v780, %v68
    %787 = vrot.lane.b32.xlu0 %v785, 96
    %v788 = vpop.permute.xlu0 %787
    %v790 = vadd.f32 %v784, %v788
    %v791 = vpack.c.bf16 %v790, %v790
    %793 = vrot.lane.b32.xlu0 %v791, 32
    %v794 = vpop.permute.xlu0 %793
    %v796 = vsel %vm413, %v794, 0
    %798 = vmatprep.subr.bf16.mxu0 0
    %799 = vmatpush1.bf16.xpose.msra.mxu0 %v676
    %800 = vmatprep.subr.bf16.mxu0 0
    %801 = vmatpush1.bf16.xpose.msra.mxu0 0
    %802 = vmatprep.subr.bf16.mxu0 0
    %803 = vmatpush1.bf16.xpose.msra.mxu0 0
    %804 = vmatprep.subr.bf16.mxu0 0
    %805 = vmatpush1.bf16.xpose.msra.mxu0 0
    %806 = vmatprep.subr.bf16.mxu0 0
    %807 = vmatpush1.bf16.xpose.msra.mxu0 0
    %808 = vmatprep.subr.bf16.mxu0 0
    %809 = vmatpush1.bf16.xpose.msra.mxu0 0
    %810 = vmatprep.subr.bf16.mxu0 0
    %811 = vmatpush1.bf16.xpose.msra.mxu0 0
    %812 = vmatprep.subr.bf16.mxu0 0
    %813 = vmatpush1.bf16.xpose.msra.mxu0 0
    %814 = vmatprep.subr.bf16.mxu0 0
    %815 = vmatpush1.bf16.xpose.msra.mxu0 0
    %816 = vmatprep.subr.bf16.mxu0 0
    %817 = vmatpush1.bf16.xpose.msra.mxu0 0
    %818 = vmatprep.subr.bf16.mxu0 0
    %819 = vmatpush1.bf16.xpose.msra.mxu0 0
    %820 = vmatprep.subr.bf16.mxu0 0
    %821 = vmatpush1.bf16.xpose.msra.mxu0 0
    %822 = vmatprep.subr.bf16.mxu0 0
    %823 = vmatpush1.bf16.xpose.msra.mxu0 0
    %824 = vmatprep.subr.bf16.mxu0 0
    %825 = vmatpush1.bf16.xpose.msra.mxu0 0
    %826 = vmatprep.subr.bf16.mxu0 0
    %827 = vmatpush1.bf16.xpose.msra.mxu0 0
    %828 = vmatprep.subr.bf16.mxu0 0
    %829 = vmatpush1.bf16.xpose.msra.mxu0 0
    %830 = vmatprep.mubr.bf16.mxu0 0
    %831 = vmatmul.mubr.bf16.gmra.mrb[0].mxu0 %v796
    %v832 = vpop.f32.mrb[0].mxu0
    %v833 = vadd.f32 0.0, %v832
    %v834 = vpop.f32.mrb[0].mxu0
    %v835 = vpop.f32.mrb[0].mxu0
    %v836 = vpop.f32.mrb[0].mxu0
    %837 = vdwg.mxu0
    %v838 = vsel %vm386, %v833, -1e+30
    %v839 = vsel %vm461, %v838, -inf
    %840 = vmax.xlane.f32.xlu0 %v839
    %v841 = vpop.xlane.xlu0 %840
    %v842 = vsub.f32 %v838, %v841
    %v843 = vmul.f32 %v842, 1.442695
    %v844 = vpow.pop %v843
    %v845 = vsel %vm461, %v844, 0.0
    %846 = vadd.xlane.f32.xlu0 %v845
    %v847 = vpop.xlane.xlu0 %846
    %v848 = vrcp.pop %v847
    %v849 = vmul.f32 %v844, %v848
    %v850 = vpack.c.bf16 %v849, %v849
    %v852 = vsel %vm461, %v850, 0
    %854 = vmatprep.subr.bf16.mxu0 0
    %855 = vmatpush1.bf16.msra.mxu0 %v738
    %856 = vmatprep.subr.bf16.mxu0 0
    %857 = vmatpush1.bf16.msra.mxu0 0
    %858 = vmatprep.subr.bf16.mxu0 0
    %859 = vmatpush1.bf16.msra.mxu0 0
    %860 = vmatprep.subr.bf16.mxu0 0
    %861 = vmatpush1.bf16.msra.mxu0 0
    %862 = vmatprep.subr.bf16.mxu0 0
    %863 = vmatpush1.bf16.msra.mxu0 0
    %864 = vmatprep.subr.bf16.mxu0 0
    %865 = vmatpush1.bf16.msra.mxu0 0
    %866 = vmatprep.subr.bf16.mxu0 0
    %867 = vmatpush1.bf16.msra.mxu0 0
    %868 = vmatprep.subr.bf16.mxu0 0
    %869 = vmatpush1.bf16.msra.mxu0 0
    %870 = vmatprep.subr.bf16.mxu0 0
    %871 = vmatpush1.bf16.msra.mxu0 0
    %872 = vmatprep.subr.bf16.mxu0 0
    %873 = vmatpush1.bf16.msra.mxu0 0
    %874 = vmatprep.subr.bf16.mxu0 0
    %875 = vmatpush1.bf16.msra.mxu0 0
    %876 = vmatprep.subr.bf16.mxu0 0
    %877 = vmatpush1.bf16.msra.mxu0 0
    %878 = vmatprep.subr.bf16.mxu0 0
    %879 = vmatpush1.bf16.msra.mxu0 0
    %880 = vmatprep.subr.bf16.mxu0 0
    %881 = vmatpush1.bf16.msra.mxu0 0
    %882 = vmatprep.subr.bf16.mxu0 0
    %883 = vmatpush1.bf16.msra.mxu0 0
    %884 = vmatprep.subr.bf16.mxu0 0
    %885 = vmatpush1.bf16.msra.mxu0 0
    %886 = vmatprep.mubr.bf16.mxu0 0
    %887 = vmatmul.mubr.bf16.gmra.mrb[0].mxu0 %v852
    %v888 = vpop.f32.mrb[0].mxu0
    %v889 = vadd.f32 0.0, %v888
    %v890 = vpop.f32.mrb[0].mxu0
    %v891 = vpop.f32.mrb[0].mxu0
    %v892 = vpop.f32.mrb[0].mxu0
    %893 = vdwg.mxu0
    %895 = vrot.lane.b32.xlu0 %v634, 32
    %v896 = vpop.permute.xlu0 %895
    %899 = vrot.lane.b32.xlu0 %v775, 64
    %v900 = vpop.permute.xlu0 %899
    %903 = vrot.lane.b32.xlu0 %v889, 96
    %v904 = vpop.permute.xlu0 %903
    %v906 = vsel %vm413, %v516, %v896
    %vm907 = vcmask 523264
    %v908 = vsel %vm907, %v906, %v900
    %vm909 = vcmask 785408
    %v910 = vsel %vm909, %v908, %v904
    %v911 = vpack.c.bf16 %v910, %v910
    %v912 = vld [vmem:[#allocation3] sm:$0xff]
    %v913 = vld [vmem:[%s5] sm:$0xf]
    %v914 = vld [vmem:[%s5 + $0x4] sm:$0xf]
    %v915 = vld [vmem:[%s5 + $0x8] sm:$0xf]
    %v916 = vld [vmem:[%s5 + $0xc] sm:$0xf]
    %v917 = vld [vmem:[%s5 + $0x10] sm:$0xf]
    %v918 = vld [vmem:[%s5 + $0x14] sm:$0xf]
    %v919 = vld [vmem:[%s5 + $0x18] sm:$0xf]
    %v920 = vld [vmem:[%s5 + $0x1c] sm:$0xf]
    %v921 = vld [vmem:[%s5 + $0x20] sm:$0xf]
    %v922 = vld [vmem:[%s5 + $0x24] sm:$0xf]
    %v923 = vld [vmem:[%s5 + $0x28] sm:$0xf]
    %v924 = vld [vmem:[%s5 + $0x2c] sm:$0xf]
    %v925 = vld [vmem:[%s5 + $0x30] sm:$0xf]
    %v926 = vld [vmem:[%s5 + $0x34] sm:$0xf]
    %v927 = vld [vmem:[%s5 + $0x38] sm:$0xf]
    %v928 = vld [vmem:[%s5 + $0x3c] sm:$0xf]
    %v945 = vunpack.c.l.b16 %v913
    %v946 = vunpack.c.l.b16 %v914
    %v947 = vunpack.c.l.b16 %v915
    %v948 = vunpack.c.l.b16 %v916
    %v949 = vunpack.c.l.b16 %v917
    %v950 = vunpack.c.l.b16 %v918
    %v951 = vunpack.c.l.b16 %v919
    %v952 = vunpack.c.l.b16 %v920
    %v953 = vunpack.c.l.b16 %v921
    %v954 = vunpack.c.l.b16 %v922
    %v955 = vunpack.c.l.b16 %v923
    %v956 = vunpack.c.l.b16 %v924
    %v957 = vunpack.c.l.b16 %v925
    %v958 = vunpack.c.l.b16 %v926
    %v959 = vunpack.c.l.b16 %v927
    %v960 = vunpack.c.l.b16 %v928
    %v961 = vpack.c.b16 %v946, %v945
    %v962 = vpack.c.b16 %v948, %v947
    %v963 = vpack.c.b16 %v950, %v949
    %v964 = vpack.c.b16 %v952, %v951
    %v965 = vpack.c.b16 %v954, %v953
    %v966 = vpack.c.b16 %v956, %v955
    %v967 = vpack.c.b16 %v958, %v957
    %v968 = vpack.c.b16 %v960, %v959
    %977 = vmatprep.subr.bf16.mxu0 0
    %978 = vmatpush1.bf16.msra.mxu0 %v961
    %979 = vmatprep.subr.bf16.mxu0 0
    %980 = vmatpush1.bf16.msra.mxu0 %v962
    %981 = vmatprep.subr.bf16.mxu0 0
    %982 = vmatpush1.bf16.msra.mxu0 %v963
    %983 = vmatprep.subr.bf16.mxu0 0
    %984 = vmatpush1.bf16.msra.mxu0 %v964
    %985 = vmatprep.subr.bf16.mxu0 0
    %986 = vmatpush1.bf16.msra.mxu0 %v965
    %987 = vmatprep.subr.bf16.mxu0 0
    %988 = vmatpush1.bf16.msra.mxu0 %v966
    %989 = vmatprep.subr.bf16.mxu0 0
    %990 = vmatpush1.bf16.msra.mxu0 %v967
    %991 = vmatprep.subr.bf16.mxu0 0
    %992 = vmatpush1.bf16.msra.mxu0 %v968
    %993 = vmatprep.subr.bf16.mxu0 0
    %994 = vmatpush1.bf16.msra.mxu0 0
    %995 = vmatprep.subr.bf16.mxu0 0
    %996 = vmatpush1.bf16.msra.mxu0 0
    %997 = vmatprep.subr.bf16.mxu0 0
    %998 = vmatpush1.bf16.msra.mxu0 0
    %999 = vmatprep.subr.bf16.mxu0 0
    %1000 = vmatpush1.bf16.msra.mxu0 0
    %1001 = vmatprep.subr.bf16.mxu0 0
    %1002 = vmatpush1.bf16.msra.mxu0 0
    %1003 = vmatprep.subr.bf16.mxu0 0
    %1004 = vmatpush1.bf16.msra.mxu0 0
    %1005 = vmatprep.subr.bf16.mxu0 0
    %1006 = vmatpush1.bf16.msra.mxu0 0
    %1007 = vmatprep.subr.bf16.mxu0 0
    %1008 = vmatpush1.bf16.msra.mxu0 0
    %1009 = vmatprep.mubr.bf16.mxu0 0
    %1010 = vmatmul.mubr.bf16.gmra.mrb[0].mxu0 %v911
    %v1011 = vpop.f32.mrb[0].mxu0
    %v1012 = vadd.f32 0.0, %v1011
    %v1013 = vpop.f32.mrb[0].mxu0
    %v1014 = vpop.f32.mrb[0].mxu0
    %v1015 = vpop.f32.mrb[0].mxu0
    %1016 = vdwg.mxu0
    %v1017 = vadd.f32 %v912, %v1012
    %1018 = vst [vmem:[#allocation3] sm:$0xff] %v1017
    // Predicated region
    $region42: #{_lambda_.6} parent=1 // pred_check
      %p1019 = pneg %p42
    $region43: #{_lambda_.6} parent=1 // pred_check_branch
      %1021 = sbr.rel (%p1019) target = $region45
    $region44: #{_lambda_.6} parent=1 // pred_region
      %v1022 = vld [vmem:[%s0] sm:$0xff]
      %v1023 = vld [vmem:[#allocation3] sm:$0xff]
      %v1024 = vmul.f32 %v1023, 0.7
      %v1025 = vadd.f32 %v1022, %v1024
      %1026 = vst [vmem:[%s8] sm:$0xff] %v1025
    $region45: #{_lambda_.6} parent=1 // pred_fallthru
      _
    // Predicated region
    $region46: #{_lambda_.6} parent=1 // pred_check
      _
    $region47: #{_lambda_.6} parent=1 // pred_check_branch
      %1028 = sbr.rel (0) target = $region49
    $region48: #{_lambda_.6} parent=1 // pred_region
      _
    $region49: #{_lambda_.6} parent=1 // pred_fallthru
      _
    // Predicated region
    $region50: #{_lambda_.6} parent=1 // pred_check
      _
    $region51: #{_lambda_.6} parent=1 // pred_check_branch
      %1030 = sbr.rel (0) target = $region53
    $region52: #{_lambda_.6} parent=1 // pred_region
      _
    $region53: #{_lambda_.6} parent=1 // pred_fallthru
      _
    %1031 = vsyncpa [#allocation5], 1

// kernel: _lambda_.9
$region0: #{_lambda_.9}
  #allocation0 [shape = 'u32[]', space=smem, size = 0x4, offset = 0x4, fixed_abs, tag = 'smem constant byte address 0x4 - core index']
  #allocation1 [shape = 'u32[144,128]{1,0:T(1,128)}', space=vmem, size = 0x12000, scoped, tag = 'internal scratch']
  #allocation2 [shape = 'f32[8,128]{1,0:T(8,128)}', space=vmem, size = 0x1000, scoped, tag = 'scratch operand']
  #allocation3 [shape = 'f32[8,128]{1,0:T(8,128)}', space=vmem, size = 0x1000, scoped, tag = 'scratch operand']
  %s0 = inlined_call_operand.vmem [shape: f32[8,128], index: 0, kind: input, shape index: {}]
  %s1 = inlined_call_operand.vmem [shape: f32[1,128], index: 1, kind: input, shape index: {}]
  %s2 = inlined_call_operand.vmem [shape: bf16[128,384], index: 2, kind: input, shape index: {}]
  %s3 = inlined_call_operand.vmem [shape: bf16[128,384], index: 3, kind: input, shape index: {}]
  %s4 = inlined_call_operand.vmem [shape: bf16[384,128], index: 4, kind: input, shape index: {}]
  %s5 = inlined_call_operand.hbm [shape: f32[8,128], index: 5, kind: output, shape index: {}]
  %s6 = sld [smem:[#allocation0]]
  $region143: #{_lambda_.9} parent=0
    _
  %s8 = ssub.s32 1, %s6
  %s9 = scalar_select 0, %s8, %s6
  $region1: #{_lambda_.9} parent=0
    #allocation4 [shape = 'u8[65536]{0}', space=vmem, size = 0x10000, scoped, tag = 'input window, operand 2']
    #allocation5 [shape = 'u8[65536]{0}', space=vmem, size = 0x10000, scoped, tag = 'input window, operand 3']
    #allocation6 [shape = 'u8[4096]{0}', space=vmem, size = 0x1000, scoped, tag = 'output window, operand 0, single buffered']
    #allocation7 [shape = 's32[2]{0}', space=sflag, size = 0x8, scoped, tag = 'scoped memory for _lambda_.9']
    %10 = vsyncpa [#allocation7], 0
    loop: start=0, step=1, limit=5
    $region2: #{_lambda_.9} parent=1 // loop_pre_header
      _
    $region3: #{_lambda_.9} parent=1 // loop_header
      %s12 = sphi 0, %s16
      %p13 = scmp.ge.s32.totalorder %s12, 5
      %s20 = sphi 0, %s20
      %s22 = sphi 0, %s20
      %s23 = sphi 0, %s22
      %s37 = sphi 0, %s23
      %s41 = sphi 0, %s41
      %s43 = sphi 0, %s41
      %s44 = sphi 0, %s43
      %s58 = sphi 0, %s44
      %s64 = sphi 0, %s66
      %s67 = sphi 0, %s64
      %s68 = sphi 0, %s67
      %s84 = sphi 0, %s68
      %s90 = sphi 0, %s92
      %s93 = sphi 0, %s90
      %s94 = sphi 0, %s93
      %s110 = sphi 0, %s94
      %s116 = sphi 0, %s118
      %s119 = sphi 0, %s116
      %s120 = sphi 0, %s119
      %s136 = sphi 0, %s120
      %s140 = sphi 0, %s140
      %s142 = sphi 0, %s140
      %s143 = sphi 0, %s142
      %s157 = sphi 0, %s143
    $region4: #{_lambda_.9} parent=1 // loop_header_branch
      %15 = sbr.rel (%p13) target = $region8
    $region5: #{_lambda_.9} parent=1 // loop_body
      %s17 = ssub.s32 %s12, 1
      %s18 = ssub.s32 %s12, 2
      %s19 = sadd.s32 %s12, 1
      %s21 = sadd.s32 %s20, 1
      %p24 = scmp.eq.s32.totalorder %s12, 2
      %p25 = scmp.ne.s32.totalorder %s20, %s22
      %p26 = scmp.eq.s32.totalorder %s12, 0
      %p27 = por %p25, %p26
      %p28 = scmp.ne.s32.totalorder %s20, %s22
      %p29 = scmp.eq.s32.totalorder %s17, 2
      %p30 = por %p28, %p29
      %p31 = scmp.ne.s32.totalorder %s22, %s23
      %p32 = scmp.eq.s32.totalorder %s17, 0
      %p33 = por %p31, %p32
      %p34 = scmp.ne.s32.totalorder %s22, %s23
      %p35 = scmp.eq.s32.totalorder %s18, 2
      %p36 = por %p34, %p35
      %p38 = scmp.ne.s32.totalorder %s23, %s37
      %p39 = scmp.eq.s32.totalorder %s18, 0
      %p40 = por %p38, %p39
      %s42 = sadd.s32 %s41, 1
      %p45 = scmp.eq.s32.totalorder %s12, 2
      %p46 = scmp.ne.s32.totalorder %s41, %s43
      %p47 = scmp.eq.s32.totalorder %s12, 0
      %p48 = por %p46, %p47
      %p49 = scmp.ne.s32.totalorder %s41, %s43
      %p50 = scmp.eq.s32.totalorder %s17, 2
      %p51 = por %p49, %p50
      %p52 = scmp.ne.s32.totalorder %s43, %s44
      %p53 = scmp.eq.s32.totalorder %s17, 0
      %p54 = por %p52, %p53
      %p55 = scmp.ne.s32.totalorder %s43, %s44
      %p56 = scmp.eq.s32.totalorder %s18, 2
      %p57 = por %p55, %p56
      %p59 = scmp.ne.s32.totalorder %s44, %s58
      %p60 = scmp.eq.s32.totalorder %s18, 0
      %p61 = por %p59, %p60
      %s62 = ssub.s32 %s12, %s19
      %p63 = scmp.eq.s32.totalorder %s62, 0
      %s65 = sadd.s32 %s64, 1
      %s66 = scalar_select %p63, %s64, %s65
      %p69 = pneg %p63
      %p70 = scmp.eq.s32.totalorder %s12, 2
      %p71 = por %p69, %p70
      %p72 = scmp.ne.s32.totalorder %s64, %s67
      %p73 = scmp.eq.s32.totalorder %s12, 0
      %p74 = por %p72, %p73
      %p75 = scmp.ne.s32.totalorder %s64, %s67
      %p76 = scmp.eq.s32.totalorder %s17, 2
      %p77 = por %p75, %p76
      %p78 = scmp.ne.s32.totalorder %s67, %s68
      %p79 = scmp.eq.s32.totalorder %s17, 0
      %p80 = por %p78, %p79
      %p81 = scmp.ne.s32.totalorder %s67, %s68
      %p82 = scmp.eq.s32.totalorder %s18, 2
      %p83 = por %p81, %p82
      %p85 = scmp.ne.s32.totalorder %s68, %s84
      %p86 = scmp.eq.s32.totalorder %s18, 0
      %p87 = por %p85, %p86
      %s88 = ssub.s32 %s12, %s19
      %p89 = scmp.eq.s32.totalorder %s88, 0
      %s91 = sadd.s32 %s90, 1
      %s92 = scalar_select %p89, %s90, %s91
      %p95 = pneg %p89
      %p96 = scmp.eq.s32.totalorder %s12, 2
      %p97 = por %p95, %p96
      %p98 = scmp.ne.s32.totalorder %s90, %s93
      %p99 = scmp.eq.s32.totalorder %s12, 0
      %p100 = por %p98, %p99
      %p101 = scmp.ne.s32.totalorder %s90, %s93
      %p102 = scmp.eq.s32.totalorder %s17, 2
      %p103 = por %p101, %p102
      %p104 = scmp.ne.s32.totalorder %s93, %s94
      %p105 = scmp.eq.s32.totalorder %s17, 0
      %p106 = por %p104, %p105
      %p107 = scmp.ne.s32.totalorder %s93, %s94
      %p108 = scmp.eq.s32.totalorder %s18, 2
      %p109 = por %p107, %p108
      %p111 = scmp.ne.s32.totalorder %s94, %s110
      %p112 = scmp.eq.s32.totalorder %s18, 0
      %p113 = por %p111, %p112
      %s114 = ssub.s32 %s12, %s19
      %p115 = scmp.eq.s32.totalorder %s114, 0
      %s117 = sadd.s32 %s116, 1
      %s118 = scalar_select %p115, %s116, %s117
      %p121 = pneg %p115
      %p122 = scmp.eq.s32.totalorder %s12, 2
      %p123 = por %p121, %p122
      %p124 = scmp.ne.s32.totalorder %s116, %s119
      %p125 = scmp.eq.s32.totalorder %s12, 0
      %p126 = por %p124, %p125
      %p127 = scmp.ne.s32.totalorder %s116, %s119
      %p128 = scmp.eq.s32.totalorder %s17, 2
      %p129 = por %p127, %p128
      %p130 = scmp.ne.s32.totalorder %s119, %s120
      %p131 = scmp.eq.s32.totalorder %s17, 0
      %p132 = por %p130, %p131
      %p133 = scmp.ne.s32.totalorder %s119, %s120
      %p134 = scmp.eq.s32.totalorder %s18, 2
      %p135 = por %p133, %p134
      %p137 = scmp.ne.s32.totalorder %s120, %s136
      %p138 = scmp.eq.s32.totalorder %s18, 0
      %p139 = por %p137, %p138
      %s141 = sadd.s32 %s140, 1
      %p144 = scmp.eq.s32.totalorder %s12, 2
      %p145 = scmp.ne.s32.totalorder %s140, %s142
      %p146 = scmp.eq.s32.totalorder %s12, 0
      %p147 = por %p145, %p146
      %p148 = scmp.ne.s32.totalorder %s140, %s142
      %p149 = scmp.eq.s32.totalorder %s17, 2
      %p150 = por %p148, %p149
      %p151 = scmp.ne.s32.totalorder %s142, %s143
      %p152 = scmp.eq.s32.totalorder %s17, 0
      %p153 = por %p151, %p152
      %p154 = scmp.ne.s32.totalorder %s142, %s143
      %p155 = scmp.eq.s32.totalorder %s18, 2
      %p156 = por %p154, %p155
      %p158 = scmp.ne.s32.totalorder %s143, %s157
      %p159 = scmp.eq.s32.totalorder %s18, 0
      %p160 = por %p158, %p159
      %p161 = scmp.le.s32.totalorder 1, %s12
      %p162 = scmp.lt.s32.totalorder %s12, 4
      %p163 = pnand %p161, %p162
      %p164 = pneg %p163
      // Predicated region
      $region9: #{_lambda_.9} parent=5 // pred_check
        _
      $region10: #{_lambda_.9} parent=5 // pred_check_branch
        %166 = sbr.rel (%p163) target = $region12
      $region11: #{_lambda_.9} parent=5 // pred_region
        %s167 = ssub.s32 %s12, 1
        // Predicated region
        $region13: #{_lambda_.9} parent=11 // pred_check
          %p168 = pneg %p33
        $region14: #{_lambda_.9} parent=11 // pred_check_branch
          %170 = sbr.rel (%p168) target = $region16
        $region15: #{_lambda_.9} parent=11 // pred_region
          _
        $region16: #{_lambda_.9} parent=11 // pred_fallthru
          _
        // Predicated region
        $region17: #{_lambda_.9} parent=11 // pred_check
          %p171 = pneg %p54
        $region18: #{_lambda_.9} parent=11 // pred_check_branch
          %173 = sbr.rel (%p171) target = $region20
        $region19: #{_lambda_.9} parent=11 // pred_region
          _
        $region20: #{_lambda_.9} parent=11 // pred_fallthru
          _
      $region12: #{_lambda_.9} parent=5 // pred_fallthru
        _
      %p174 = scmp.lt.s32.totalorder %s12, 3
      // Predicated region
      $region21: #{_lambda_.9} parent=5 // pred_check
        %p175 = pneg %p174
      $region22: #{_lambda_.9} parent=5 // pred_check_branch
        %177 = sbr.rel (%p175) target = $region24
      $region23: #{_lambda_.9} parent=5 // pred_region
        // Predicated region
        $region25: #{_lambda_.9} parent=23 // pred_check
          %p178 = pneg %p74
        $region26: #{_lambda_.9} parent=23 // pred_check_branch
          %180 = sbr.rel (%p178) target = $region28
        $region27: #{_lambda_.9} parent=23 // pred_region
          %s181 = sand.u32 %s64, 1
          %s182 = sand.u32 %s64, 1
          %s183 = smul.addr %s182, 64
          %s184 = scalar_lea.vmem [#allocation4], %s183
          %s185 = smul.addr %s12, 4
          %s186 = scalar_lea.vmem %s2, %s185
          // Predicated region
          $region29: #{_lambda_.9} parent=27 // pred_check
            _
          $region30: #{_lambda_.9} parent=27 // pred_check_branch
            %188 = sbr.rel (0) target = $region32
          $region31: #{_lambda_.9} parent=27 // pred_region
            // Predicated region
            $region33: #{_lambda_.9} parent=31 // pred_check
              _
            $region34: #{_lambda_.9} parent=31 // pred_check_branch
              %190 = sbr.rel target = $region36
            $region35: #{_lambda_.9} parent=31 // pred_region
              // Predicated region
              $region48: #{_lambda_.9} parent=35 // pred_check
                _
              $region49: #{_lambda_.9} parent=35 // pred_check_branch
                %235 = sbr.rel (0) target = $region51
              $region50: #{_lambda_.9} parent=35 // pred_region
                loop: start=0, step=1, limit=1
                $region52: #{_lambda_.9} parent=50 // loop_pre_header
                  _
                $region53: #{_lambda_.9} parent=50 // loop_header
                  %s237 = sphi 0, %s241
                  %p238 = scmp.ge.s32.totalorder %s237, 1
                  %s242 = sphi %s186, %s186
                  %s243 = sphi %s184, %s184
                $region54: #{_lambda_.9} parent=50 // loop_header_branch
                  %240 = sbr.rel (%p238) target = $region58
                $region55: #{_lambda_.9} parent=50 // loop_body
                  _
                $region56: #{_lambda_.9} parent=50 // loop_footer
                  %s241 = sadd.s32 1, %s237
                $region57: #{_lambda_.9} parent=50 // loop_footer_branch
                  %236 = sbr.rel target = $region53
                $region58: #{_lambda_.9} parent=50 // loop_exit
                  _
                loop: start=0, step=1, limit=1
                $region59: #{_lambda_.9} parent=50 // loop_pre_header
                  _
                $region60: #{_lambda_.9} parent=50 // loop_header
                  %s246 = sphi 0, %s250
                  %p247 = scmp.ge.s32.totalorder %s246, 1
                  %s251 = sphi %s186, %s186
                  %s252 = sphi %s184, %s184
                $region61: #{_lambda_.9} parent=50 // loop_header_branch
                  %249 = sbr.rel (%p247) target = $region65
                $region62: #{_lambda_.9} parent=50 // loop_body
                  %v253 = vld [vmem:[%s251] sm:$0xf]
                  %254 = vst [vmem:[%s252] sm:$0xf] %v253
                  %v255 = vld [vmem:[%s251 + $0xc] sm:$0xf]
                  %256 = vst [vmem:[%s252 + $0x4] sm:$0xf] %v255
                  %v257 = vld [vmem:[%s251 + $0x18] sm:$0xf]
                  %258 = vst [vmem:[%s252 + $0x8] sm:$0xf] %v257
                  %v259 = vld [vmem:[%s251 + $0x24] sm:$0xf]
                  %260 = vst [vmem:[%s252 + $0xc] sm:$0xf] %v259
                  %v261 = vld [vmem:[%s251 + $0x30] sm:$0xf]
                  %262 = vst [vmem:[%s252 + $0x10] sm:$0xf] %v261
                  %v263 = vld [vmem:[%s251 + $0x3c] sm:$0xf]
                  %264 = vst [vmem:[%s252 + $0x14] sm:$0xf] %v263
                  %v265 = vld [vmem:[%s251 + $0x48] sm:$0xf]
                  %266 = vst [vmem:[%s252 + $0x18] sm:$0xf] %v265
                  %v267 = vld [vmem:[%s251 + $0x54] sm:$0xf]
                  %268 = vst [vmem:[%s252 + $0x1c] sm:$0xf] %v267
                  %v269 = vld [vmem:[%s251 + $0x60] sm:$0xf]
                  %270 = vst [vmem:[%s252 + $0x20] sm:$0xf] %v269
                  %v271 = vld [vmem:[%s251 + $0x6c] sm:$0xf]
                  %272 = vst [vmem:[%s252 + $0x24] sm:$0xf] %v271
                  %v273 = vld [vmem:[%s251 + $0x78] sm:$0xf]
                  %274 = vst [vmem:[%s252 + $0x28] sm:$0xf] %v273
                  %v275 = vld [vmem:[%s251 + $0x84] sm:$0xf]
                  %276 = vst [vmem:[%s252 + $0x2c] sm:$0xf] %v275
                  %v277 = vld [vmem:[%s251 + $0x90] sm:$0xf]
                  %278 = vst [vmem:[%s252 + $0x30] sm:$0xf] %v277
                  %v279 = vld [vmem:[%s251 + $0x9c] sm:$0xf]
                  %280 = vst [vmem:[%s252 + $0x34] sm:$0xf] %v279
                  %v281 = vld [vmem:[%s251 + $0xa8] sm:$0xf]
                  %282 = vst [vmem:[%s252 + $0x38] sm:$0xf] %v281
                  %v283 = vld [vmem:[%s251 + $0xb4] sm:$0xf]
                  %284 = vst [vmem:[%s252 + $0x3c] sm:$0xf] %v283
                $region63: #{_lambda_.9} parent=50 // loop_footer
                  %s250 = sadd.s32 1, %s246
                $region64: #{_lambda_.9} parent=50 // loop_footer_branch
                  %245 = sbr.rel target = $region60
                $region65: #{_lambda_.9} parent=50 // loop_exit
                  _
              $region51: #{_lambda_.9} parent=35 // pred_fallthru
                _
            $region36: #{_lambda_.9} parent=31 // pred_fallthru
              _
            // Predicated region
            $region37: #{_lambda_.9} parent=31 // pred_check
              _
            $region38: #{_lambda_.9} parent=31 // pred_check_branch
              %192 = sbr.rel (0) target = $region40
            $region39: #{_lambda_.9} parent=31 // pred_region
              loop: start=0, step=1, limit=1
              $region41: #{_lambda_.9} parent=39 // loop_pre_header
                _
              $region42: #{_lambda_.9} parent=39 // loop_header
                %s195 = sphi 0, %s199
                %p196 = scmp.ge.s32.totalorder %s195, 1
                %s200 = sphi %s186, %s186
                %s201 = sphi %s184, %s184
              $region43: #{_lambda_.9} parent=39 // loop_header_branch
                %198 = sbr.rel (%p196) target = $region47
              $region44: #{_lambda_.9} parent=39 // loop_body
                %v202 = vld [vmem:[%s200] sm:$0xf]
                %203 = vst [vmem:[%s201] sm:$0xf] %v202
                %v204 = vld [vmem:[%s200 + $0xc] sm:$0xf]
                %205 = vst [vmem:[%s201 + $0x4] sm:$0xf] %v204
                %v206 = vld [vmem:[%s200 + $0x18] sm:$0xf]
                %207 = vst [vmem:[%s201 + $0x8] sm:$0xf] %v206
                %v208 = vld [vmem:[%s200 + $0x24] sm:$0xf]
                %209 = vst [vmem:[%s201 + $0xc] sm:$0xf] %v208
                %v210 = vld [vmem:[%s200 + $0x30] sm:$0xf]
                %211 = vst [vmem:[%s201 + $0x10] sm:$0xf] %v210
                %v212 = vld [vmem:[%s200 + $0x3c] sm:$0xf]
                %213 = vst [vmem:[%s201 + $0x14] sm:$0xf] %v212
                %v214 = vld [vmem:[%s200 + $0x48] sm:$0xf]
                %215 = vst [vmem:[%s201 + $0x18] sm:$0xf] %v214
                %v216 = vld [vmem:[%s200 + $0x54] sm:$0xf]
                %217 = vst [vmem:[%s201 + $0x1c] sm:$0xf] %v216
                %v218 = vld [vmem:[%s200 + $0x60] sm:$0xf]
                %219 = vst [vmem:[%s201 + $0x20] sm:$0xf] %v218
                %v220 = vld [vmem:[%s200 + $0x6c] sm:$0xf]
                %221 = vst [vmem:[%s201 + $0x24] sm:$0xf] %v220
                %v222 = vld [vmem:[%s200 + $0x78] sm:$0xf]
                %223 = vst [vmem:[%s201 + $0x28] sm:$0xf] %v222
                %v224 = vld [vmem:[%s200 + $0x84] sm:$0xf]
                %225 = vst [vmem:[%s201 + $0x2c] sm:$0xf] %v224
                %v226 = vld [vmem:[%s200 + $0x90] sm:$0xf]
                %227 = vst [vmem:[%s201 + $0x30] sm:$0xf] %v226
                %v228 = vld [vmem:[%s200 + $0x9c] sm:$0xf]
                %229 = vst [vmem:[%s201 + $0x34] sm:$0xf] %v228
                %v230 = vld [vmem:[%s200 + $0xa8] sm:$0xf]
                %231 = vst [vmem:[%s201 + $0x38] sm:$0xf] %v230
                %v232 = vld [vmem:[%s200 + $0xb4] sm:$0xf]
                %233 = vst [vmem:[%s201 + $0x3c] sm:$0xf] %v232
              $region45: #{_lambda_.9} parent=39 // loop_footer
                %s199 = sadd.s32 1, %s195
              $region46: #{_lambda_.9} parent=39 // loop_footer_branch
                %194 = sbr.rel target = $region42
              $region47: #{_lambda_.9} parent=39 // loop_exit
                _
            $region40: #{_lambda_.9} parent=31 // pred_fallthru
              _
          $region32: #{_lambda_.9} parent=27 // pred_fallthru
            _
          %285 = vnop
        $region28: #{_lambda_.9} parent=23 // pred_fallthru
          _
        // Predicated region
        $region66: #{_lambda_.9} parent=23 // pred_check
          %p286 = pneg %p100
        $region67: #{_lambda_.9} parent=23 // pred_check_branch
          %288 = sbr.rel (%p286) target = $region69
        $region68: #{_lambda_.9} parent=23 // pred_region
          %s289 = sand.u32 %s90, 1
          %s290 = sand.u32 %s90, 1
          %s291 = smul.addr %s290, 64
          %s292 = scalar_lea.vmem [#allocation5], %s291
          %s293 = smul.addr %s12, 4
          %s294 = scalar_lea.vmem %s3, %s293
          // Predicated region
          $region70: #{_lambda_.9} parent=68 // pred_check
            _
          $region71: #{_lambda_.9} parent=68 // pred_check_branch
            %296 = sbr.rel (0) target = $region73
          $region72: #{_lambda_.9} parent=68 // pred_region
            // Predicated region
            $region74: #{_lambda_.9} parent=72 // pred_check
              _
            $region75: #{_lambda_.9} parent=72 // pred_check_branch
              %298 = sbr.rel target = $region77
            $region76: #{_lambda_.9} parent=72 // pred_region
              // Predicated region
              $region89: #{_lambda_.9} parent=76 // pred_check
                _
              $region90: #{_lambda_.9} parent=76 // pred_check_branch
                %343 = sbr.rel (0) target = $region92
              $region91: #{_lambda_.9} parent=76 // pred_region
                loop: start=0, step=1, limit=1
                $region93: #{_lambda_.9} parent=91 // loop_pre_header
                  _
                $region94: #{_lambda_.9} parent=91 // loop_header
                  %s345 = sphi 0, %s349
                  %p346 = scmp.ge.s32.totalorder %s345, 1
                  %s350 = sphi %s294, %s294
                  %s351 = sphi %s292, %s292
                $region95: #{_lambda_.9} parent=91 // loop_header_branch
                  %348 = sbr.rel (%p346) target = $region99
                $region96: #{_lambda_.9} parent=91 // loop_body
                  _
                $region97: #{_lambda_.9} parent=91 // loop_footer
                  %s349 = sadd.s32 1, %s345
                $region98: #{_lambda_.9} parent=91 // loop_footer_branch
                  %344 = sbr.rel target = $region94
                $region99: #{_lambda_.9} parent=91 // loop_exit
                  _
                loop: start=0, step=1, limit=1
                $region100: #{_lambda_.9} parent=91 // loop_pre_header
                  _
                $region101: #{_lambda_.9} parent=91 // loop_header
                  %s354 = sphi 0, %s358
                  %p355 = scmp.ge.s32.totalorder %s354, 1
                  %s359 = sphi %s294, %s294
                  %s360 = sphi %s292, %s292
                $region102: #{_lambda_.9} parent=91 // loop_header_branch
                  %357 = sbr.rel (%p355) target = $region106
                $region103: #{_lambda_.9} parent=91 // loop_body
                  %v361 = vld [vmem:[%s359] sm:$0xf]
                  %362 = vst [vmem:[%s360] sm:$0xf] %v361
                  %v363 = vld [vmem:[%s359 + $0xc] sm:$0xf]
                  %364 = vst [vmem:[%s360 + $0x4] sm:$0xf] %v363
                  %v365 = vld [vmem:[%s359 + $0x18] sm:$0xf]
                  %366 = vst [vmem:[%s360 + $0x8] sm:$0xf] %v365
                  %v367 = vld [vmem:[%s359 + $0x24] sm:$0xf]
                  %368 = vst [vmem:[%s360 + $0xc] sm:$0xf] %v367
                  %v369 = vld [vmem:[%s359 + $0x30] sm:$0xf]
                  %370 = vst [vmem:[%s360 + $0x10] sm:$0xf] %v369
                  %v371 = vld [vmem:[%s359 + $0x3c] sm:$0xf]
                  %372 = vst [vmem:[%s360 + $0x14] sm:$0xf] %v371
                  %v373 = vld [vmem:[%s359 + $0x48] sm:$0xf]
                  %374 = vst [vmem:[%s360 + $0x18] sm:$0xf] %v373
                  %v375 = vld [vmem:[%s359 + $0x54] sm:$0xf]
                  %376 = vst [vmem:[%s360 + $0x1c] sm:$0xf] %v375
                  %v377 = vld [vmem:[%s359 + $0x60] sm:$0xf]
                  %378 = vst [vmem:[%s360 + $0x20] sm:$0xf] %v377
                  %v379 = vld [vmem:[%s359 + $0x6c] sm:$0xf]
                  %380 = vst [vmem:[%s360 + $0x24] sm:$0xf] %v379
                  %v381 = vld [vmem:[%s359 + $0x78] sm:$0xf]
                  %382 = vst [vmem:[%s360 + $0x28] sm:$0xf] %v381
                  %v383 = vld [vmem:[%s359 + $0x84] sm:$0xf]
                  %384 = vst [vmem:[%s360 + $0x2c] sm:$0xf] %v383
                  %v385 = vld [vmem:[%s359 + $0x90] sm:$0xf]
                  %386 = vst [vmem:[%s360 + $0x30] sm:$0xf] %v385
                  %v387 = vld [vmem:[%s359 + $0x9c] sm:$0xf]
                  %388 = vst [vmem:[%s360 + $0x34] sm:$0xf] %v387
                  %v389 = vld [vmem:[%s359 + $0xa8] sm:$0xf]
                  %390 = vst [vmem:[%s360 + $0x38] sm:$0xf] %v389
                  %v391 = vld [vmem:[%s359 + $0xb4] sm:$0xf]
                  %392 = vst [vmem:[%s360 + $0x3c] sm:$0xf] %v391
                $region104: #{_lambda_.9} parent=91 // loop_footer
                  %s358 = sadd.s32 1, %s354
                $region105: #{_lambda_.9} parent=91 // loop_footer_branch
                  %353 = sbr.rel target = $region101
                $region106: #{_lambda_.9} parent=91 // loop_exit
                  _
              $region92: #{_lambda_.9} parent=76 // pred_fallthru
                _
            $region77: #{_lambda_.9} parent=72 // pred_fallthru
              _
            // Predicated region
            $region78: #{_lambda_.9} parent=72 // pred_check
              _
            $region79: #{_lambda_.9} parent=72 // pred_check_branch
              %300 = sbr.rel (0) target = $region81
            $region80: #{_lambda_.9} parent=72 // pred_region
              loop: start=0, step=1, limit=1
              $region82: #{_lambda_.9} parent=80 // loop_pre_header
                _
              $region83: #{_lambda_.9} parent=80 // loop_header
                %s303 = sphi 0, %s307
                %p304 = scmp.ge.s32.totalorder %s303, 1
                %s308 = sphi %s294, %s294
                %s309 = sphi %s292, %s292
              $region84: #{_lambda_.9} parent=80 // loop_header_branch
                %306 = sbr.rel (%p304) target = $region88
              $region85: #{_lambda_.9} parent=80 // loop_body
                %v310 = vld [vmem:[%s308] sm:$0xf]
                %311 = vst [vmem:[%s309] sm:$0xf] %v310
                %v312 = vld [vmem:[%s308 + $0xc] sm:$0xf]
                %313 = vst [vmem:[%s309 + $0x4] sm:$0xf] %v312
                %v314 = vld [vmem:[%s308 + $0x18] sm:$0xf]
                %315 = vst [vmem:[%s309 + $0x8] sm:$0xf] %v314
                %v316 = vld [vmem:[%s308 + $0x24] sm:$0xf]
                %317 = vst [vmem:[%s309 + $0xc] sm:$0xf] %v316
                %v318 = vld [vmem:[%s308 + $0x30] sm:$0xf]
                %319 = vst [vmem:[%s309 + $0x10] sm:$0xf] %v318
                %v320 = vld [vmem:[%s308 + $0x3c] sm:$0xf]
                %321 = vst [vmem:[%s309 + $0x14] sm:$0xf] %v320
                %v322 = vld [vmem:[%s308 + $0x48] sm:$0xf]
                %323 = vst [vmem:[%s309 + $0x18] sm:$0xf] %v322
                %v324 = vld [vmem:[%s308 + $0x54] sm:$0xf]
                %325 = vst [vmem:[%s309 + $0x1c] sm:$0xf] %v324
                %v326 = vld [vmem:[%s308 + $0x60] sm:$0xf]
                %327 = vst [vmem:[%s309 + $0x20] sm:$0xf] %v326
                %v328 = vld [vmem:[%s308 + $0x6c] sm:$0xf]
                %329 = vst [vmem:[%s309 + $0x24] sm:$0xf] %v328
                %v330 = vld [vmem:[%s308 + $0x78] sm:$0xf]
                %331 = vst [vmem:[%s309 + $0x28] sm:$0xf] %v330
                %v332 = vld [vmem:[%s308 + $0x84] sm:$0xf]
                %333 = vst [vmem:[%s309 + $0x2c] sm:$0xf] %v332
                %v334 = vld [vmem:[%s308 + $0x90] sm:$0xf]
                %335 = vst [vmem:[%s309 + $0x30] sm:$0xf] %v334
                %v336 = vld [vmem:[%s308 + $0x9c] sm:$0xf]
                %337 = vst [vmem:[%s309 + $0x34] sm:$0xf] %v336
                %v338 = vld [vmem:[%s308 + $0xa8] sm:$0xf]
                %339 = vst [vmem:[%s309 + $0x38] sm:$0xf] %v338
                %v340 = vld [vmem:[%s308 + $0xb4] sm:$0xf]
                %341 = vst [vmem:[%s309 + $0x3c] sm:$0xf] %v340
              $region86: #{_lambda_.9} parent=80 // loop_footer
                %s307 = sadd.s32 1, %s303
              $region87: #{_lambda_.9} parent=80 // loop_footer_branch
                %302 = sbr.rel target = $region83
              $region88: #{_lambda_.9} parent=80 // loop_exit
                _
            $region81: #{_lambda_.9} parent=72 // pred_fallthru
              _
          $region73: #{_lambda_.9} parent=68 // pred_fallthru
            _
          %393 = vnop
        $region69: #{_lambda_.9} parent=23 // pred_fallthru
          _
        // Predicated region
        $region107: #{_lambda_.9} parent=23 // pred_check
          %p394 = pneg %p126
        $region108: #{_lambda_.9} parent=23 // pred_check_branch
          %396 = sbr.rel (%p394) target = $region110
        $region109: #{_lambda_.9} parent=23 // pred_region
          %s397 = smul.u32 16, %s12
          %p398 = scmp.lt.s32.totalorder %s397, 47
          %s399 = scalar_select %p398, %s397, 47
          %s400 = smul.addr %s399, 4
          %s401 = scalar_lea.vmem %s4, %s400
          %s402 = smul.u32 16, %s12
        $region110: #{_lambda_.9} parent=23 // pred_fallthru
          _
      $region24: #{_lambda_.9} parent=5 // pred_fallthru
        _
      %p403 = scmp.le.s32.totalorder 1, %s12
      %p404 = scmp.lt.s32.totalorder %s12, 4
      %p405 = pnand %p403, %p404
      %p406 = pneg %p405
      // Predicated region
      $region111: #{_lambda_.9} parent=5 // pred_check
        _
      $region112: #{_lambda_.9} parent=5 // pred_check_branch
        %408 = sbr.rel (%p405) target = $region114
      $region113: #{_lambda_.9} parent=5 // pred_region
        %s409 = ssub.s32 %s12, 1
        %s410 = sand.u32 %s67, 1
        %s411 = sand.u32 %s67, 1
        %s412 = smul.addr %s411, 64
        %s413 = scalar_lea.vmem [#allocation4], %s412
        // Predicated region
        $region115: #{_lambda_.9} parent=113 // pred_check
          %p414 = pneg %p80
        $region116: #{_lambda_.9} parent=113 // pred_check_branch
          %416 = sbr.rel (%p414) target = $region118
        $region117: #{_lambda_.9} parent=113 // pred_region
          _
        $region118: #{_lambda_.9} parent=113 // pred_fallthru
          _
        %s417 = sand.u32 %s93, 1
        %s418 = sand.u32 %s93, 1
        %s419 = smul.addr %s418, 64
        %s420 = scalar_lea.vmem [#allocation5], %s419
        // Predicated region
        $region119: #{_lambda_.9} parent=113 // pred_check
          %p421 = pneg %p106
        $region120: #{_lambda_.9} parent=113 // pred_check_branch
          %423 = sbr.rel (%p421) target = $region122
        $region121: #{_lambda_.9} parent=113 // pred_region
          _
        $region122: #{_lambda_.9} parent=113 // pred_fallthru
          _
        %p424 = pneg %p33
        %p425 = pneg %p30
        %p426 = pneg %p54
        %p427 = pneg %p51
        %s428 = sand.u32 %s67, 1
        %s429 = sand.u32 %s67, 1
        %s430 = smul.addr %s429, 64
        %s431 = scalar_lea.vmem [#allocation4], %s430
        %p432 = pneg %p80
        %p433 = pneg %p77
        %s434 = sand.u32 %s93, 1
        %s435 = sand.u32 %s93, 1
        %s436 = smul.addr %s435, 64
        %s437 = scalar_lea.vmem [#allocation5], %s436
        %p438 = pneg %p106
        %p439 = pneg %p103
        %s440 = smul.u32 16, %s17
        %p441 = scmp.lt.s32.totalorder %s440, 47
        %s442 = scalar_select %p441, %s440, 47
        %s443 = smul.addr %s442, 4
        %s444 = scalar_lea.vmem %s4, %s443
        %p445 = pneg %p132
        %p446 = pneg %p129
        %p447 = pneg %p153
        %p448 = pneg %p150
        %s449 = smul.u32 16, %s17
        %p450 = scmp.lt.s32.totalorder %s449, 47
        %s451 = scalar_select %p450, %s449, 47
        %s452 = smul.addr %s451, 4
        %s453 = scalar_lea.vmem %s4, %s452
        %s454 = smul.u32 16, %s17
        %p456 = scmp.eq.s32.totalorder %s17, 0
        // Predicated region
        $region123: #{_lambda_.9} parent=113 // pred_check
          %p457 = pneg %p456
        $region124: #{_lambda_.9} parent=113 // pred_check_branch
          %459 = sbr.rel (%p457) target = $region126
        $region125: #{_lambda_.9} parent=113 // pred_region
          %v460 = vld [vmem:[%s0] sm:$0xff]
          %v461 = vmul.f32 %v460, %v460
          %462 = vadd.xlane.f32.xlu0 %v461
          %v463 = vpop.xlane.xlu0 %462
          %v464 = vrcp.pop 128.0
          %v465 = vmul.f32 %v463, %v464
          %v466 = vadd.f32 %v465, 1e-06
          %v467 = vrsqrt.pop %v466
          %v468 = vmul.f32 %v460, %v467
          %v469 = vld [vmem:[%s1] sm:$0x1]
          %v471 = vlaneseq
          %v472 = vshrl.u32 %v471, 7
          %v473 = vsub.s32 0, %v472
          %v474 = vrot.slane %v469, %v473
          %v476 = vmul.f32 %v468, %v474
          %477 = vst [vmem:[#allocation2] sm:$0xff] %v476
          %478 = vst [vmem:[#allocation3] sm:$0xff] 0.0
        $region126: #{_lambda_.9} parent=113 // pred_fallthru
          _
        %v479 = vld [vmem:[#allocation2] sm:$0xff]
        %v480 = vpack.c.bf16 %v479, %v479
        %v481 = vld [vmem:[%s413] sm:$0xf]
        %v482 = vld [vmem:[%s413 + $0x4] sm:$0xf]
        %v483 = vld [vmem:[%s413 + $0x8] sm:$0xf]
        %v484 = vld [vmem:[%s413 + $0xc] sm:$0xf]
        %v485 = vld [vmem:[%s413 + $0x10] sm:$0xf]
        %v486 = vld [vmem:[%s413 + $0x14] sm:$0xf]
        %v487 = vld [vmem:[%s413 + $0x18] sm:$0xf]
        %v488 = vld [vmem:[%s413 + $0x1c] sm:$0xf]
        %v489 = vld [vmem:[%s413 + $0x20] sm:$0xf]
        %v490 = vld [vmem:[%s413 + $0x24] sm:$0xf]
        %v491 = vld [vmem:[%s413 + $0x28] sm:$0xf]
        %v492 = vld [vmem:[%s413 + $0x2c] sm:$0xf]
        %v493 = vld [vmem:[%s413 + $0x30] sm:$0xf]
        %v494 = vld [vmem:[%s413 + $0x34] sm:$0xf]
        %v495 = vld [vmem:[%s413 + $0x38] sm:$0xf]
        %v496 = vld [vmem:[%s413 + $0x3c] sm:$0xf]
        %v513 = vunpack.c.l.b16 %v481
        %v514 = vunpack.c.l.b16 %v482
        %v515 = vunpack.c.l.b16 %v483
        %v516 = vunpack.c.l.b16 %v484
        %v517 = vunpack.c.l.b16 %v485
        %v518 = vunpack.c.l.b16 %v486
        %v519 = vunpack.c.l.b16 %v487
        %v520 = vunpack.c.l.b16 %v488
        %v521 = vunpack.c.l.b16 %v489
        %v522 = vunpack.c.l.b16 %v490
        %v523 = vunpack.c.l.b16 %v491
        %v524 = vunpack.c.l.b16 %v492
        %v525 = vunpack.c.l.b16 %v493
        %v526 = vunpack.c.l.b16 %v494
        %v527 = vunpack.c.l.b16 %v495
        %v528 = vunpack.c.l.b16 %v496
        %v529 = vpack.c.b16 %v514, %v513
        %v530 = vpack.c.b16 %v516, %v515
        %v531 = vpack.c.b16 %v518, %v517
        %v532 = vpack.c.b16 %v520, %v519
        %v533 = vpack.c.b16 %v522, %v521
        %v534 = vpack.c.b16 %v524, %v523
        %v535 = vpack.c.b16 %v526, %v525
        %v536 = vpack.c.b16 %v528, %v527
        %545 = vmatprep.subr.bf16.mxu0 0
        %546 = vmatpush1.bf16.msra.mxu0 %v529
        %547 = vmatprep.subr.bf16.mxu0 0
        %548 = vmatpush1.bf16.msra.mxu0 %v530
        %549 = vmatprep.subr.bf16.mxu0 0
        %550 = vmatpush1.bf16.msra.mxu0 %v531
        %551 = vmatprep.subr.bf16.mxu0 0
        %552 = vmatpush1.bf16.msra.mxu0 %v532
        %553 = vmatprep.subr.bf16.mxu0 0
        %554 = vmatpush1.bf16.msra.mxu0 %v533
        %555 = vmatprep.subr.bf16.mxu0 0
        %556 = vmatpush1.bf16.msra.mxu0 %v534
        %557 = vmatprep.subr.bf16.mxu0 0
        %558 = vmatpush1.bf16.msra.mxu0 %v535
        %559 = vmatprep.subr.bf16.mxu0 0
        %560 = vmatpush1.bf16.msra.mxu0 %v536
        %561 = vmatprep.subr.bf16.mxu0 0
        %562 = vmatpush1.bf16.msra.mxu0 0
        %563 = vmatprep.subr.bf16.mxu0 0
        %564 = vmatpush1.bf16.msra.mxu0 0
        %565 = vmatprep.subr.bf16.mxu0 0
        %566 = vmatpush1.bf16.msra.mxu0 0
        %567 = vmatprep.subr.bf16.mxu0 0
        %568 = vmatpush1.bf16.msra.mxu0 0
        %569 = vmatprep.subr.bf16.mxu0 0
        %570 = vmatpush1.bf16.msra.mxu0 0
        %571 = vmatprep.subr.bf16.mxu0 0
        %572 = vmatpush1.bf16.msra.mxu0 0
        %573 = vmatprep.subr.bf16.mxu0 0
        %574 = vmatpush1.bf16.msra.mxu0 0
        %575 = vmatprep.subr.bf16.mxu0 0
        %576 = vmatpush1.bf16.msra.mxu0 0
        %577 = vmatprep.mubr.bf16.mxu0 0
        %578 = vmatmul.mubr.bf16.gmra.mrb[0].mxu0 %v480
        %v579 = vpop.f32.mrb[0].mxu0
        %v580 = vadd.f32 0.0, %v579
        %v581 = vpop.f32.mrb[0].mxu0
        %v582 = vpop.f32.mrb[0].mxu0
        %v583 = vpop.f32.mrb[0].mxu0
        %584 = vdwg.mxu0
        %v585 = vld [vmem:[%s420] sm:$0xf]
        %v586 = vld [vmem:[%s420 + $0x4] sm:$0xf]
        %v587 = vld [vmem:[%s420 + $0x8] sm:$0xf]
        %v588 = vld [vmem:[%s420 + $0xc] sm:$0xf]
        %v589 = vld [vmem:[%s420 + $0x10] sm:$0xf]
        %v590 = vld [vmem:[%s420 + $0x14] sm:$0xf]
        %v591 = vld [vmem:[%s420 + $0x18] sm:$0xf]
        %v592 = vld [vmem:[%s420 + $0x1c] sm:$0xf]
        %v593 = vld [vmem:[%s420 + $0x20] sm:$0xf]
        %v594 = vld [vmem:[%s420 + $0x24] sm:$0xf]
        %v595 = vld [vmem:[%s420 + $0x28] sm:$0xf]
        %v596 = vld [vmem:[%s420 + $0x2c] sm:$0xf]
        %v597 = vld [vmem:[%s420 + $0x30] sm:$0xf]
        %v598 = vld [vmem:[%s420 + $0x34] sm:$0xf]
        %v599 = vld [vmem:[%s420 + $0x38] sm:$0xf]
        %v600 = vld [vmem:[%s420 + $0x3c] sm:$0xf]
        %v617 = vunpack.c.l.b16 %v585
        %v618 = vunpack.c.l.b16 %v586
        %v619 = vunpack.c.l.b16 %v587
        %v620 = vunpack.c.l.b16 %v588
        %v621 = vunpack.c.l.b16 %v589
        %v622 = vunpack.c.l.b16 %v590
        %v623 = vunpack.c.l.b16 %v591
        %v624 = vunpack.c.l.b16 %v592
        %v625 = vunpack.c.l.b16 %v593
        %v626 = vunpack.c.l.b16 %v594
        %v627 = vunpack.c.l.b16 %v595
        %v628 = vunpack.c.l.b16 %v596
        %v629 = vunpack.c.l.b16 %v597
        %v630 = vunpack.c.l.b16 %v598
        %v631 = vunpack.c.l.b16 %v599
        %v632 = vunpack.c.l.b16 %v600
        %v633 = vpack.c.b16 %v618, %v617
        %v634 = vpack.c.b16 %v620, %v619
        %v635 = vpack.c.b16 %v622, %v621
        %v636 = vpack.c.b16 %v624, %v623
        %v637 = vpack.c.b16 %v626, %v625
        %v638 = vpack.c.b16 %v628, %v627
        %v639 = vpack.c.b16 %v630, %v629
        %v640 = vpack.c.b16 %v632, %v631
        %649 = vmatprep.subr.bf16.mxu0 0
        %650 = vmatpush1.bf16.msra.mxu0 %v633
        %651 = vmatprep.subr.bf16.mxu0 0
        %652 = vmatpush1.bf16.msra.mxu0 %v634
        %653 = vmatprep.subr.bf16.mxu0 0
        %654 = vmatpush1.bf16.msra.mxu0 %v635
        %655 = vmatprep.subr.bf16.mxu0 0
        %656 = vmatpush1.bf16.msra.mxu0 %v636
        %657 = vmatprep.subr.bf16.mxu0 0
        %658 = vmatpush1.bf16.msra.mxu0 %v637
        %659 = vmatprep.subr.bf16.mxu0 0
        %660 = vmatpush1.bf16.msra.mxu0 %v638
        %661 = vmatprep.subr.bf16.mxu0 0
        %662 = vmatpush1.bf16.msra.mxu0 %v639
        %663 = vmatprep.subr.bf16.mxu0 0
        %664 = vmatpush1.bf16.msra.mxu0 %v640
        %665 = vmatprep.subr.bf16.mxu0 0
        %666 = vmatpush1.bf16.msra.mxu0 0
        %667 = vmatprep.subr.bf16.mxu0 0
        %668 = vmatpush1.bf16.msra.mxu0 0
        %669 = vmatprep.subr.bf16.mxu0 0
        %670 = vmatpush1.bf16.msra.mxu0 0
        %671 = vmatprep.subr.bf16.mxu0 0
        %672 = vmatpush1.bf16.msra.mxu0 0
        %673 = vmatprep.subr.bf16.mxu0 0
        %674 = vmatpush1.bf16.msra.mxu0 0
        %675 = vmatprep.subr.bf16.mxu0 0
        %676 = vmatpush1.bf16.msra.mxu0 0
        %677 = vmatprep.subr.bf16.mxu0 0
        %678 = vmatpush1.bf16.msra.mxu0 0
        %679 = vmatprep.subr.bf16.mxu0 0
        %680 = vmatpush1.bf16.msra.mxu0 0
        %681 = vmatprep.mubr.bf16.mxu0 0
        %682 = vmatmul.mubr.bf16.gmra.mrb[0].mxu0 %v480
        %v683 = vpop.f32.mrb[0].mxu0
        %v684 = vadd.f32 0.0, %v683
        %v685 = vpop.f32.mrb[0].mxu0
        %v686 = vpop.f32.mrb[0].mxu0
        %v687 = vpop.f32.mrb[0].mxu0
        %688 = vdwg.mxu0
        %v689 = vxor.u32 %v580, 2147483648
        %v690 = vmul.f32 %v689, 1.442695
        %v691 = vpow.pop %v690
        %v692 = vadd.f32 %v691, 1.0
        %v693 = vrcp.pop %v692
        %v694 = vmul.f32 1.0, %v693
        %v695 = vmul.f32 %v580, %v694
        %v696 = vmul.f32 %v695, %v684
        %v697 = vld [vmem:[#allocation3] sm:$0xff]
        %v698 = vpack.c.bf16 %v696, %v696
        %v699 = vld [vmem:[%s453] sm:$0xf]
        %v700 = vld [vmem:[%s453 + $0x4] sm:$0xf]
        %v701 = vld [vmem:[%s453 + $0x8] sm:$0xf]
        %v702 = vld [vmem:[%s453 + $0xc] sm:$0xf]
        %v703 = vld [vmem:[%s453 + $0x10] sm:$0xf]
        %v704 = vld [vmem:[%s453 + $0x14] sm:$0xf]
        %v705 = vld [vmem:[%s453 + $0x18] sm:$0xf]
        %v706 = vld [vmem:[%s453 + $0x1c] sm:$0xf]
        %v707 = vld [vmem:[%s453 + $0x20] sm:$0xf]
        %v708 = vld [vmem:[%s453 + $0x24] sm:$0xf]
        %v709 = vld [vmem:[%s453 + $0x28] sm:$0xf]
        %v710 = vld [vmem:[%s453 + $0x2c] sm:$0xf]
        %v711 = vld [vmem:[%s453 + $0x30] sm:$0xf]
        %v712 = vld [vmem:[%s453 + $0x34] sm:$0xf]
        %v713 = vld [vmem:[%s453 + $0x38] sm:$0xf]
        %v714 = vld [vmem:[%s453 + $0x3c] sm:$0xf]
        %v731 = vunpack.c.l.b16 %v699
        %v732 = vunpack.c.l.b16 %v700
        %v733 = vunpack.c.l.b16 %v701
        %v734 = vunpack.c.l.b16 %v702
        %v735 = vunpack.c.l.b16 %v703
        %v736 = vunpack.c.l.b16 %v704
        %v737 = vunpack.c.l.b16 %v705
        %v738 = vunpack.c.l.b16 %v706
        %v739 = vunpack.c.l.b16 %v707
        %v740 = vunpack.c.l.b16 %v708
        %v741 = vunpack.c.l.b16 %v709
        %v742 = vunpack.c.l.b16 %v710
        %v743 = vunpack.c.l.b16 %v711
        %v744 = vunpack.c.l.b16 %v712
        %v745 = vunpack.c.l.b16 %v713
        %v746 = vunpack.c.l.b16 %v714
        %v747 = vpack.c.b16 %v732, %v731
        %v748 = vpack.c.b16 %v734, %v733
        %v749 = vpack.c.b16 %v736, %v735
        %v750 = vpack.c.b16 %v738, %v737
        %v751 = vpack.c.b16 %v740, %v739
        %v752 = vpack.c.b16 %v742, %v741
        %v753 = vpack.c.b16 %v744, %v743
        %v754 = vpack.c.b16 %v746, %v745
        %763 = vmatprep.subr.bf16.mxu0 0
        %764 = vmatpush1.bf16.msra.mxu0 %v747
        %765 = vmatprep.subr.bf16.mxu0 0
        %766 = vmatpush1.bf16.msra.mxu0 %v748
        %767 = vmatprep.subr.bf16.mxu0 0
        %768 = vmatpush1.bf16.msra.mxu0 %v749
        %769 = vmatprep.subr.bf16.mxu0 0
        %770 = vmatpush1.bf16.msra.mxu0 %v750
        %771 = vmatprep.subr.bf16.mxu0 0
        %772 = vmatpush1.bf16.msra.mxu0 %v751
        %773 = vmatprep.subr.bf16.mxu0 0
        %774 = vmatpush1.bf16.msra.mxu0 %v752
        %775 = vmatprep.subr.bf16.mxu0 0
        %776 = vmatpush1.bf16.msra.mxu0 %v753
        %777 = vmatprep.subr.bf16.mxu0 0
        %778 = vmatpush1.bf16.msra.mxu0 %v754
        %779 = vmatprep.subr.bf16.mxu0 0
        %780 = vmatpush1.bf16.msra.mxu0 0
        %781 = vmatprep.subr.bf16.mxu0 0
        %782 = vmatpush1.bf16.msra.mxu0 0
        %783 = vmatprep.subr.bf16.mxu0 0
        %784 = vmatpush1.bf16.msra.mxu0 0
        %785 = vmatprep.subr.bf16.mxu0 0
        %786 = vmatpush1.bf16.msra.mxu0 0
        %787 = vmatprep.subr.bf16.mxu0 0
        %788 = vmatpush1.bf16.msra.mxu0 0
        %789 = vmatprep.subr.bf16.mxu0 0
        %790 = vmatpush1.bf16.msra.mxu0 0
        %791 = vmatprep.subr.bf16.mxu0 0
        %792 = vmatpush1.bf16.msra.mxu0 0
        %793 = vmatprep.subr.bf16.mxu0 0
        %794 = vmatpush1.bf16.msra.mxu0 0
        %795 = vmatprep.mubr.bf16.mxu0 0
        %796 = vmatmul.mubr.bf16.gmra.mrb[0].mxu0 %v698
        %v797 = vpop.f32.mrb[0].mxu0
        %v798 = vadd.f32 0.0, %v797
        %v799 = vpop.f32.mrb[0].mxu0
        %v800 = vpop.f32.mrb[0].mxu0
        %v801 = vpop.f32.mrb[0].mxu0
        %802 = vdwg.mxu0
        %v803 = vadd.f32 %v697, %v798
        %804 = vst [vmem:[#allocation3] sm:$0xff] %v803
        %p805 = scmp.eq.s32.totalorder %s17, 2
        // Predicated region
        $region127: #{_lambda_.9} parent=113 // pred_check
          %p806 = pneg %p805
        $region128: #{_lambda_.9} parent=113 // pred_check_branch
          %808 = sbr.rel (%p806) target = $region130
        $region129: #{_lambda_.9} parent=113 // pred_region
          %v809 = vld [vmem:[%s0] sm:$0xff]
          %v810 = vld [vmem:[#allocation3] sm:$0xff]
          %v811 = vmul.f32 %v810, 0.7
          %v812 = vadd.f32 %v809, %v811
          %813 = vst [vmem:[#allocation6] sm:$0xff] %v812
        $region130: #{_lambda_.9} parent=113 // pred_fallthru
          _
        // Predicated region
        $region131: #{_lambda_.9} parent=113 // pred_check
          %p814 = pneg %p150
        $region132: #{_lambda_.9} parent=113 // pred_check_branch
          %816 = sbr.rel (%p814) target = $region134
        $region133: #{_lambda_.9} parent=113 // pred_region
          %s818 = ssub.s32 128, 128
          %819 = vsyncadd [#allocation7], %s818
          %s821 = sshll.u32 [#allocation6], 4
          %s822 = int_to_ptr.vmem [resolvable:$true] %s821
          %824 = dma.vmem_to_hbm [thread:$0]  %s822, 128, %s5, [#allocation7]
        $region134: #{_lambda_.9} parent=113 // pred_fallthru
          _
        // Predicated region
        $region135: #{_lambda_.9} parent=113 // pred_check
          %p825 = pneg %p150
        $region136: #{_lambda_.9} parent=113 // pred_check_branch
          %827 = sbr.rel (%p825) target = $region138
        $region137: #{_lambda_.9} parent=113 // pred_region
          %828 = dma.done [#allocation7], 128
        $region138: #{_lambda_.9} parent=113 // pred_fallthru
          _
      $region114: #{_lambda_.9} parent=5 // pred_fallthru
        _
      %p829 = scmp.le.s32.totalorder 2, %s12
      // Predicated region
      $region139: #{_lambda_.9} parent=5 // pred_check
        %p830 = pneg %p829
      $region140: #{_lambda_.9} parent=5 // pred_check_branch
        %832 = sbr.rel (%p830) target = $region142
      $region141: #{_lambda_.9} parent=5 // pred_region
        %s833 = ssub.s32 %s12, 2
      $region142: #{_lambda_.9} parent=5 // pred_fallthru
        _
    $region6: #{_lambda_.9} parent=1 // loop_footer
      %s16 = sadd.s32 1, %s12
    $region7: #{_lambda_.9} parent=1 // loop_footer_branch
      %11 = sbr.rel target = $region3
    $region8: #{_lambda_.9} parent=1 // loop_exit
      _
    %834 = vsyncpa [#allocation7], 1
    %s835 = scalar_lea.sflag [#allocation7], 1
    %836 = vsyncpa %s835, 1

</llo_original>
